<compile_context>
chip_gen: v7x
topology: tpu7x:2x2x1
jax: 0.10.0
libtpu: 0.0.40
codegen_flags: <defaults>
</compile_context>

<pallas_src>
import math

import jax
import jax.numpy as jnp
from jax.experimental import pallas as pl
from jax.experimental.pallas import tpu as pltpu

# ---------------- synthetic BERT config (small shapes) ----------------
VOCAB = 100
HIDDEN = 32
N_HEADS = 4
HEAD_DIM = HIDDEN // N_HEADS
N_LAYERS = 2
INTERMEDIATE = 64
MAX_POS = 16
TYPE_VOCAB = 2
NUM_LABELS = 3
LN_EPS = 1e-12

BATCH = 2
SEQ = 8


# ---------------- in-kernel helpers (operate on values, not refs) ----------------
def _layernorm(x, g, b):
    x = x.astype(jnp.float32)
    mu = jnp.mean(x, axis=-1, keepdims=True)
    var = jnp.mean((x - mu) ** 2, axis=-1, keepdims=True)
    return (x - mu) * jax.lax.rsqrt(var + LN_EPS) * g + b


def _gelu(x):
    # TODO(synk): HF BERT uses erf-GELU; tanh approximation used for the TPU EUP path.
    return 0.5 * x * (1.0 + jnp.tanh(0.7978845608028654 * (x + 0.044715 * x * x * x)))


# ---------------- fused whole-forward Pallas kernel (one batch element per program) ----
def _bert_fused_kernel(
    emb_ref,        # [1, S, H]  (blocked per batch)
    mask_ref,       # [1, 1, S]  additive attention mask (blocked per batch)
    emb_ln_g_ref,   # [1, H]
    emb_ln_b_ref,   # [1, H]
    qkv_w_ref,      # [L, H, 3H]
    qkv_b_ref,      # [L, 1, 3H]
    ao_w_ref,       # [L, H, H]
    ao_b_ref,       # [L, 1, H]
    ln1_g_ref,      # [L, 1, H]
    ln1_b_ref,      # [L, 1, H]
    fc1_w_ref,      # [L, H, I]
    fc1_b_ref,      # [L, 1, I]
    fc2_w_ref,      # [L, I, H]
    fc2_b_ref,      # [L, 1, H]
    ln2_g_ref,      # [L, 1, H]
    ln2_b_ref,      # [L, 1, H]
    pooler_w_ref,   # [H, H]
    pooler_b_ref,   # [1, H]
    cls_w_ref,      # [H, NUM_LABELS]
    cls_b_ref,      # [1, NUM_LABELS]
    out_ref,        # [1, 1, NUM_LABELS]
):
    x = _layernorm(emb_ref[0], emb_ln_g_ref[...], emb_ln_b_ref[...])  # [S, H]
    mask = mask_ref[0]                                                # [1, S] additive
    S = x.shape[0]
    scale = 1.0 / math.sqrt(HEAD_DIM)

    for l in range(N_LAYERS):  # static unroll
        # fused QKV projection: one [S,H] @ [H,3H] MXU pass
        qkv = (
            jnp.dot(x, qkv_w_ref[l], preferred_element_type=jnp.float32)
            + qkv_b_ref[l]
        )  # [S, 3H]

        # multi-head self-attention, heads sliced in-kernel (no XLA transposes);
        # head-merge + attention-output dense done as accumulated per-head matmuls.
        ao_w_l = ao_w_ref[l]  # [H, H]
        attn = jnp.zeros((S, HIDDEN), jnp.float32)
        for h in range(N_HEADS):  # static unroll
            lo = h * HEAD_DIM
            q_h = qkv[:, lo:lo + HEAD_DIM] * scale                       # fold 1/sqrt(Dh) into q
            k_h = qkv[:, HIDDEN + lo:HIDDEN + lo + HEAD_DIM]
            v_h = qkv[:, 2 * HIDDEN + lo:2 * HIDDEN + lo + HEAD_DIM]

            # scores: q_h @ k_h^T via dot_general (no explicit transpose)
            s = jax.lax.dot_general(
                q_h, k_h, (((1,), (1,)), ((), ())),
                preferred_element_type=jnp.float32,
            )                                                             # [S, S]
            s = s + mask
            s = s - jnp.max(s, axis=-1, keepdims=True)
            e = jnp.exp(s)
            p = e * pl.reciprocal(jnp.sum(e, axis=-1, keepdims=True), approx=True)

            ctx_h = jnp.dot(p, v_h, preferred_element_type=jnp.float32)   # [S, Dh]
            # merge-heads fused with attention-output dense
            attn = attn + jnp.dot(
                ctx_h, ao_w_l[lo:lo + HEAD_DIM, :],
                preferred_element_type=jnp.float32,
            )
        attn = attn + ao_b_ref[l]

        # residual + LayerNorm (fused, stays in VMEM)
        h1 = _layernorm(attn + x, ln1_g_ref[l], ln1_b_ref[l])

        # GELU FFN
        ff = (
            jnp.dot(h1, fc1_w_ref[l], preferred_element_type=jnp.float32)
            + fc1_b_ref[l]
        )
        ff = _gelu(ff)
        ff = (
            jnp.dot(ff, fc2_w_ref[l], preferred_element_type=jnp.float32)
            + fc2_b_ref[l]
        )
        x = _layernorm(ff + h1, ln2_g_ref[l], ln2_b_ref[l])

    # pooler (CLS token) + classifier
    cls = x[0:1, :]                                                       # [1, H]
    pooled = jnp.tanh(
        jnp.dot(cls, pooler_w_ref[...], preferred_element_type=jnp.float32)
        + pooler_b_ref[...]
    )
    logits = (
        jnp.dot(pooled, cls_w_ref[...], preferred_element_type=jnp.float32)
        + cls_b_ref[...]
    )                                                                     # [1, NUM_LABELS]
    out_ref[...] = logits.reshape(1, 1, NUM_LABELS).astype(out_ref.dtype)


def _replicated_spec(shape):
    """Grid-constant full-array block (weights): DMA'd once, reused every grid step."""
    return pl.BlockSpec(shape, lambda b: (0,) * len(shape))


def bert_fused_call(emb, ext_mask, p):
    """emb: [B, S, H] summed embeddings; ext_mask: [B, 1, S] additive mask."""
    B, S, H = emb.shape
    in_specs = [
        pl.BlockSpec((1, S, H), lambda b: (b, 0, 0)),     # embeddings (per batch)
        pl.BlockSpec((1, 1, S), lambda b: (b, 0, 0)),     # additive mask (per batch)
        _replicated_spec((1, H)),                         # emb LN gamma
        _replicated_spec((1, H)),                         # emb LN beta
        _replicated_spec((N_LAYERS, H, 3 * H)),           # qkv_w
        _replicated_spec((N_LAYERS, 1, 3 * H)),           # qkv_b
        _replicated_spec((N_LAYERS, H, H)),               # ao_w
        _replicated_spec((N_LAYERS, 1, H)),               # ao_b
        _replicated_spec((N_LAYERS, 1, H)),               # ln1_g
        _replicated_spec((N_LAYERS, 1, H)),               # ln1_b
        _replicated_spec((N_LAYERS, H, INTERMEDIATE)),    # fc1_w
        _replicated_spec((N_LAYERS, 1, INTERMEDIATE)),    # fc1_b
        _replicated_spec((N_LAYERS, INTERMEDIATE, H)),    # fc2_w
        _replicated_spec((N_LAYERS, 1, H)),               # fc2_b
        _replicated_spec((N_LAYERS, 1, H)),               # ln2_g
        _replicated_spec((N_LAYERS, 1, H)),               # ln2_b
        _replicated_spec((H, H)),                         # pooler_w
        _replicated_spec((1, H)),                         # pooler_b
        _replicated_spec((H, NUM_LABELS)),                # cls_w
        _replicated_spec((1, NUM_LABELS)),                # cls_b
    ]
    out = pl.pallas_call(
        _bert_fused_kernel,
        out_shape=jax.ShapeDtypeStruct((B, 1, NUM_LABELS), jnp.float32),
        grid=(B,),
        in_specs=in_specs,
        out_specs=pl.BlockSpec((1, 1, NUM_LABELS), lambda b: (b, 0, 0)),
        compiler_params=pltpu.CompilerParams(
            dimension_semantics=("parallel",),   # batch axis shards across v7x's 2 TCs
        ),
    )(
        emb, ext_mask,
        p["emb_ln_g"], p["emb_ln_b"],
        p["qkv_w"], p["qkv_b"], p["ao_w"], p["ao_b"],
        p["ln1_g"], p["ln1_b"], p["fc1_w"], p["fc1_b"],
        p["fc2_w"], p["fc2_b"], p["ln2_g"], p["ln2_b"],
        p["pooler_w"], p["pooler_b"], p["cls_w"], p["cls_b"],
    )
    return out.reshape(B, NUM_LABELS)


# ---------------- parameter initialization (deterministic, synthetic) ----------------
def init_params(key):
    def nrm(k, shape, scale=0.02):
        return scale * jax.random.normal(k, shape, dtype=jnp.float32)

    keys = iter(jax.random.split(key, 8 + 8 * N_LAYERS))

    params = {
        "word_emb": nrm(next(keys), (VOCAB, HIDDEN)),
        "pos_emb": nrm(next(keys), (MAX_POS, HIDDEN)),
        "type_emb": nrm(next(keys), (TYPE_VOCAB, HIDDEN)),
        "emb_ln_g": jnp.ones((1, HIDDEN), jnp.float32),
        "emb_ln_b": jnp.zeros((1, HIDDEN), jnp.float32),
        "pooler_w": nrm(next(keys), (HIDDEN, HIDDEN)),
        "pooler_b": jnp.zeros((1, HIDDEN), jnp.float32),
        "cls_w": nrm(next(keys), (HIDDEN, NUM_LABELS)),
        "cls_b": jnp.zeros((1, NUM_LABELS), jnp.float32),
    }

    qkv_w, ao_w, fc1_w, fc2_w = [], [], [], []
    for _ in range(N_LAYERS):
        q_w = nrm(next(keys), (HIDDEN, HIDDEN))
        k_w = nrm(next(keys), (HIDDEN, HIDDEN))
        v_w = nrm(next(keys), (HIDDEN, HIDDEN))
        qkv_w.append(jnp.concatenate([q_w, k_w, v_w], axis=1))   # [H, 3H] fused QKV
        ao_w.append(nrm(next(keys), (HIDDEN, HIDDEN)))
        fc1_w.append(nrm(next(keys), (HIDDEN, INTERMEDIATE)))
        fc2_w.append(nrm(next(keys), (INTERMEDIATE, HIDDEN)))

    params.update({
        "qkv_w": jnp.stack(qkv_w),                                        # [L, H, 3H]
        "qkv_b": jnp.zeros((N_LAYERS, 1, 3 * HIDDEN), jnp.float32),
        "ao_w": jnp.stack(ao_w),                                          # [L, H, H]
        "ao_b": jnp.zeros((N_LAYERS, 1, HIDDEN), jnp.float32),
        "ln1_g": jnp.ones((N_LAYERS, 1, HIDDEN), jnp.float32),
        "ln1_b": jnp.zeros((N_LAYERS, 1, HIDDEN), jnp.float32),
        "fc1_w": jnp.stack(fc1_w),                                        # [L, H, I]
        "fc1_b": jnp.zeros((N_LAYERS, 1, INTERMEDIATE), jnp.float32),
        "fc2_w": jnp.stack(fc2_w),                                        # [L, I, H]
        "fc2_b": jnp.zeros((N_LAYERS, 1, HIDDEN), jnp.float32),
        "ln2_g": jnp.ones((N_LAYERS, 1, HIDDEN), jnp.float32),
        "ln2_b": jnp.zeros((N_LAYERS, 1, HIDDEN), jnp.float32),
    })
    return params


# ---------------- forward pass ----------------
def bert_classifier_forward(params, input_ids, attention_mask, token_type_ids):
    B, S = input_ids.shape
    # embedding gathers stay in plain JAX (glue); everything else is one Pallas kernel
    emb = (
        params["word_emb"][input_ids]
        + params["pos_emb"][:S][None, :, :]
        + params["type_emb"][token_type_ids]
    )  # [B, S, H]

    # HF-style extended additive attention mask (-1e9 is fine in f32; use a
    # dtype-aware large-negative if activations ever move to bf16)
    ext_mask = ((1.0 - attention_mask.astype(jnp.float32)) * -1e9).reshape(B, 1, S)

    return bert_fused_call(emb, ext_mask, params)  # [B, NUM_LABELS]


# ---------------- main ----------------
if __name__ == "__main__":
    root = jax.random.PRNGKey(0)
    k_params, k_ids, k_mask = jax.random.split(root, 3)

    params = init_params(k_params)

    input_ids = jax.random.randint(k_ids, (BATCH, SEQ), 0, VOCAB, dtype=jnp.int32)
    # first batch row fully attended, second row has last two tokens masked out
    attention_mask = jnp.array(
        [[1] * SEQ, [1] * (SEQ - 2) + [0, 0]], dtype=jnp.int32
    )
    token_type_ids = jnp.zeros((BATCH, SEQ), dtype=jnp.int32)

    fwd = jax.jit(bert_classifier_forward)
    logits = fwd(params, input_ids, attention_mask, token_type_ids)
    jax.block_until_ready(logits)

    assert logits.shape == (BATCH, NUM_LABELS)
    assert bool(jnp.all(jnp.isfinite(logits)))
    print("KERNEL_OK")
</pallas_src>

<mosaic_0001>
module attributes {stable_mosaic.version = 11 : i64} {
  func.func @_bert_fused_kernel(%arg0: i32, %arg1: memref<1x8x32xf32, #tpu.memory_space<vmem>>, %arg2: memref<1x1x8xf32, #tpu.memory_space<vmem>>, %arg3: memref<1x32xf32, #tpu.memory_space<vmem>>, %arg4: memref<1x32xf32, #tpu.memory_space<vmem>>, %arg5: memref<2x32x96xf32, #tpu.memory_space<vmem>>, %arg6: memref<2x1x96xf32, #tpu.memory_space<vmem>>, %arg7: memref<2x32x32xf32, #tpu.memory_space<vmem>>, %arg8: memref<2x1x32xf32, #tpu.memory_space<vmem>>, %arg9: memref<2x1x32xf32, #tpu.memory_space<vmem>>, %arg10: memref<2x1x32xf32, #tpu.memory_space<vmem>>, %arg11: memref<2x32x64xf32, #tpu.memory_space<vmem>>, %arg12: memref<2x1x64xf32, #tpu.memory_space<vmem>>, %arg13: memref<2x64x32xf32, #tpu.memory_space<vmem>>, %arg14: memref<2x1x32xf32, #tpu.memory_space<vmem>>, %arg15: memref<2x1x32xf32, #tpu.memory_space<vmem>>, %arg16: memref<2x1x32xf32, #tpu.memory_space<vmem>>, %arg17: memref<32x32xf32, #tpu.memory_space<vmem>>, %arg18: memref<1x32xf32, #tpu.memory_space<vmem>>, %arg19: memref<32x3xf32, #tpu.memory_space<vmem>>, %arg20: memref<1x3xf32, #tpu.memory_space<vmem>>, %arg21: memref<1x1x3xf32, #tpu.memory_space<vmem>>) attributes {dimension_semantics = [#tpu.dimension_semantics<parallel>], iteration_bounds = array<i64: 2>, scalar_prefetch = 0 : i64, scratch_operands = 0 : i64, tpu.core_type = #tpu.core_type<tc>, window_params = [{transform_indices = @transform_0, window_bounds = array<i64: 1, 8, 32>}, {transform_indices = @transform_1, window_bounds = array<i64: 1, 1, 8>}, {pipeline_mode = #tpu.pipeline_mode<synchronous>, transform_indices = @transform_2, window_bounds = array<i64: 1, 32>}, {pipeline_mode = #tpu.pipeline_mode<synchronous>, transform_indices = @transform_3, window_bounds = array<i64: 1, 32>}, {pipeline_mode = #tpu.pipeline_mode<synchronous>, transform_indices = @transform_4, window_bounds = array<i64: 2, 32, 96>}, {pipeline_mode = #tpu.pipeline_mode<synchronous>, transform_indices = @transform_5, window_bounds = array<i64: 2, 1, 96>}, {pipeline_mode = #tpu.pipeline_mode<synchronous>, transform_indices = @transform_6, window_bounds = array<i64: 2, 32, 32>}, {pipeline_mode = #tpu.pipeline_mode<synchronous>, transform_indices = @transform_7, window_bounds = array<i64: 2, 1, 32>}, {pipeline_mode = #tpu.pipeline_mode<synchronous>, transform_indices = @transform_8, window_bounds = array<i64: 2, 1, 32>}, {pipeline_mode = #tpu.pipeline_mode<synchronous>, transform_indices = @transform_9, window_bounds = array<i64: 2, 1, 32>}, {pipeline_mode = #tpu.pipeline_mode<synchronous>, transform_indices = @transform_10, window_bounds = array<i64: 2, 32, 64>}, {pipeline_mode = #tpu.pipeline_mode<synchronous>, transform_indices = @transform_11, window_bounds = array<i64: 2, 1, 64>}, {pipeline_mode = #tpu.pipeline_mode<synchronous>, transform_indices = @transform_12, window_bounds = array<i64: 2, 64, 32>}, {pipeline_mode = #tpu.pipeline_mode<synchronous>, transform_indices = @transform_13, window_bounds = array<i64: 2, 1, 32>}, {pipeline_mode = #tpu.pipeline_mode<synchronous>, transform_indices = @transform_14, window_bounds = array<i64: 2, 1, 32>}, {pipeline_mode = #tpu.pipeline_mode<synchronous>, transform_indices = @transform_15, window_bounds = array<i64: 2, 1, 32>}, {pipeline_mode = #tpu.pipeline_mode<synchronous>, transform_indices = @transform_16, window_bounds = array<i64: 32, 32>}, {pipeline_mode = #tpu.pipeline_mode<synchronous>, transform_indices = @transform_17, window_bounds = array<i64: 1, 32>}, {pipeline_mode = #tpu.pipeline_mode<synchronous>, transform_indices = @transform_18, window_bounds = array<i64: 32, 3>}, {pipeline_mode = #tpu.pipeline_mode<synchronous>, transform_indices = @transform_19, window_bounds = array<i64: 1, 3>}, {transform_indices = @transform_20, window_bounds = array<i64: 1, 1, 3>}]} {
    %c0 = arith.constant 0 : index
    %c0_0 = arith.constant 0 : index
    %c0_1 = arith.constant 0 : index
    %0 = vector.load %arg1[%c0, %c0_0, %c0_1] : memref<1x8x32xf32, #tpu.memory_space<vmem>>, vector<1x8x32xf32>
    %1 = vector.shape_cast %0 : vector<1x8x32xf32> to vector<8x32xf32>
    %c0_2 = arith.constant 0 : index
    %c0_3 = arith.constant 0 : index
    %2 = vector.load %arg3[%c0_2, %c0_3] : memref<1x32xf32, #tpu.memory_space<vmem>>, vector<1x32xf32>
    %c0_4 = arith.constant 0 : index
    %c0_5 = arith.constant 0 : index
    %3 = vector.load %arg4[%c0_4, %c0_5] : memref<1x32xf32, #tpu.memory_space<vmem>>, vector<1x32xf32>
    %cst = arith.constant dense<0.000000e+00> : vector<8xf32>
    %4 = vector.multi_reduction <add>, %1, %cst [1] : vector<8x32xf32> to vector<8xf32>
    %5 = vector.shape_cast %4 : vector<8xf32> to vector<8x1xf32>
    %cst_6 = arith.constant 3.200000e+01 : f32
    %6 = vector.broadcast %cst_6 : f32 to vector<8x1xf32>
    %7 = arith.divf %5, %6 : vector<8x1xf32>
    %8 = vector.broadcast %7 : vector<8x1xf32> to vector<8x32xf32>
    %9 = arith.subf %1, %8 : vector<8x32xf32>
    %10 = arith.mulf %9, %9 : vector<8x32xf32>
    %cst_7 = arith.constant dense<0.000000e+00> : vector<8xf32>
    %11 = vector.multi_reduction <add>, %10, %cst_7 [1] : vector<8x32xf32> to vector<8xf32>
    %12 = vector.shape_cast %11 : vector<8xf32> to vector<8x1xf32>
    %cst_8 = arith.constant 3.200000e+01 : f32
    %13 = vector.broadcast %cst_8 : f32 to vector<8x1xf32>
    %14 = arith.divf %12, %13 : vector<8x1xf32>
    %15 = vector.broadcast %7 : vector<8x1xf32> to vector<8x32xf32>
    %16 = arith.subf %1, %15 : vector<8x32xf32>
    %cst_9 = arith.constant 9.99999996E-13 : f32
    %17 = vector.broadcast %cst_9 : f32 to vector<8x1xf32>
    %18 = arith.addf %14, %17 : vector<8x1xf32>
    %19 = math.rsqrt %18 : vector<8x1xf32>
    %20 = vector.broadcast %19 : vector<8x1xf32> to vector<8x32xf32>
    %21 = arith.mulf %16, %20 : vector<8x32xf32>
    %22 = vector.broadcast %2 : vector<1x32xf32> to vector<8x32xf32>
    %23 = arith.mulf %21, %22 : vector<8x32xf32>
    %24 = vector.broadcast %3 : vector<1x32xf32> to vector<8x32xf32>
    %25 = arith.addf %23, %24 : vector<8x32xf32>
    %c0_10 = arith.constant 0 : index
    %c0_11 = arith.constant 0 : index
    %c0_12 = arith.constant 0 : index
    %26 = vector.load %arg2[%c0_10, %c0_11, %c0_12] : memref<1x1x8xf32, #tpu.memory_space<vmem>>, vector<1x1x8xf32>
    %27 = vector.shape_cast %26 : vector<1x1x8xf32> to vector<1x8xf32>
    %c0_13 = arith.constant 0 : index
    %c0_14 = arith.constant 0 : index
    %c0_15 = arith.constant 0 : index
    %28 = vector.load %arg5[%c0_13, %c0_14, %c0_15] : memref<2x32x96xf32, #tpu.memory_space<vmem>>, vector<1x32x96xf32>
    %29 = vector.shape_cast %28 : vector<1x32x96xf32> to vector<32x96xf32>
    %cst_16 = arith.constant dense<0.000000e+00> : vector<8x96xf32>
    %30 = tpu.matmul %25, %29, %cst_16 {dimension_numbers = #tpu.dot_dimension_numbers<[1], [0], [0], [1], [0, 0, 1, 1], [], []>} : vector<8x32xf32>, vector<32x96xf32>, vector<8x96xf32> -> vector<8x96xf32>
    %c0_17 = arith.constant 0 : index
    %c0_18 = arith.constant 0 : index
    %c0_19 = arith.constant 0 : index
    %31 = vector.load %arg6[%c0_17, %c0_18, %c0_19] : memref<2x1x96xf32, #tpu.memory_space<vmem>>, vector<1x1x96xf32>
    %32 = vector.shape_cast %31 : vector<1x1x96xf32> to vector<1x96xf32>
    %33 = vector.broadcast %32 : vector<1x96xf32> to vector<8x96xf32>
    %34 = arith.addf %30, %33 : vector<8x96xf32>
    %c0_20 = arith.constant 0 : index
    %c0_21 = arith.constant 0 : index
    %c0_22 = arith.constant 0 : index
    %35 = vector.load %arg7[%c0_20, %c0_21, %c0_22] : memref<2x32x32xf32, #tpu.memory_space<vmem>>, vector<1x32x32xf32>
    %36 = vector.shape_cast %35 : vector<1x32x32xf32> to vector<32x32xf32>
    %cst_23 = arith.constant 0.000000e+00 : f32
    %37 = vector.broadcast %cst_23 : f32 to vector<8x32xf32>
    %38 = vector.extract_strided_slice %34 {offsets = [0, 0], sizes = [8, 8], strides = [1, 1]} : vector<8x96xf32> to vector<8x8xf32>
    %cst_24 = arith.constant 0.353553385 : f32
    %39 = vector.broadcast %cst_24 : f32 to vector<8x8xf32>
    %40 = arith.mulf %38, %39 : vector<8x8xf32>
    %41 = vector.extract_strided_slice %34 {offsets = [0, 32], sizes = [8, 8], strides = [1, 1]} : vector<8x96xf32> to vector<8x8xf32>
    %42 = vector.extract_strided_slice %34 {offsets = [0, 64], sizes = [8, 8], strides = [1, 1]} : vector<8x96xf32> to vector<8x8xf32>
    %cst_25 = arith.constant dense<0.000000e+00> : vector<8x8xf32>
    %43 = tpu.matmul %40, %41, %cst_25 {dimension_numbers = #tpu.dot_dimension_numbers<[1], [1], [0], [0], [0, 0, 1, 0], [], []>} : vector<8x8xf32>, vector<8x8xf32>, vector<8x8xf32> -> vector<8x8xf32>
    %44 = vector.broadcast %27 : vector<1x8xf32> to vector<8x8xf32>
    %45 = arith.addf %43, %44 : vector<8x8xf32>
    %cst_26 = arith.constant dense<0xFF800000> : vector<8xf32>
    %46 = vector.multi_reduction <maximumf>, %45, %cst_26 [1] : vector<8x8xf32> to vector<8xf32>
    %47 = vector.shape_cast %46 : vector<8xf32> to vector<8x1xf32>
    %48 = vector.broadcast %47 : vector<8x1xf32> to vector<8x8xf32>
    %49 = arith.subf %45, %48 : vector<8x8xf32>
    %50 = math.exp %49 : vector<8x8xf32>
    %cst_27 = arith.constant dense<0.000000e+00> : vector<8xf32>
    %51 = vector.multi_reduction <add>, %50, %cst_27 [1] : vector<8x8xf32> to vector<8xf32>
    %52 = vector.shape_cast %51 : vector<8xf32> to vector<8x1xf32>
    %53 = tpu.reciprocal %52 {approx = true} : vector<8x1xf32> -> vector<8x1xf32>
    %54 = vector.broadcast %53 : vector<8x1xf32> to vector<8x8xf32>
    %55 = arith.mulf %50, %54 : vector<8x8xf32>
    %cst_28 = arith.constant dense<0.000000e+00> : vector<8x8xf32>
    %56 = tpu.matmul %55, %42, %cst_28 {dimension_numbers = #tpu.dot_dimension_numbers<[1], [0], [0], [1], [0, 0, 1, 1], [], []>} : vector<8x8xf32>, vector<8x8xf32>, vector<8x8xf32> -> vector<8x8xf32>
    %57 = vector.extract_strided_slice %36 {offsets = [0, 0], sizes = [8, 32], strides = [1, 1]} : vector<32x32xf32> to vector<8x32xf32>
    %cst_29 = arith.constant dense<0.000000e+00> : vector<8x32xf32>
    %58 = tpu.matmul %56, %57, %cst_29 {dimension_numbers = #tpu.dot_dimension_numbers<[1], [0], [0], [1], [0, 0, 1, 1], [], []>} : vector<8x8xf32>, vector<8x32xf32>, vector<8x32xf32> -> vector<8x32xf32>
    %59 = arith.addf %37, %58 : vector<8x32xf32>
    %60 = vector.extract_strided_slice %34 {offsets = [0, 8], sizes = [8, 8], strides = [1, 1]} : vector<8x96xf32> to vector<8x8xf32>
    %cst_30 = arith.constant 0.353553385 : f32
    %61 = vector.broadcast %cst_30 : f32 to vector<8x8xf32>
    %62 = arith.mulf %60, %61 : vector<8x8xf32>
    %63 = vector.extract_strided_slice %34 {offsets = [0, 40], sizes = [8, 8], strides = [1, 1]} : vector<8x96xf32> to vector<8x8xf32>
    %64 = vector.extract_strided_slice %34 {offsets = [0, 72], sizes = [8, 8], strides = [1, 1]} : vector<8x96xf32> to vector<8x8xf32>
    %cst_31 = arith.constant dense<0.000000e+00> : vector<8x8xf32>
    %65 = tpu.matmul %62, %63, %cst_31 {dimension_numbers = #tpu.dot_dimension_numbers<[1], [1], [0], [0], [0, 0, 1, 0], [], []>} : vector<8x8xf32>, vector<8x8xf32>, vector<8x8xf32> -> vector<8x8xf32>
    %66 = vector.broadcast %27 : vector<1x8xf32> to vector<8x8xf32>
    %67 = arith.addf %65, %66 : vector<8x8xf32>
    %cst_32 = arith.constant dense<0xFF800000> : vector<8xf32>
    %68 = vector.multi_reduction <maximumf>, %67, %cst_32 [1] : vector<8x8xf32> to vector<8xf32>
    %69 = vector.shape_cast %68 : vector<8xf32> to vector<8x1xf32>
    %70 = vector.broadcast %69 : vector<8x1xf32> to vector<8x8xf32>
    %71 = arith.subf %67, %70 : vector<8x8xf32>
    %72 = math.exp %71 : vector<8x8xf32>
    %cst_33 = arith.constant dense<0.000000e+00> : vector<8xf32>
    %73 = vector.multi_reduction <add>, %72, %cst_33 [1] : vector<8x8xf32> to vector<8xf32>
    %74 = vector.shape_cast %73 : vector<8xf32> to vector<8x1xf32>
    %75 = tpu.reciprocal %74 {approx = true} : vector<8x1xf32> -> vector<8x1xf32>
    %76 = vector.broadcast %75 : vector<8x1xf32> to vector<8x8xf32>
    %77 = arith.mulf %72, %76 : vector<8x8xf32>
    %cst_34 = arith.constant dense<0.000000e+00> : vector<8x8xf32>
    %78 = tpu.matmul %77, %64, %cst_34 {dimension_numbers = #tpu.dot_dimension_numbers<[1], [0], [0], [1], [0, 0, 1, 1], [], []>} : vector<8x8xf32>, vector<8x8xf32>, vector<8x8xf32> -> vector<8x8xf32>
    %79 = vector.extract_strided_slice %36 {offsets = [8, 0], sizes = [8, 32], strides = [1, 1]} : vector<32x32xf32> to vector<8x32xf32>
    %cst_35 = arith.constant dense<0.000000e+00> : vector<8x32xf32>
    %80 = tpu.matmul %78, %79, %cst_35 {dimension_numbers = #tpu.dot_dimension_numbers<[1], [0], [0], [1], [0, 0, 1, 1], [], []>} : vector<8x8xf32>, vector<8x32xf32>, vector<8x32xf32> -> vector<8x32xf32>
    %81 = arith.addf %59, %80 : vector<8x32xf32>
    %82 = vector.extract_strided_slice %34 {offsets = [0, 16], sizes = [8, 8], strides = [1, 1]} : vector<8x96xf32> to vector<8x8xf32>
    %cst_36 = arith.constant 0.353553385 : f32
    %83 = vector.broadcast %cst_36 : f32 to vector<8x8xf32>
    %84 = arith.mulf %82, %83 : vector<8x8xf32>
    %85 = vector.extract_strided_slice %34 {offsets = [0, 48], sizes = [8, 8], strides = [1, 1]} : vector<8x96xf32> to vector<8x8xf32>
    %86 = vector.extract_strided_slice %34 {offsets = [0, 80], sizes = [8, 8], strides = [1, 1]} : vector<8x96xf32> to vector<8x8xf32>
    %cst_37 = arith.constant dense<0.000000e+00> : vector<8x8xf32>
    %87 = tpu.matmul %84, %85, %cst_37 {dimension_numbers = #tpu.dot_dimension_numbers<[1], [1], [0], [0], [0, 0, 1, 0], [], []>} : vector<8x8xf32>, vector<8x8xf32>, vector<8x8xf32> -> vector<8x8xf32>
    %88 = vector.broadcast %27 : vector<1x8xf32> to vector<8x8xf32>
    %89 = arith.addf %87, %88 : vector<8x8xf32>
    %cst_38 = arith.constant dense<0xFF800000> : vector<8xf32>
    %90 = vector.multi_reduction <maximumf>, %89, %cst_38 [1] : vector<8x8xf32> to vector<8xf32>
    %91 = vector.shape_cast %90 : vector<8xf32> to vector<8x1xf32>
    %92 = vector.broadcast %91 : vector<8x1xf32> to vector<8x8xf32>
    %93 = arith.subf %89, %92 : vector<8x8xf32>
    %94 = math.exp %93 : vector<8x8xf32>
    %cst_39 = arith.constant dense<0.000000e+00> : vector<8xf32>
    %95 = vector.multi_reduction <add>, %94, %cst_39 [1] : vector<8x8xf32> to vector<8xf32>
    %96 = vector.shape_cast %95 : vector<8xf32> to vector<8x1xf32>
    %97 = tpu.reciprocal %96 {approx = true} : vector<8x1xf32> -> vector<8x1xf32>
    %98 = vector.broadcast %97 : vector<8x1xf32> to vector<8x8xf32>
    %99 = arith.mulf %94, %98 : vector<8x8xf32>
    %cst_40 = arith.constant dense<0.000000e+00> : vector<8x8xf32>
    %100 = tpu.matmul %99, %86, %cst_40 {dimension_numbers = #tpu.dot_dimension_numbers<[1], [0], [0], [1], [0, 0, 1, 1], [], []>} : vector<8x8xf32>, vector<8x8xf32>, vector<8x8xf32> -> vector<8x8xf32>
    %101 = vector.extract_strided_slice %36 {offsets = [16, 0], sizes = [8, 32], strides = [1, 1]} : vector<32x32xf32> to vector<8x32xf32>
    %cst_41 = arith.constant dense<0.000000e+00> : vector<8x32xf32>
    %102 = tpu.matmul %100, %101, %cst_41 {dimension_numbers = #tpu.dot_dimension_numbers<[1], [0], [0], [1], [0, 0, 1, 1], [], []>} : vector<8x8xf32>, vector<8x32xf32>, vector<8x32xf32> -> vector<8x32xf32>
    %103 = arith.addf %81, %102 : vector<8x32xf32>
    %104 = vector.extract_strided_slice %34 {offsets = [0, 24], sizes = [8, 8], strides = [1, 1]} : vector<8x96xf32> to vector<8x8xf32>
    %cst_42 = arith.constant 0.353553385 : f32
    %105 = vector.broadcast %cst_42 : f32 to vector<8x8xf32>
    %106 = arith.mulf %104, %105 : vector<8x8xf32>
    %107 = vector.extract_strided_slice %34 {offsets = [0, 56], sizes = [8, 8], strides = [1, 1]} : vector<8x96xf32> to vector<8x8xf32>
    %108 = vector.extract_strided_slice %34 {offsets = [0, 88], sizes = [8, 8], strides = [1, 1]} : vector<8x96xf32> to vector<8x8xf32>
    %cst_43 = arith.constant dense<0.000000e+00> : vector<8x8xf32>
    %109 = tpu.matmul %106, %107, %cst_43 {dimension_numbers = #tpu.dot_dimension_numbers<[1], [1], [0], [0], [0, 0, 1, 0], [], []>} : vector<8x8xf32>, vector<8x8xf32>, vector<8x8xf32> -> vector<8x8xf32>
    %110 = vector.broadcast %27 : vector<1x8xf32> to vector<8x8xf32>
    %111 = arith.addf %109, %110 : vector<8x8xf32>
    %cst_44 = arith.constant dense<0xFF800000> : vector<8xf32>
    %112 = vector.multi_reduction <maximumf>, %111, %cst_44 [1] : vector<8x8xf32> to vector<8xf32>
    %113 = vector.shape_cast %112 : vector<8xf32> to vector<8x1xf32>
    %114 = vector.broadcast %113 : vector<8x1xf32> to vector<8x8xf32>
    %115 = arith.subf %111, %114 : vector<8x8xf32>
    %116 = math.exp %115 : vector<8x8xf32>
    %cst_45 = arith.constant dense<0.000000e+00> : vector<8xf32>
    %117 = vector.multi_reduction <add>, %116, %cst_45 [1] : vector<8x8xf32> to vector<8xf32>
    %118 = vector.shape_cast %117 : vector<8xf32> to vector<8x1xf32>
    %119 = tpu.reciprocal %118 {approx = true} : vector<8x1xf32> -> vector<8x1xf32>
    %120 = vector.broadcast %119 : vector<8x1xf32> to vector<8x8xf32>
    %121 = arith.mulf %116, %120 : vector<8x8xf32>
    %cst_46 = arith.constant dense<0.000000e+00> : vector<8x8xf32>
    %122 = tpu.matmul %121, %108, %cst_46 {dimension_numbers = #tpu.dot_dimension_numbers<[1], [0], [0], [1], [0, 0, 1, 1], [], []>} : vector<8x8xf32>, vector<8x8xf32>, vector<8x8xf32> -> vector<8x8xf32>
    %123 = vector.extract_strided_slice %36 {offsets = [24, 0], sizes = [8, 32], strides = [1, 1]} : vector<32x32xf32> to vector<8x32xf32>
    %cst_47 = arith.constant dense<0.000000e+00> : vector<8x32xf32>
    %124 = tpu.matmul %122, %123, %cst_47 {dimension_numbers = #tpu.dot_dimension_numbers<[1], [0], [0], [1], [0, 0, 1, 1], [], []>} : vector<8x8xf32>, vector<8x32xf32>, vector<8x32xf32> -> vector<8x32xf32>
    %125 = arith.addf %103, %124 : vector<8x32xf32>
    %c0_48 = arith.constant 0 : index
    %c0_49 = arith.constant 0 : index
    %c0_50 = arith.constant 0 : index
    %126 = vector.load %arg8[%c0_48, %c0_49, %c0_50] : memref<2x1x32xf32, #tpu.memory_space<vmem>>, vector<1x1x32xf32>
    %127 = vector.shape_cast %126 : vector<1x1x32xf32> to vector<1x32xf32>
    %128 = vector.broadcast %127 : vector<1x32xf32> to vector<8x32xf32>
    %129 = arith.addf %125, %128 : vector<8x32xf32>
    %130 = arith.addf %129, %25 : vector<8x32xf32>
    %c0_51 = arith.constant 0 : index
    %c0_52 = arith.constant 0 : index
    %c0_53 = arith.constant 0 : index
    %131 = vector.load %arg9[%c0_51, %c0_52, %c0_53] : memref<2x1x32xf32, #tpu.memory_space<vmem>>, vector<1x1x32xf32>
    %132 = vector.shape_cast %131 : vector<1x1x32xf32> to vector<1x32xf32>
    %c0_54 = arith.constant 0 : index
    %c0_55 = arith.constant 0 : index
    %c0_56 = arith.constant 0 : index
    %133 = vector.load %arg10[%c0_54, %c0_55, %c0_56] : memref<2x1x32xf32, #tpu.memory_space<vmem>>, vector<1x1x32xf32>
    %134 = vector.shape_cast %133 : vector<1x1x32xf32> to vector<1x32xf32>
    %cst_57 = arith.constant dense<0.000000e+00> : vector<8xf32>
    %135 = vector.multi_reduction <add>, %130, %cst_57 [1] : vector<8x32xf32> to vector<8xf32>
    %136 = vector.shape_cast %135 : vector<8xf32> to vector<8x1xf32>
    %cst_58 = arith.constant 3.200000e+01 : f32
    %137 = vector.broadcast %cst_58 : f32 to vector<8x1xf32>
    %138 = arith.divf %136, %137 : vector<8x1xf32>
    %139 = vector.broadcast %138 : vector<8x1xf32> to vector<8x32xf32>
    %140 = arith.subf %130, %139 : vector<8x32xf32>
    %141 = arith.mulf %140, %140 : vector<8x32xf32>
    %cst_59 = arith.constant dense<0.000000e+00> : vector<8xf32>
    %142 = vector.multi_reduction <add>, %141, %cst_59 [1] : vector<8x32xf32> to vector<8xf32>
    %143 = vector.shape_cast %142 : vector<8xf32> to vector<8x1xf32>
    %cst_60 = arith.constant 3.200000e+01 : f32
    %144 = vector.broadcast %cst_60 : f32 to vector<8x1xf32>
    %145 = arith.divf %143, %144 : vector<8x1xf32>
    %146 = vector.broadcast %138 : vector<8x1xf32> to vector<8x32xf32>
    %147 = arith.subf %130, %146 : vector<8x32xf32>
    %cst_61 = arith.constant 9.99999996E-13 : f32
    %148 = vector.broadcast %cst_61 : f32 to vector<8x1xf32>
    %149 = arith.addf %145, %148 : vector<8x1xf32>
    %150 = math.rsqrt %149 : vector<8x1xf32>
    %151 = vector.broadcast %150 : vector<8x1xf32> to vector<8x32xf32>
    %152 = arith.mulf %147, %151 : vector<8x32xf32>
    %153 = vector.broadcast %132 : vector<1x32xf32> to vector<8x32xf32>
    %154 = arith.mulf %152, %153 : vector<8x32xf32>
    %155 = vector.broadcast %134 : vector<1x32xf32> to vector<8x32xf32>
    %156 = arith.addf %154, %155 : vector<8x32xf32>
    %c0_62 = arith.constant 0 : index
    %c0_63 = arith.constant 0 : index
    %c0_64 = arith.constant 0 : index
    %157 = vector.load %arg11[%c0_62, %c0_63, %c0_64] : memref<2x32x64xf32, #tpu.memory_space<vmem>>, vector<1x32x64xf32>
    %158 = vector.shape_cast %157 : vector<1x32x64xf32> to vector<32x64xf32>
    %cst_65 = arith.constant dense<0.000000e+00> : vector<8x64xf32>
    %159 = tpu.matmul %156, %158, %cst_65 {dimension_numbers = #tpu.dot_dimension_numbers<[1], [0], [0], [1], [0, 0, 1, 1], [], []>} : vector<8x32xf32>, vector<32x64xf32>, vector<8x64xf32> -> vector<8x64xf32>
    %c0_66 = arith.constant 0 : index
    %c0_67 = arith.constant 0 : index
    %c0_68 = arith.constant 0 : index
    %160 = vector.load %arg12[%c0_66, %c0_67, %c0_68] : memref<2x1x64xf32, #tpu.memory_space<vmem>>, vector<1x1x64xf32>
    %161 = vector.shape_cast %160 : vector<1x1x64xf32> to vector<1x64xf32>
    %162 = vector.broadcast %161 : vector<1x64xf32> to vector<8x64xf32>
    %163 = arith.addf %159, %162 : vector<8x64xf32>
    %cst_69 = arith.constant 5.000000e-01 : f32
    %164 = vector.broadcast %cst_69 : f32 to vector<8x64xf32>
    %165 = arith.mulf %164, %163 : vector<8x64xf32>
    %cst_70 = arith.constant 4.471500e-02 : f32
    %166 = vector.broadcast %cst_70 : f32 to vector<8x64xf32>
    %167 = arith.mulf %166, %163 : vector<8x64xf32>
    %168 = arith.mulf %167, %163 : vector<8x64xf32>
    %169 = arith.mulf %168, %163 : vector<8x64xf32>
    %170 = arith.addf %163, %169 : vector<8x64xf32>
    %cst_71 = arith.constant 0.797884583 : f32
    %171 = vector.broadcast %cst_71 : f32 to vector<8x64xf32>
    %172 = arith.mulf %171, %170 : vector<8x64xf32>
    %173 = math.tanh %172 : vector<8x64xf32>
    %cst_72 = arith.constant 1.000000e+00 : f32
    %174 = vector.broadcast %cst_72 : f32 to vector<8x64xf32>
    %175 = arith.addf %174, %173 : vector<8x64xf32>
    %176 = arith.mulf %165, %175 : vector<8x64xf32>
    %c0_73 = arith.constant 0 : index
    %c0_74 = arith.constant 0 : index
    %c0_75 = arith.constant 0 : index
    %177 = vector.load %arg13[%c0_73, %c0_74, %c0_75] : memref<2x64x32xf32, #tpu.memory_space<vmem>>, vector<1x64x32xf32>
    %178 = vector.shape_cast %177 : vector<1x64x32xf32> to vector<64x32xf32>
    %cst_76 = arith.constant dense<0.000000e+00> : vector<8x32xf32>
    %179 = tpu.matmul %176, %178, %cst_76 {dimension_numbers = #tpu.dot_dimension_numbers<[1], [0], [0], [1], [0, 0, 1, 1], [], []>} : vector<8x64xf32>, vector<64x32xf32>, vector<8x32xf32> -> vector<8x32xf32>
    %c0_77 = arith.constant 0 : index
    %c0_78 = arith.constant 0 : index
    %c0_79 = arith.constant 0 : index
    %180 = vector.load %arg14[%c0_77, %c0_78, %c0_79] : memref<2x1x32xf32, #tpu.memory_space<vmem>>, vector<1x1x32xf32>
    %181 = vector.shape_cast %180 : vector<1x1x32xf32> to vector<1x32xf32>
    %182 = vector.broadcast %181 : vector<1x32xf32> to vector<8x32xf32>
    %183 = arith.addf %179, %182 : vector<8x32xf32>
    %184 = arith.addf %183, %156 : vector<8x32xf32>
    %c0_80 = arith.constant 0 : index
    %c0_81 = arith.constant 0 : index
    %c0_82 = arith.constant 0 : index
    %185 = vector.load %arg15[%c0_80, %c0_81, %c0_82] : memref<2x1x32xf32, #tpu.memory_space<vmem>>, vector<1x1x32xf32>
    %186 = vector.shape_cast %185 : vector<1x1x32xf32> to vector<1x32xf32>
    %c0_83 = arith.constant 0 : index
    %c0_84 = arith.constant 0 : index
    %c0_85 = arith.constant 0 : index
    %187 = vector.load %arg16[%c0_83, %c0_84, %c0_85] : memref<2x1x32xf32, #tpu.memory_space<vmem>>, vector<1x1x32xf32>
    %188 = vector.shape_cast %187 : vector<1x1x32xf32> to vector<1x32xf32>
    %cst_86 = arith.constant dense<0.000000e+00> : vector<8xf32>
    %189 = vector.multi_reduction <add>, %184, %cst_86 [1] : vector<8x32xf32> to vector<8xf32>
    %190 = vector.shape_cast %189 : vector<8xf32> to vector<8x1xf32>
    %cst_87 = arith.constant 3.200000e+01 : f32
    %191 = vector.broadcast %cst_87 : f32 to vector<8x1xf32>
    %192 = arith.divf %190, %191 : vector<8x1xf32>
    %193 = vector.broadcast %192 : vector<8x1xf32> to vector<8x32xf32>
    %194 = arith.subf %184, %193 : vector<8x32xf32>
    %195 = arith.mulf %194, %194 : vector<8x32xf32>
    %cst_88 = arith.constant dense<0.000000e+00> : vector<8xf32>
    %196 = vector.multi_reduction <add>, %195, %cst_88 [1] : vector<8x32xf32> to vector<8xf32>
    %197 = vector.shape_cast %196 : vector<8xf32> to vector<8x1xf32>
    %cst_89 = arith.constant 3.200000e+01 : f32
    %198 = vector.broadcast %cst_89 : f32 to vector<8x1xf32>
    %199 = arith.divf %197, %198 : vector<8x1xf32>
    %200 = vector.broadcast %192 : vector<8x1xf32> to vector<8x32xf32>
    %201 = arith.subf %184, %200 : vector<8x32xf32>
    %cst_90 = arith.constant 9.99999996E-13 : f32
    %202 = vector.broadcast %cst_90 : f32 to vector<8x1xf32>
    %203 = arith.addf %199, %202 : vector<8x1xf32>
    %204 = math.rsqrt %203 : vector<8x1xf32>
    %205 = vector.broadcast %204 : vector<8x1xf32> to vector<8x32xf32>
    %206 = arith.mulf %201, %205 : vector<8x32xf32>
    %207 = vector.broadcast %186 : vector<1x32xf32> to vector<8x32xf32>
    %208 = arith.mulf %206, %207 : vector<8x32xf32>
    %209 = vector.broadcast %188 : vector<1x32xf32> to vector<8x32xf32>
    %210 = arith.addf %208, %209 : vector<8x32xf32>
    %c1 = arith.constant 1 : index
    %c0_91 = arith.constant 0 : index
    %c0_92 = arith.constant 0 : index
    %211 = vector.load %arg5[%c1, %c0_91, %c0_92] : memref<2x32x96xf32, #tpu.memory_space<vmem>>, vector<1x32x96xf32>
    %212 = vector.shape_cast %211 : vector<1x32x96xf32> to vector<32x96xf32>
    %cst_93 = arith.constant dense<0.000000e+00> : vector<8x96xf32>
    %213 = tpu.matmul %210, %212, %cst_93 {dimension_numbers = #tpu.dot_dimension_numbers<[1], [0], [0], [1], [0, 0, 1, 1], [], []>} : vector<8x32xf32>, vector<32x96xf32>, vector<8x96xf32> -> vector<8x96xf32>
    %c1_94 = arith.constant 1 : index
    %c0_95 = arith.constant 0 : index
    %c0_96 = arith.constant 0 : index
    %214 = vector.load %arg6[%c1_94, %c0_95, %c0_96] : memref<2x1x96xf32, #tpu.memory_space<vmem>>, vector<1x1x96xf32>
    %215 = vector.shape_cast %214 : vector<1x1x96xf32> to vector<1x96xf32>
    %216 = vector.broadcast %215 : vector<1x96xf32> to vector<8x96xf32>
    %217 = arith.addf %213, %216 : vector<8x96xf32>
    %c1_97 = arith.constant 1 : index
    %c0_98 = arith.constant 0 : index
    %c0_99 = arith.constant 0 : index
    %218 = vector.load %arg7[%c1_97, %c0_98, %c0_99] : memref<2x32x32xf32, #tpu.memory_space<vmem>>, vector<1x32x32xf32>
    %219 = vector.shape_cast %218 : vector<1x32x32xf32> to vector<32x32xf32>
    %cst_100 = arith.constant 0.000000e+00 : f32
    %220 = vector.broadcast %cst_100 : f32 to vector<8x32xf32>
    %221 = vector.extract_strided_slice %217 {offsets = [0, 0], sizes = [8, 8], strides = [1, 1]} : vector<8x96xf32> to vector<8x8xf32>
    %cst_101 = arith.constant 0.353553385 : f32
    %222 = vector.broadcast %cst_101 : f32 to vector<8x8xf32>
    %223 = arith.mulf %221, %222 : vector<8x8xf32>
    %224 = vector.extract_strided_slice %217 {offsets = [0, 32], sizes = [8, 8], strides = [1, 1]} : vector<8x96xf32> to vector<8x8xf32>
    %225 = vector.extract_strided_slice %217 {offsets = [0, 64], sizes = [8, 8], strides = [1, 1]} : vector<8x96xf32> to vector<8x8xf32>
    %cst_102 = arith.constant dense<0.000000e+00> : vector<8x8xf32>
    %226 = tpu.matmul %223, %224, %cst_102 {dimension_numbers = #tpu.dot_dimension_numbers<[1], [1], [0], [0], [0, 0, 1, 0], [], []>} : vector<8x8xf32>, vector<8x8xf32>, vector<8x8xf32> -> vector<8x8xf32>
    %227 = vector.broadcast %27 : vector<1x8xf32> to vector<8x8xf32>
    %228 = arith.addf %226, %227 : vector<8x8xf32>
    %cst_103 = arith.constant dense<0xFF800000> : vector<8xf32>
    %229 = vector.multi_reduction <maximumf>, %228, %cst_103 [1] : vector<8x8xf32> to vector<8xf32>
    %230 = vector.shape_cast %229 : vector<8xf32> to vector<8x1xf32>
    %231 = vector.broadcast %230 : vector<8x1xf32> to vector<8x8xf32>
    %232 = arith.subf %228, %231 : vector<8x8xf32>
    %233 = math.exp %232 : vector<8x8xf32>
    %cst_104 = arith.constant dense<0.000000e+00> : vector<8xf32>
    %234 = vector.multi_reduction <add>, %233, %cst_104 [1] : vector<8x8xf32> to vector<8xf32>
    %235 = vector.shape_cast %234 : vector<8xf32> to vector<8x1xf32>
    %236 = tpu.reciprocal %235 {approx = true} : vector<8x1xf32> -> vector<8x1xf32>
    %237 = vector.broadcast %236 : vector<8x1xf32> to vector<8x8xf32>
    %238 = arith.mulf %233, %237 : vector<8x8xf32>
    %cst_105 = arith.constant dense<0.000000e+00> : vector<8x8xf32>
    %239 = tpu.matmul %238, %225, %cst_105 {dimension_numbers = #tpu.dot_dimension_numbers<[1], [0], [0], [1], [0, 0, 1, 1], [], []>} : vector<8x8xf32>, vector<8x8xf32>, vector<8x8xf32> -> vector<8x8xf32>
    %240 = vector.extract_strided_slice %219 {offsets = [0, 0], sizes = [8, 32], strides = [1, 1]} : vector<32x32xf32> to vector<8x32xf32>
    %cst_106 = arith.constant dense<0.000000e+00> : vector<8x32xf32>
    %241 = tpu.matmul %239, %240, %cst_106 {dimension_numbers = #tpu.dot_dimension_numbers<[1], [0], [0], [1], [0, 0, 1, 1], [], []>} : vector<8x8xf32>, vector<8x32xf32>, vector<8x32xf32> -> vector<8x32xf32>
    %242 = arith.addf %220, %241 : vector<8x32xf32>
    %243 = vector.extract_strided_slice %217 {offsets = [0, 8], sizes = [8, 8], strides = [1, 1]} : vector<8x96xf32> to vector<8x8xf32>
    %cst_107 = arith.constant 0.353553385 : f32
    %244 = vector.broadcast %cst_107 : f32 to vector<8x8xf32>
    %245 = arith.mulf %243, %244 : vector<8x8xf32>
    %246 = vector.extract_strided_slice %217 {offsets = [0, 40], sizes = [8, 8], strides = [1, 1]} : vector<8x96xf32> to vector<8x8xf32>
    %247 = vector.extract_strided_slice %217 {offsets = [0, 72], sizes = [8, 8], strides = [1, 1]} : vector<8x96xf32> to vector<8x8xf32>
    %cst_108 = arith.constant dense<0.000000e+00> : vector<8x8xf32>
    %248 = tpu.matmul %245, %246, %cst_108 {dimension_numbers = #tpu.dot_dimension_numbers<[1], [1], [0], [0], [0, 0, 1, 0], [], []>} : vector<8x8xf32>, vector<8x8xf32>, vector<8x8xf32> -> vector<8x8xf32>
    %249 = vector.broadcast %27 : vector<1x8xf32> to vector<8x8xf32>
    %250 = arith.addf %248, %249 : vector<8x8xf32>
    %cst_109 = arith.constant dense<0xFF800000> : vector<8xf32>
    %251 = vector.multi_reduction <maximumf>, %250, %cst_109 [1] : vector<8x8xf32> to vector<8xf32>
    %252 = vector.shape_cast %251 : vector<8xf32> to vector<8x1xf32>
    %253 = vector.broadcast %252 : vector<8x1xf32> to vector<8x8xf32>
    %254 = arith.subf %250, %253 : vector<8x8xf32>
    %255 = math.exp %254 : vector<8x8xf32>
    %cst_110 = arith.constant dense<0.000000e+00> : vector<8xf32>
    %256 = vector.multi_reduction <add>, %255, %cst_110 [1] : vector<8x8xf32> to vector<8xf32>
    %257 = vector.shape_cast %256 : vector<8xf32> to vector<8x1xf32>
    %258 = tpu.reciprocal %257 {approx = true} : vector<8x1xf32> -> vector<8x1xf32>
    %259 = vector.broadcast %258 : vector<8x1xf32> to vector<8x8xf32>
    %260 = arith.mulf %255, %259 : vector<8x8xf32>
    %cst_111 = arith.constant dense<0.000000e+00> : vector<8x8xf32>
    %261 = tpu.matmul %260, %247, %cst_111 {dimension_numbers = #tpu.dot_dimension_numbers<[1], [0], [0], [1], [0, 0, 1, 1], [], []>} : vector<8x8xf32>, vector<8x8xf32>, vector<8x8xf32> -> vector<8x8xf32>
    %262 = vector.extract_strided_slice %219 {offsets = [8, 0], sizes = [8, 32], strides = [1, 1]} : vector<32x32xf32> to vector<8x32xf32>
    %cst_112 = arith.constant dense<0.000000e+00> : vector<8x32xf32>
    %263 = tpu.matmul %261, %262, %cst_112 {dimension_numbers = #tpu.dot_dimension_numbers<[1], [0], [0], [1], [0, 0, 1, 1], [], []>} : vector<8x8xf32>, vector<8x32xf32>, vector<8x32xf32> -> vector<8x32xf32>
    %264 = arith.addf %242, %263 : vector<8x32xf32>
    %265 = vector.extract_strided_slice %217 {offsets = [0, 16], sizes = [8, 8], strides = [1, 1]} : vector<8x96xf32> to vector<8x8xf32>
    %cst_113 = arith.constant 0.353553385 : f32
    %266 = vector.broadcast %cst_113 : f32 to vector<8x8xf32>
    %267 = arith.mulf %265, %266 : vector<8x8xf32>
    %268 = vector.extract_strided_slice %217 {offsets = [0, 48], sizes = [8, 8], strides = [1, 1]} : vector<8x96xf32> to vector<8x8xf32>
    %269 = vector.extract_strided_slice %217 {offsets = [0, 80], sizes = [8, 8], strides = [1, 1]} : vector<8x96xf32> to vector<8x8xf32>
    %cst_114 = arith.constant dense<0.000000e+00> : vector<8x8xf32>
    %270 = tpu.matmul %267, %268, %cst_114 {dimension_numbers = #tpu.dot_dimension_numbers<[1], [1], [0], [0], [0, 0, 1, 0], [], []>} : vector<8x8xf32>, vector<8x8xf32>, vector<8x8xf32> -> vector<8x8xf32>
    %271 = vector.broadcast %27 : vector<1x8xf32> to vector<8x8xf32>
    %272 = arith.addf %270, %271 : vector<8x8xf32>
    %cst_115 = arith.constant dense<0xFF800000> : vector<8xf32>
    %273 = vector.multi_reduction <maximumf>, %272, %cst_115 [1] : vector<8x8xf32> to vector<8xf32>
    %274 = vector.shape_cast %273 : vector<8xf32> to vector<8x1xf32>
    %275 = vector.broadcast %274 : vector<8x1xf32> to vector<8x8xf32>
    %276 = arith.subf %272, %275 : vector<8x8xf32>
    %277 = math.exp %276 : vector<8x8xf32>
    %cst_116 = arith.constant dense<0.000000e+00> : vector<8xf32>
    %278 = vector.multi_reduction <add>, %277, %cst_116 [1] : vector<8x8xf32> to vector<8xf32>
    %279 = vector.shape_cast %278 : vector<8xf32> to vector<8x1xf32>
    %280 = tpu.reciprocal %279 {approx = true} : vector<8x1xf32> -> vector<8x1xf32>
    %281 = vector.broadcast %280 : vector<8x1xf32> to vector<8x8xf32>
    %282 = arith.mulf %277, %281 : vector<8x8xf32>
    %cst_117 = arith.constant dense<0.000000e+00> : vector<8x8xf32>
    %283 = tpu.matmul %282, %269, %cst_117 {dimension_numbers = #tpu.dot_dimension_numbers<[1], [0], [0], [1], [0, 0, 1, 1], [], []>} : vector<8x8xf32>, vector<8x8xf32>, vector<8x8xf32> -> vector<8x8xf32>
    %284 = vector.extract_strided_slice %219 {offsets = [16, 0], sizes = [8, 32], strides = [1, 1]} : vector<32x32xf32> to vector<8x32xf32>
    %cst_118 = arith.constant dense<0.000000e+00> : vector<8x32xf32>
    %285 = tpu.matmul %283, %284, %cst_118 {dimension_numbers = #tpu.dot_dimension_numbers<[1], [0], [0], [1], [0, 0, 1, 1], [], []>} : vector<8x8xf32>, vector<8x32xf32>, vector<8x32xf32> -> vector<8x32xf32>
    %286 = arith.addf %264, %285 : vector<8x32xf32>
    %287 = vector.extract_strided_slice %217 {offsets = [0, 24], sizes = [8, 8], strides = [1, 1]} : vector<8x96xf32> to vector<8x8xf32>
    %cst_119 = arith.constant 0.353553385 : f32
    %288 = vector.broadcast %cst_119 : f32 to vector<8x8xf32>
    %289 = arith.mulf %287, %288 : vector<8x8xf32>
    %290 = vector.extract_strided_slice %217 {offsets = [0, 56], sizes = [8, 8], strides = [1, 1]} : vector<8x96xf32> to vector<8x8xf32>
    %291 = vector.extract_strided_slice %217 {offsets = [0, 88], sizes = [8, 8], strides = [1, 1]} : vector<8x96xf32> to vector<8x8xf32>
    %cst_120 = arith.constant dense<0.000000e+00> : vector<8x8xf32>
    %292 = tpu.matmul %289, %290, %cst_120 {dimension_numbers = #tpu.dot_dimension_numbers<[1], [1], [0], [0], [0, 0, 1, 0], [], []>} : vector<8x8xf32>, vector<8x8xf32>, vector<8x8xf32> -> vector<8x8xf32>
    %293 = vector.broadcast %27 : vector<1x8xf32> to vector<8x8xf32>
    %294 = arith.addf %292, %293 : vector<8x8xf32>
    %cst_121 = arith.constant dense<0xFF800000> : vector<8xf32>
    %295 = vector.multi_reduction <maximumf>, %294, %cst_121 [1] : vector<8x8xf32> to vector<8xf32>
    %296 = vector.shape_cast %295 : vector<8xf32> to vector<8x1xf32>
    %297 = vector.broadcast %296 : vector<8x1xf32> to vector<8x8xf32>
    %298 = arith.subf %294, %297 : vector<8x8xf32>
    %299 = math.exp %298 : vector<8x8xf32>
    %cst_122 = arith.constant dense<0.000000e+00> : vector<8xf32>
    %300 = vector.multi_reduction <add>, %299, %cst_122 [1] : vector<8x8xf32> to vector<8xf32>
    %301 = vector.shape_cast %300 : vector<8xf32> to vector<8x1xf32>
    %302 = tpu.reciprocal %301 {approx = true} : vector<8x1xf32> -> vector<8x1xf32>
    %303 = vector.broadcast %302 : vector<8x1xf32> to vector<8x8xf32>
    %304 = arith.mulf %299, %303 : vector<8x8xf32>
    %cst_123 = arith.constant dense<0.000000e+00> : vector<8x8xf32>
    %305 = tpu.matmul %304, %291, %cst_123 {dimension_numbers = #tpu.dot_dimension_numbers<[1], [0], [0], [1], [0, 0, 1, 1], [], []>} : vector<8x8xf32>, vector<8x8xf32>, vector<8x8xf32> -> vector<8x8xf32>
    %306 = vector.extract_strided_slice %219 {offsets = [24, 0], sizes = [8, 32], strides = [1, 1]} : vector<32x32xf32> to vector<8x32xf32>
    %cst_124 = arith.constant dense<0.000000e+00> : vector<8x32xf32>
    %307 = tpu.matmul %305, %306, %cst_124 {dimension_numbers = #tpu.dot_dimension_numbers<[1], [0], [0], [1], [0, 0, 1, 1], [], []>} : vector<8x8xf32>, vector<8x32xf32>, vector<8x32xf32> -> vector<8x32xf32>
    %308 = arith.addf %286, %307 : vector<8x32xf32>
    %c1_125 = arith.constant 1 : index
    %c0_126 = arith.constant 0 : index
    %c0_127 = arith.constant 0 : index
    %309 = vector.load %arg8[%c1_125, %c0_126, %c0_127] : memref<2x1x32xf32, #tpu.memory_space<vmem>>, vector<1x1x32xf32>
    %310 = vector.shape_cast %309 : vector<1x1x32xf32> to vector<1x32xf32>
    %311 = vector.broadcast %310 : vector<1x32xf32> to vector<8x32xf32>
    %312 = arith.addf %308, %311 : vector<8x32xf32>
    %313 = arith.addf %312, %210 : vector<8x32xf32>
    %c1_128 = arith.constant 1 : index
    %c0_129 = arith.constant 0 : index
    %c0_130 = arith.constant 0 : index
    %314 = vector.load %arg9[%c1_128, %c0_129, %c0_130] : memref<2x1x32xf32, #tpu.memory_space<vmem>>, vector<1x1x32xf32>
    %315 = vector.shape_cast %314 : vector<1x1x32xf32> to vector<1x32xf32>
    %c1_131 = arith.constant 1 : index
    %c0_132 = arith.constant 0 : index
    %c0_133 = arith.constant 0 : index
    %316 = vector.load %arg10[%c1_131, %c0_132, %c0_133] : memref<2x1x32xf32, #tpu.memory_space<vmem>>, vector<1x1x32xf32>
    %317 = vector.shape_cast %316 : vector<1x1x32xf32> to vector<1x32xf32>
    %cst_134 = arith.constant dense<0.000000e+00> : vector<8xf32>
    %318 = vector.multi_reduction <add>, %313, %cst_134 [1] : vector<8x32xf32> to vector<8xf32>
    %319 = vector.shape_cast %318 : vector<8xf32> to vector<8x1xf32>
    %cst_135 = arith.constant 3.200000e+01 : f32
    %320 = vector.broadcast %cst_135 : f32 to vector<8x1xf32>
    %321 = arith.divf %319, %320 : vector<8x1xf32>
    %322 = vector.broadcast %321 : vector<8x1xf32> to vector<8x32xf32>
    %323 = arith.subf %313, %322 : vector<8x32xf32>
    %324 = arith.mulf %323, %323 : vector<8x32xf32>
    %cst_136 = arith.constant dense<0.000000e+00> : vector<8xf32>
    %325 = vector.multi_reduction <add>, %324, %cst_136 [1] : vector<8x32xf32> to vector<8xf32>
    %326 = vector.shape_cast %325 : vector<8xf32> to vector<8x1xf32>
    %cst_137 = arith.constant 3.200000e+01 : f32
    %327 = vector.broadcast %cst_137 : f32 to vector<8x1xf32>
    %328 = arith.divf %326, %327 : vector<8x1xf32>
    %329 = vector.broadcast %321 : vector<8x1xf32> to vector<8x32xf32>
    %330 = arith.subf %313, %329 : vector<8x32xf32>
    %cst_138 = arith.constant 9.99999996E-13 : f32
    %331 = vector.broadcast %cst_138 : f32 to vector<8x1xf32>
    %332 = arith.addf %328, %331 : vector<8x1xf32>
    %333 = math.rsqrt %332 : vector<8x1xf32>
    %334 = vector.broadcast %333 : vector<8x1xf32> to vector<8x32xf32>
    %335 = arith.mulf %330, %334 : vector<8x32xf32>
    %336 = vector.broadcast %315 : vector<1x32xf32> to vector<8x32xf32>
    %337 = arith.mulf %335, %336 : vector<8x32xf32>
    %338 = vector.broadcast %317 : vector<1x32xf32> to vector<8x32xf32>
    %339 = arith.addf %337, %338 : vector<8x32xf32>
    %c1_139 = arith.constant 1 : index
    %c0_140 = arith.constant 0 : index
    %c0_141 = arith.constant 0 : index
    %340 = vector.load %arg11[%c1_139, %c0_140, %c0_141] : memref<2x32x64xf32, #tpu.memory_space<vmem>>, vector<1x32x64xf32>
    %341 = vector.shape_cast %340 : vector<1x32x64xf32> to vector<32x64xf32>
    %cst_142 = arith.constant dense<0.000000e+00> : vector<8x64xf32>
    %342 = tpu.matmul %339, %341, %cst_142 {dimension_numbers = #tpu.dot_dimension_numbers<[1], [0], [0], [1], [0, 0, 1, 1], [], []>} : vector<8x32xf32>, vector<32x64xf32>, vector<8x64xf32> -> vector<8x64xf32>
    %c1_143 = arith.constant 1 : index
    %c0_144 = arith.constant 0 : index
    %c0_145 = arith.constant 0 : index
    %343 = vector.load %arg12[%c1_143, %c0_144, %c0_145] : memref<2x1x64xf32, #tpu.memory_space<vmem>>, vector<1x1x64xf32>
    %344 = vector.shape_cast %343 : vector<1x1x64xf32> to vector<1x64xf32>
    %345 = vector.broadcast %344 : vector<1x64xf32> to vector<8x64xf32>
    %346 = arith.addf %342, %345 : vector<8x64xf32>
    %cst_146 = arith.constant 5.000000e-01 : f32
    %347 = vector.broadcast %cst_146 : f32 to vector<8x64xf32>
    %348 = arith.mulf %347, %346 : vector<8x64xf32>
    %cst_147 = arith.constant 4.471500e-02 : f32
    %349 = vector.broadcast %cst_147 : f32 to vector<8x64xf32>
    %350 = arith.mulf %349, %346 : vector<8x64xf32>
    %351 = arith.mulf %350, %346 : vector<8x64xf32>
    %352 = arith.mulf %351, %346 : vector<8x64xf32>
    %353 = arith.addf %346, %352 : vector<8x64xf32>
    %cst_148 = arith.constant 0.797884583 : f32
    %354 = vector.broadcast %cst_148 : f32 to vector<8x64xf32>
    %355 = arith.mulf %354, %353 : vector<8x64xf32>
    %356 = math.tanh %355 : vector<8x64xf32>
    %cst_149 = arith.constant 1.000000e+00 : f32
    %357 = vector.broadcast %cst_149 : f32 to vector<8x64xf32>
    %358 = arith.addf %357, %356 : vector<8x64xf32>
    %359 = arith.mulf %348, %358 : vector<8x64xf32>
    %c1_150 = arith.constant 1 : index
    %c0_151 = arith.constant 0 : index
    %c0_152 = arith.constant 0 : index
    %360 = vector.load %arg13[%c1_150, %c0_151, %c0_152] : memref<2x64x32xf32, #tpu.memory_space<vmem>>, vector<1x64x32xf32>
    %361 = vector.shape_cast %360 : vector<1x64x32xf32> to vector<64x32xf32>
    %cst_153 = arith.constant dense<0.000000e+00> : vector<8x32xf32>
    %362 = tpu.matmul %359, %361, %cst_153 {dimension_numbers = #tpu.dot_dimension_numbers<[1], [0], [0], [1], [0, 0, 1, 1], [], []>} : vector<8x64xf32>, vector<64x32xf32>, vector<8x32xf32> -> vector<8x32xf32>
    %c1_154 = arith.constant 1 : index
    %c0_155 = arith.constant 0 : index
    %c0_156 = arith.constant 0 : index
    %363 = vector.load %arg14[%c1_154, %c0_155, %c0_156] : memref<2x1x32xf32, #tpu.memory_space<vmem>>, vector<1x1x32xf32>
    %364 = vector.shape_cast %363 : vector<1x1x32xf32> to vector<1x32xf32>
    %365 = vector.broadcast %364 : vector<1x32xf32> to vector<8x32xf32>
    %366 = arith.addf %362, %365 : vector<8x32xf32>
    %367 = arith.addf %366, %339 : vector<8x32xf32>
    %c1_157 = arith.constant 1 : index
    %c0_158 = arith.constant 0 : index
    %c0_159 = arith.constant 0 : index
    %368 = vector.load %arg15[%c1_157, %c0_158, %c0_159] : memref<2x1x32xf32, #tpu.memory_space<vmem>>, vector<1x1x32xf32>
    %369 = vector.shape_cast %368 : vector<1x1x32xf32> to vector<1x32xf32>
    %c1_160 = arith.constant 1 : index
    %c0_161 = arith.constant 0 : index
    %c0_162 = arith.constant 0 : index
    %370 = vector.load %arg16[%c1_160, %c0_161, %c0_162] : memref<2x1x32xf32, #tpu.memory_space<vmem>>, vector<1x1x32xf32>
    %371 = vector.shape_cast %370 : vector<1x1x32xf32> to vector<1x32xf32>
    %cst_163 = arith.constant dense<0.000000e+00> : vector<8xf32>
    %372 = vector.multi_reduction <add>, %367, %cst_163 [1] : vector<8x32xf32> to vector<8xf32>
    %373 = vector.shape_cast %372 : vector<8xf32> to vector<8x1xf32>
    %cst_164 = arith.constant 3.200000e+01 : f32
    %374 = vector.broadcast %cst_164 : f32 to vector<8x1xf32>
    %375 = arith.divf %373, %374 : vector<8x1xf32>
    %376 = vector.broadcast %375 : vector<8x1xf32> to vector<8x32xf32>
    %377 = arith.subf %367, %376 : vector<8x32xf32>
    %378 = arith.mulf %377, %377 : vector<8x32xf32>
    %cst_165 = arith.constant dense<0.000000e+00> : vector<8xf32>
    %379 = vector.multi_reduction <add>, %378, %cst_165 [1] : vector<8x32xf32> to vector<8xf32>
    %380 = vector.shape_cast %379 : vector<8xf32> to vector<8x1xf32>
    %cst_166 = arith.constant 3.200000e+01 : f32
    %381 = vector.broadcast %cst_166 : f32 to vector<8x1xf32>
    %382 = arith.divf %380, %381 : vector<8x1xf32>
    %383 = vector.broadcast %375 : vector<8x1xf32> to vector<8x32xf32>
    %384 = arith.subf %367, %383 : vector<8x32xf32>
    %cst_167 = arith.constant 9.99999996E-13 : f32
    %385 = vector.broadcast %cst_167 : f32 to vector<8x1xf32>
    %386 = arith.addf %382, %385 : vector<8x1xf32>
    %387 = math.rsqrt %386 : vector<8x1xf32>
    %388 = vector.broadcast %387 : vector<8x1xf32> to vector<8x32xf32>
    %389 = arith.mulf %384, %388 : vector<8x32xf32>
    %390 = vector.broadcast %369 : vector<1x32xf32> to vector<8x32xf32>
    %391 = arith.mulf %389, %390 : vector<8x32xf32>
    %392 = vector.broadcast %371 : vector<1x32xf32> to vector<8x32xf32>
    %393 = arith.addf %391, %392 : vector<8x32xf32>
    %394 = vector.extract_strided_slice %393 {offsets = [0, 0], sizes = [1, 32], strides = [1, 1]} : vector<8x32xf32> to vector<1x32xf32>
    %c0_168 = arith.constant 0 : index
    %c0_169 = arith.constant 0 : index
    %395 = vector.load %arg17[%c0_168, %c0_169] : memref<32x32xf32, #tpu.memory_space<vmem>>, vector<32x32xf32>
    %cst_170 = arith.constant dense<0.000000e+00> : vector<1x32xf32>
    %396 = tpu.matmul %394, %395, %cst_170 {dimension_numbers = #tpu.dot_dimension_numbers<[1], [0], [0], [1], [0, 0, 1, 1], [], []>} : vector<1x32xf32>, vector<32x32xf32>, vector<1x32xf32> -> vector<1x32xf32>
    %c0_171 = arith.constant 0 : index
    %c0_172 = arith.constant 0 : index
    %397 = vector.load %arg18[%c0_171, %c0_172] : memref<1x32xf32, #tpu.memory_space<vmem>>, vector<1x32xf32>
    %398 = arith.addf %396, %397 : vector<1x32xf32>
    %399 = math.tanh %398 : vector<1x32xf32>
    %c0_173 = arith.constant 0 : index
    %c0_174 = arith.constant 0 : index
    %400 = vector.load %arg19[%c0_173, %c0_174] : memref<32x3xf32, #tpu.memory_space<vmem>>, vector<32x3xf32>
    %cst_175 = arith.constant dense<0.000000e+00> : vector<1x3xf32>
    %401 = tpu.matmul %399, %400, %cst_175 {dimension_numbers = #tpu.dot_dimension_numbers<[1], [0], [0], [1], [0, 0, 1, 1], [], []>} : vector<1x32xf32>, vector<32x3xf32>, vector<1x3xf32> -> vector<1x3xf32>
    %c0_176 = arith.constant 0 : index
    %c0_177 = arith.constant 0 : index
    %402 = vector.load %arg20[%c0_176, %c0_177] : memref<1x3xf32, #tpu.memory_space<vmem>>, vector<1x3xf32>
    %403 = arith.addf %401, %402 : vector<1x3xf32>
    %404 = vector.shape_cast %403 : vector<1x3xf32> to vector<1x1x3xf32>
    %c0_178 = arith.constant 0 : index
    %c0_179 = arith.constant 0 : index
    %c0_180 = arith.constant 0 : index
    %405 = vector.load %arg21[%c0_178, %c0_179, %c0_180] : memref<1x1x3xf32, #tpu.memory_space<vmem>>, vector<1x1x3xf32>
    tpu.vector_store %arg21[%c0_178, %c0_179, %c0_180], %404 {strides = array<i32>} : memref<1x1x3xf32, #tpu.memory_space<vmem>>, vector<1x1x3xf32>,
    return
  }
  func.func @transform_0(%arg0: i32) -> (i32, i32, i32) {
    %c0_i32 = arith.constant 0 : i32
    %c0_i32_0 = arith.constant 0 : i32
    %c0_i32_1 = arith.constant 0 : i32
    return %arg0, %c0_i32, %c0_i32_0 : i32, i32, i32
  }
  func.func @transform_1(%arg0: i32) -> (i32, i32, i32) {
    %c0_i32 = arith.constant 0 : i32
    %c0_i32_0 = arith.constant 0 : i32
    %c0_i32_1 = arith.constant 0 : i32
    return %arg0, %c0_i32, %c0_i32_0 : i32, i32, i32
  }
  func.func @transform_2(%arg0: i32) -> (i32, i32) {
    %c0_i32 = arith.constant 0 : i32
    %c0_i32_0 = arith.constant 0 : i32
    %c0_i32_1 = arith.constant 0 : i32
    return %c0_i32, %c0_i32_0 : i32, i32
  }
  func.func @transform_3(%arg0: i32) -> (i32, i32) {
    %c0_i32 = arith.constant 0 : i32
    %c0_i32_0 = arith.constant 0 : i32
    %c0_i32_1 = arith.constant 0 : i32
    return %c0_i32, %c0_i32_0 : i32, i32
  }
  func.func @transform_4(%arg0: i32) -> (i32, i32, i32) {
    %c0_i32 = arith.constant 0 : i32
    %c0_i32_0 = arith.constant 0 : i32
    %c0_i32_1 = arith.constant 0 : i32
    %c0_i32_2 = arith.constant 0 : i32
    return %c0_i32, %c0_i32_0, %c0_i32_1 : i32, i32, i32
  }
  func.func @transform_5(%arg0: i32) -> (i32, i32, i32) {
    %c0_i32 = arith.constant 0 : i32
    %c0_i32_0 = arith.constant 0 : i32
    %c0_i32_1 = arith.constant 0 : i32
    %c0_i32_2 = arith.constant 0 : i32
    return %c0_i32, %c0_i32_0, %c0_i32_1 : i32, i32, i32
  }
  func.func @transform_6(%arg0: i32) -> (i32, i32, i32) {
    %c0_i32 = arith.constant 0 : i32
    %c0_i32_0 = arith.constant 0 : i32
    %c0_i32_1 = arith.constant 0 : i32
    %c0_i32_2 = arith.constant 0 : i32
    return %c0_i32, %c0_i32_0, %c0_i32_1 : i32, i32, i32
  }
  func.func @transform_7(%arg0: i32) -> (i32, i32, i32) {
    %c0_i32 = arith.constant 0 : i32
    %c0_i32_0 = arith.constant 0 : i32
    %c0_i32_1 = arith.constant 0 : i32
    %c0_i32_2 = arith.constant 0 : i32
    return %c0_i32, %c0_i32_0, %c0_i32_1 : i32, i32, i32
  }
  func.func @transform_8(%arg0: i32) -> (i32, i32, i32) {
    %c0_i32 = arith.constant 0 : i32
    %c0_i32_0 = arith.constant 0 : i32
    %c0_i32_1 = arith.constant 0 : i32
    %c0_i32_2 = arith.constant 0 : i32
    return %c0_i32, %c0_i32_0, %c0_i32_1 : i32, i32, i32
  }
  func.func @transform_9(%arg0: i32) -> (i32, i32, i32) {
    %c0_i32 = arith.constant 0 : i32
    %c0_i32_0 = arith.constant 0 : i32
    %c0_i32_1 = arith.constant 0 : i32
    %c0_i32_2 = arith.constant 0 : i32
    return %c0_i32, %c0_i32_0, %c0_i32_1 : i32, i32, i32
  }
  func.func @transform_10(%arg0: i32) -> (i32, i32, i32) {
    %c0_i32 = arith.constant 0 : i32
    %c0_i32_0 = arith.constant 0 : i32
    %c0_i32_1 = arith.constant 0 : i32
    %c0_i32_2 = arith.constant 0 : i32
    return %c0_i32, %c0_i32_0, %c0_i32_1 : i32, i32, i32
  }
  func.func @transform_11(%arg0: i32) -> (i32, i32, i32) {
    %c0_i32 = arith.constant 0 : i32
    %c0_i32_0 = arith.constant 0 : i32
    %c0_i32_1 = arith.constant 0 : i32
    %c0_i32_2 = arith.constant 0 : i32
    return %c0_i32, %c0_i32_0, %c0_i32_1 : i32, i32, i32
  }
  func.func @transform_12(%arg0: i32) -> (i32, i32, i32) {
    %c0_i32 = arith.constant 0 : i32
    %c0_i32_0 = arith.constant 0 : i32
    %c0_i32_1 = arith.constant 0 : i32
    %c0_i32_2 = arith.constant 0 : i32
    return %c0_i32, %c0_i32_0, %c0_i32_1 : i32, i32, i32
  }
  func.func @transform_13(%arg0: i32) -> (i32, i32, i32) {
    %c0_i32 = arith.constant 0 : i32
    %c0_i32_0 = arith.constant 0 : i32
    %c0_i32_1 = arith.constant 0 : i32
    %c0_i32_2 = arith.constant 0 : i32
    return %c0_i32, %c0_i32_0, %c0_i32_1 : i32, i32, i32
  }
  func.func @transform_14(%arg0: i32) -> (i32, i32, i32) {
    %c0_i32 = arith.constant 0 : i32
    %c0_i32_0 = arith.constant 0 : i32
    %c0_i32_1 = arith.constant 0 : i32
    %c0_i32_2 = arith.constant 0 : i32
    return %c0_i32, %c0_i32_0, %c0_i32_1 : i32, i32, i32
  }
  func.func @transform_15(%arg0: i32) -> (i32, i32, i32) {
    %c0_i32 = arith.constant 0 : i32
    %c0_i32_0 = arith.constant 0 : i32
    %c0_i32_1 = arith.constant 0 : i32
    %c0_i32_2 = arith.constant 0 : i32
    return %c0_i32, %c0_i32_0, %c0_i32_1 : i32, i32, i32
  }
  func.func @transform_16(%arg0: i32) -> (i32, i32) {
    %c0_i32 = arith.constant 0 : i32
    %c0_i32_0 = arith.constant 0 : i32
    %c0_i32_1 = arith.constant 0 : i32
    return %c0_i32, %c0_i32_0 : i32, i32
  }
  func.func @transform_17(%arg0: i32) -> (i32, i32) {
    %c0_i32 = arith.constant 0 : i32
    %c0_i32_0 = arith.constant 0 : i32
    %c0_i32_1 = arith.constant 0 : i32
    return %c0_i32, %c0_i32_0 : i32, i32
  }
  func.func @transform_18(%arg0: i32) -> (i32, i32) {
    %c0_i32 = arith.constant 0 : i32
    %c0_i32_0 = arith.constant 0 : i32
    %c0_i32_1 = arith.constant 0 : i32
    return %c0_i32, %c0_i32_0 : i32, i32
  }
  func.func @transform_19(%arg0: i32) -> (i32, i32) {
    %c0_i32 = arith.constant 0 : i32
    %c0_i32_0 = arith.constant 0 : i32
    %c0_i32_1 = arith.constant 0 : i32
    return %c0_i32, %c0_i32_0 : i32, i32
  }
  func.func @transform_20(%arg0: i32) -> (i32, i32, i32) {
    %c0_i32 = arith.constant 0 : i32
    %c0_i32_0 = arith.constant 0 : i32
    %c0_i32_1 = arith.constant 0 : i32
    return %arg0, %c0_i32, %c0_i32_0 : i32, i32, i32
  }
}

</mosaic_0001>

<llo_original>
// kernel: bert_classifier_forward.1
$region0: #{bert_classifier_forward.1}
  #allocation0 [shape = 'u32[]', space=smem, size = 0x4, offset = 0x4, fixed_abs, tag = 'smem constant byte address 0x4 - core index']
  #allocation1 [shape = 'u32[144,128]{1,0:T(1,128)}', space=vmem, size = 0x12000, scoped, tag = 'internal scratch']
  %s0 = inlined_call_operand.vmem [shape: f32[2,8,32], index: 0, kind: input, shape index: {}]
  %s1 = inlined_call_operand.vmem [shape: f32[2,1,8], index: 1, kind: input, shape index: {}]
  %s2 = inlined_call_operand.vmem [shape: f32[1,32], index: 2, kind: input, shape index: {}]
  %s3 = inlined_call_operand.vmem [shape: f32[1,32], index: 3, kind: input, shape index: {}]
  %s4 = inlined_call_operand.vmem [shape: f32[2,32,96], index: 4, kind: input, shape index: {}]
  %s5 = inlined_call_operand.vmem [shape: f32[2,1,96], index: 5, kind: input, shape index: {}]
  %s6 = inlined_call_operand.vmem [shape: f32[2,32,32], index: 6, kind: input, shape index: {}]
  %s7 = inlined_call_operand.vmem [shape: f32[2,1,32], index: 7, kind: input, shape index: {}]
  %s8 = inlined_call_operand.vmem [shape: f32[2,1,32], index: 8, kind: input, shape index: {}]
  %s9 = inlined_call_operand.vmem [shape: f32[2,1,32], index: 9, kind: input, shape index: {}]
  %s10 = inlined_call_operand.vmem [shape: f32[2,32,64], index: 10, kind: input, shape index: {}]
  %s11 = inlined_call_operand.vmem [shape: f32[2,1,64], index: 11, kind: input, shape index: {}]
  %s12 = inlined_call_operand.vmem [shape: f32[2,64,32], index: 12, kind: input, shape index: {}]
  %s13 = inlined_call_operand.vmem [shape: f32[2,1,32], index: 13, kind: input, shape index: {}]
  %s14 = inlined_call_operand.vmem [shape: f32[2,1,32], index: 14, kind: input, shape index: {}]
  %s15 = inlined_call_operand.vmem [shape: f32[2,1,32], index: 15, kind: input, shape index: {}]
  %s16 = inlined_call_operand.vmem [shape: f32[32,32], index: 16, kind: input, shape index: {}]
  %s17 = inlined_call_operand.vmem [shape: f32[1,32], index: 17, kind: input, shape index: {}]
  %s18 = inlined_call_operand.vmem [shape: f32[32,3], index: 18, kind: input, shape index: {}]
  %s19 = inlined_call_operand.vmem [shape: f32[1,3], index: 19, kind: input, shape index: {}]
  %s20 = inlined_call_operand.hbm [shape: f32[2,1,3], index: 20, kind: output, shape index: {}]
  %s21 = sld [smem:[#allocation0]]
  $region113: #{bert_classifier_forward.1} parent=0
    _
  %s23 = ssub.s32 1, %s21
  %s24 = scalar_select 0, %s23, %s21
  $region1: #{bert_classifier_forward.1} parent=0
    #allocation2 [shape = 'u8[1024]{0}', space=vmem, size = 0x400, scoped, tag = 'output window, operand 0']
    #allocation3 [shape = 's32[2]{0}', space=sflag, size = 0x8, scoped, tag = 'scoped memory for bert_classifier_forward.1']
    %25 = vsyncpa [#allocation3], 0
    %s26 = scalar_lea.sflag [#allocation3], 1
    %27 = vsyncpa %s26, 0
    loop: start=0, step=1, limit=4
    $region2: #{bert_classifier_forward.1} parent=1 // loop_pre_header
      _
    $region3: #{bert_classifier_forward.1} parent=1 // loop_header
      %s29 = sphi 0, %s33
      %p30 = scmp.ge.s32.totalorder %s29, 4
      %s39 = sphi 0, %s41
      %s42 = sphi 0, %s39
      %s43 = sphi 0, %s42
      %s59 = sphi 0, %s43
      %s65 = sphi 0, %s67
      %s68 = sphi 0, %s65
      %s69 = sphi 0, %s68
      %s85 = sphi 0, %s69
      %s89 = sphi 0, %s89
      %s91 = sphi 0, %s89
      %s92 = sphi 0, %s91
      %s106 = sphi 0, %s92
      %s110 = sphi 0, %s110
      %s112 = sphi 0, %s110
      %s113 = sphi 0, %s112
      %s127 = sphi 0, %s113
      %s131 = sphi 0, %s131
      %s133 = sphi 0, %s131
      %s134 = sphi 0, %s133
      %s148 = sphi 0, %s134
      %s152 = sphi 0, %s152
      %s154 = sphi 0, %s152
      %s155 = sphi 0, %s154
      %s169 = sphi 0, %s155
      %s173 = sphi 0, %s173
      %s175 = sphi 0, %s173
      %s176 = sphi 0, %s175
      %s190 = sphi 0, %s176
      %s194 = sphi 0, %s194
      %s196 = sphi 0, %s194
      %s197 = sphi 0, %s196
      %s211 = sphi 0, %s197
      %s215 = sphi 0, %s215
      %s217 = sphi 0, %s215
      %s218 = sphi 0, %s217
      %s232 = sphi 0, %s218
      %s236 = sphi 0, %s236
      %s238 = sphi 0, %s236
      %s239 = sphi 0, %s238
      %s253 = sphi 0, %s239
      %s257 = sphi 0, %s257
      %s259 = sphi 0, %s257
      %s260 = sphi 0, %s259
      %s274 = sphi 0, %s260
      %s278 = sphi 0, %s278
      %s280 = sphi 0, %s278
      %s281 = sphi 0, %s280
      %s295 = sphi 0, %s281
      %s299 = sphi 0, %s299
      %s301 = sphi 0, %s299
      %s302 = sphi 0, %s301
      %s316 = sphi 0, %s302
      %s320 = sphi 0, %s320
      %s322 = sphi 0, %s320
      %s323 = sphi 0, %s322
      %s337 = sphi 0, %s323
      %s341 = sphi 0, %s341
      %s343 = sphi 0, %s341
      %s344 = sphi 0, %s343
      %s358 = sphi 0, %s344
      %s362 = sphi 0, %s362
      %s364 = sphi 0, %s362
      %s365 = sphi 0, %s364
      %s379 = sphi 0, %s365
      %s383 = sphi 0, %s383
      %s385 = sphi 0, %s383
      %s386 = sphi 0, %s385
      %s400 = sphi 0, %s386
      %s404 = sphi 0, %s404
      %s406 = sphi 0, %s404
      %s407 = sphi 0, %s406
      %s421 = sphi 0, %s407
      %s425 = sphi 0, %s425
      %s427 = sphi 0, %s425
      %s428 = sphi 0, %s427
      %s442 = sphi 0, %s428
      %s446 = sphi 0, %s446
      %s448 = sphi 0, %s446
      %s449 = sphi 0, %s448
      %s463 = sphi 0, %s449
      %s469 = sphi 0, %s471
      %s472 = sphi 0, %s469
      %s473 = sphi 0, %s472
      %s489 = sphi 0, %s473
    $region4: #{bert_classifier_forward.1} parent=1 // loop_header_branch
      %32 = sbr.rel (%p30) target = $region8
    $region5: #{bert_classifier_forward.1} parent=1 // loop_body
      %s34 = ssub.s32 %s29, 1
      %s35 = ssub.s32 %s29, 2
      %s36 = sadd.s32 %s29, 1
      %s37 = ssub.s32 %s29, %s36
      %p38 = scmp.eq.s32.totalorder %s37, 0
      %s40 = sadd.s32 %s39, 1
      %s41 = scalar_select %p38, %s39, %s40
      %p44 = pneg %p38
      %p45 = scmp.eq.s32.totalorder %s29, 1
      %p46 = por %p44, %p45
      %p47 = scmp.ne.s32.totalorder %s39, %s42
      %p48 = scmp.eq.s32.totalorder %s29, 0
      %p49 = por %p47, %p48
      %p50 = scmp.ne.s32.totalorder %s39, %s42
      %p51 = scmp.eq.s32.totalorder %s34, 1
      %p52 = por %p50, %p51
      %p53 = scmp.ne.s32.totalorder %s42, %s43
      %p54 = scmp.eq.s32.totalorder %s34, 0
      %p55 = por %p53, %p54
      %p56 = scmp.ne.s32.totalorder %s42, %s43
      %p57 = scmp.eq.s32.totalorder %s35, 1
      %p58 = por %p56, %p57
      %p60 = scmp.ne.s32.totalorder %s43, %s59
      %p61 = scmp.eq.s32.totalorder %s35, 0
      %p62 = por %p60, %p61
      %s63 = ssub.s32 %s29, %s36
      %p64 = scmp.eq.s32.totalorder %s63, 0
      %s66 = sadd.s32 %s65, 1
      %s67 = scalar_select %p64, %s65, %s66
      %p70 = pneg %p64
      %p71 = scmp.eq.s32.totalorder %s29, 1
      %p72 = por %p70, %p71
      %p73 = scmp.ne.s32.totalorder %s65, %s68
      %p74 = scmp.eq.s32.totalorder %s29, 0
      %p75 = por %p73, %p74
      %p76 = scmp.ne.s32.totalorder %s65, %s68
      %p77 = scmp.eq.s32.totalorder %s34, 1
      %p78 = por %p76, %p77
      %p79 = scmp.ne.s32.totalorder %s68, %s69
      %p80 = scmp.eq.s32.totalorder %s34, 0
      %p81 = por %p79, %p80
      %p82 = scmp.ne.s32.totalorder %s68, %s69
      %p83 = scmp.eq.s32.totalorder %s35, 1
      %p84 = por %p82, %p83
      %p86 = scmp.ne.s32.totalorder %s69, %s85
      %p87 = scmp.eq.s32.totalorder %s35, 0
      %p88 = por %p86, %p87
      %s90 = sadd.s32 %s89, 1
      %p93 = scmp.eq.s32.totalorder %s29, 1
      %p94 = scmp.ne.s32.totalorder %s89, %s91
      %p95 = scmp.eq.s32.totalorder %s29, 0
      %p96 = por %p94, %p95
      %p97 = scmp.ne.s32.totalorder %s89, %s91
      %p98 = scmp.eq.s32.totalorder %s34, 1
      %p99 = por %p97, %p98
      %p100 = scmp.ne.s32.totalorder %s91, %s92
      %p101 = scmp.eq.s32.totalorder %s34, 0
      %p102 = por %p100, %p101
      %p103 = scmp.ne.s32.totalorder %s91, %s92
      %p104 = scmp.eq.s32.totalorder %s35, 1
      %p105 = por %p103, %p104
      %p107 = scmp.ne.s32.totalorder %s92, %s106
      %p108 = scmp.eq.s32.totalorder %s35, 0
      %p109 = por %p107, %p108
      %s111 = sadd.s32 %s110, 1
      %p114 = scmp.eq.s32.totalorder %s29, 1
      %p115 = scmp.ne.s32.totalorder %s110, %s112
      %p116 = scmp.eq.s32.totalorder %s29, 0
      %p117 = por %p115, %p116
      %p118 = scmp.ne.s32.totalorder %s110, %s112
      %p119 = scmp.eq.s32.totalorder %s34, 1
      %p120 = por %p118, %p119
      %p121 = scmp.ne.s32.totalorder %s112, %s113
      %p122 = scmp.eq.s32.totalorder %s34, 0
      %p123 = por %p121, %p122
      %p124 = scmp.ne.s32.totalorder %s112, %s113
      %p125 = scmp.eq.s32.totalorder %s35, 1
      %p126 = por %p124, %p125
      %p128 = scmp.ne.s32.totalorder %s113, %s127
      %p129 = scmp.eq.s32.totalorder %s35, 0
      %p130 = por %p128, %p129
      %s132 = sadd.s32 %s131, 1
      %p135 = scmp.eq.s32.totalorder %s29, 1
      %p136 = scmp.ne.s32.totalorder %s131, %s133
      %p137 = scmp.eq.s32.totalorder %s29, 0
      %p138 = por %p136, %p137
      %p139 = scmp.ne.s32.totalorder %s131, %s133
      %p140 = scmp.eq.s32.totalorder %s34, 1
      %p141 = por %p139, %p140
      %p142 = scmp.ne.s32.totalorder %s133, %s134
      %p143 = scmp.eq.s32.totalorder %s34, 0
      %p144 = por %p142, %p143
      %p145 = scmp.ne.s32.totalorder %s133, %s134
      %p146 = scmp.eq.s32.totalorder %s35, 1
      %p147 = por %p145, %p146
      %p149 = scmp.ne.s32.totalorder %s134, %s148
      %p150 = scmp.eq.s32.totalorder %s35, 0
      %p151 = por %p149, %p150
      %s153 = sadd.s32 %s152, 1
      %p156 = scmp.eq.s32.totalorder %s29, 1
      %p157 = scmp.ne.s32.totalorder %s152, %s154
      %p158 = scmp.eq.s32.totalorder %s29, 0
      %p159 = por %p157, %p158
      %p160 = scmp.ne.s32.totalorder %s152, %s154
      %p161 = scmp.eq.s32.totalorder %s34, 1
      %p162 = por %p160, %p161
      %p163 = scmp.ne.s32.totalorder %s154, %s155
      %p164 = scmp.eq.s32.totalorder %s34, 0
      %p165 = por %p163, %p164
      %p166 = scmp.ne.s32.totalorder %s154, %s155
      %p167 = scmp.eq.s32.totalorder %s35, 1
      %p168 = por %p166, %p167
      %p170 = scmp.ne.s32.totalorder %s155, %s169
      %p171 = scmp.eq.s32.totalorder %s35, 0
      %p172 = por %p170, %p171
      %s174 = sadd.s32 %s173, 1
      %p177 = scmp.eq.s32.totalorder %s29, 1
      %p178 = scmp.ne.s32.totalorder %s173, %s175
      %p179 = scmp.eq.s32.totalorder %s29, 0
      %p180 = por %p178, %p179
      %p181 = scmp.ne.s32.totalorder %s173, %s175
      %p182 = scmp.eq.s32.totalorder %s34, 1
      %p183 = por %p181, %p182
      %p184 = scmp.ne.s32.totalorder %s175, %s176
      %p185 = scmp.eq.s32.totalorder %s34, 0
      %p186 = por %p184, %p185
      %p187 = scmp.ne.s32.totalorder %s175, %s176
      %p188 = scmp.eq.s32.totalorder %s35, 1
      %p189 = por %p187, %p188
      %p191 = scmp.ne.s32.totalorder %s176, %s190
      %p192 = scmp.eq.s32.totalorder %s35, 0
      %p193 = por %p191, %p192
      %s195 = sadd.s32 %s194, 1
      %p198 = scmp.eq.s32.totalorder %s29, 1
      %p199 = scmp.ne.s32.totalorder %s194, %s196
      %p200 = scmp.eq.s32.totalorder %s29, 0
      %p201 = por %p199, %p200
      %p202 = scmp.ne.s32.totalorder %s194, %s196
      %p203 = scmp.eq.s32.totalorder %s34, 1
      %p204 = por %p202, %p203
      %p205 = scmp.ne.s32.totalorder %s196, %s197
      %p206 = scmp.eq.s32.totalorder %s34, 0
      %p207 = por %p205, %p206
      %p208 = scmp.ne.s32.totalorder %s196, %s197
      %p209 = scmp.eq.s32.totalorder %s35, 1
      %p210 = por %p208, %p209
      %p212 = scmp.ne.s32.totalorder %s197, %s211
      %p213 = scmp.eq.s32.totalorder %s35, 0
      %p214 = por %p212, %p213
      %s216 = sadd.s32 %s215, 1
      %p219 = scmp.eq.s32.totalorder %s29, 1
      %p220 = scmp.ne.s32.totalorder %s215, %s217
      %p221 = scmp.eq.s32.totalorder %s29, 0
      %p222 = por %p220, %p221
      %p223 = scmp.ne.s32.totalorder %s215, %s217
      %p224 = scmp.eq.s32.totalorder %s34, 1
      %p225 = por %p223, %p224
      %p226 = scmp.ne.s32.totalorder %s217, %s218
      %p227 = scmp.eq.s32.totalorder %s34, 0
      %p228 = por %p226, %p227
      %p229 = scmp.ne.s32.totalorder %s217, %s218
      %p230 = scmp.eq.s32.totalorder %s35, 1
      %p231 = por %p229, %p230
      %p233 = scmp.ne.s32.totalorder %s218, %s232
      %p234 = scmp.eq.s32.totalorder %s35, 0
      %p235 = por %p233, %p234
      %s237 = sadd.s32 %s236, 1
      %p240 = scmp.eq.s32.totalorder %s29, 1
      %p241 = scmp.ne.s32.totalorder %s236, %s238
      %p242 = scmp.eq.s32.totalorder %s29, 0
      %p243 = por %p241, %p242
      %p244 = scmp.ne.s32.totalorder %s236, %s238
      %p245 = scmp.eq.s32.totalorder %s34, 1
      %p246 = por %p244, %p245
      %p247 = scmp.ne.s32.totalorder %s238, %s239
      %p248 = scmp.eq.s32.totalorder %s34, 0
      %p249 = por %p247, %p248
      %p250 = scmp.ne.s32.totalorder %s238, %s239
      %p251 = scmp.eq.s32.totalorder %s35, 1
      %p252 = por %p250, %p251
      %p254 = scmp.ne.s32.totalorder %s239, %s253
      %p255 = scmp.eq.s32.totalorder %s35, 0
      %p256 = por %p254, %p255
      %s258 = sadd.s32 %s257, 1
      %p261 = scmp.eq.s32.totalorder %s29, 1
      %p262 = scmp.ne.s32.totalorder %s257, %s259
      %p263 = scmp.eq.s32.totalorder %s29, 0
      %p264 = por %p262, %p263
      %p265 = scmp.ne.s32.totalorder %s257, %s259
      %p266 = scmp.eq.s32.totalorder %s34, 1
      %p267 = por %p265, %p266
      %p268 = scmp.ne.s32.totalorder %s259, %s260
      %p269 = scmp.eq.s32.totalorder %s34, 0
      %p270 = por %p268, %p269
      %p271 = scmp.ne.s32.totalorder %s259, %s260
      %p272 = scmp.eq.s32.totalorder %s35, 1
      %p273 = por %p271, %p272
      %p275 = scmp.ne.s32.totalorder %s260, %s274
      %p276 = scmp.eq.s32.totalorder %s35, 0
      %p277 = por %p275, %p276
      %s279 = sadd.s32 %s278, 1
      %p282 = scmp.eq.s32.totalorder %s29, 1
      %p283 = scmp.ne.s32.totalorder %s278, %s280
      %p284 = scmp.eq.s32.totalorder %s29, 0
      %p285 = por %p283, %p284
      %p286 = scmp.ne.s32.totalorder %s278, %s280
      %p287 = scmp.eq.s32.totalorder %s34, 1
      %p288 = por %p286, %p287
      %p289 = scmp.ne.s32.totalorder %s280, %s281
      %p290 = scmp.eq.s32.totalorder %s34, 0
      %p291 = por %p289, %p290
      %p292 = scmp.ne.s32.totalorder %s280, %s281
      %p293 = scmp.eq.s32.totalorder %s35, 1
      %p294 = por %p292, %p293
      %p296 = scmp.ne.s32.totalorder %s281, %s295
      %p297 = scmp.eq.s32.totalorder %s35, 0
      %p298 = por %p296, %p297
      %s300 = sadd.s32 %s299, 1
      %p303 = scmp.eq.s32.totalorder %s29, 1
      %p304 = scmp.ne.s32.totalorder %s299, %s301
      %p305 = scmp.eq.s32.totalorder %s29, 0
      %p306 = por %p304, %p305
      %p307 = scmp.ne.s32.totalorder %s299, %s301
      %p308 = scmp.eq.s32.totalorder %s34, 1
      %p309 = por %p307, %p308
      %p310 = scmp.ne.s32.totalorder %s301, %s302
      %p311 = scmp.eq.s32.totalorder %s34, 0
      %p312 = por %p310, %p311
      %p313 = scmp.ne.s32.totalorder %s301, %s302
      %p314 = scmp.eq.s32.totalorder %s35, 1
      %p315 = por %p313, %p314
      %p317 = scmp.ne.s32.totalorder %s302, %s316
      %p318 = scmp.eq.s32.totalorder %s35, 0
      %p319 = por %p317, %p318
      %s321 = sadd.s32 %s320, 1
      %p324 = scmp.eq.s32.totalorder %s29, 1
      %p325 = scmp.ne.s32.totalorder %s320, %s322
      %p326 = scmp.eq.s32.totalorder %s29, 0
      %p327 = por %p325, %p326
      %p328 = scmp.ne.s32.totalorder %s320, %s322
      %p329 = scmp.eq.s32.totalorder %s34, 1
      %p330 = por %p328, %p329
      %p331 = scmp.ne.s32.totalorder %s322, %s323
      %p332 = scmp.eq.s32.totalorder %s34, 0
      %p333 = por %p331, %p332
      %p334 = scmp.ne.s32.totalorder %s322, %s323
      %p335 = scmp.eq.s32.totalorder %s35, 1
      %p336 = por %p334, %p335
      %p338 = scmp.ne.s32.totalorder %s323, %s337
      %p339 = scmp.eq.s32.totalorder %s35, 0
      %p340 = por %p338, %p339
      %s342 = sadd.s32 %s341, 1
      %p345 = scmp.eq.s32.totalorder %s29, 1
      %p346 = scmp.ne.s32.totalorder %s341, %s343
      %p347 = scmp.eq.s32.totalorder %s29, 0
      %p348 = por %p346, %p347
      %p349 = scmp.ne.s32.totalorder %s341, %s343
      %p350 = scmp.eq.s32.totalorder %s34, 1
      %p351 = por %p349, %p350
      %p352 = scmp.ne.s32.totalorder %s343, %s344
      %p353 = scmp.eq.s32.totalorder %s34, 0
      %p354 = por %p352, %p353
      %p355 = scmp.ne.s32.totalorder %s343, %s344
      %p356 = scmp.eq.s32.totalorder %s35, 1
      %p357 = por %p355, %p356
      %p359 = scmp.ne.s32.totalorder %s344, %s358
      %p360 = scmp.eq.s32.totalorder %s35, 0
      %p361 = por %p359, %p360
      %s363 = sadd.s32 %s362, 1
      %p366 = scmp.eq.s32.totalorder %s29, 1
      %p367 = scmp.ne.s32.totalorder %s362, %s364
      %p368 = scmp.eq.s32.totalorder %s29, 0
      %p369 = por %p367, %p368
      %p370 = scmp.ne.s32.totalorder %s362, %s364
      %p371 = scmp.eq.s32.totalorder %s34, 1
      %p372 = por %p370, %p371
      %p373 = scmp.ne.s32.totalorder %s364, %s365
      %p374 = scmp.eq.s32.totalorder %s34, 0
      %p375 = por %p373, %p374
      %p376 = scmp.ne.s32.totalorder %s364, %s365
      %p377 = scmp.eq.s32.totalorder %s35, 1
      %p378 = por %p376, %p377
      %p380 = scmp.ne.s32.totalorder %s365, %s379
      %p381 = scmp.eq.s32.totalorder %s35, 0
      %p382 = por %p380, %p381
      %s384 = sadd.s32 %s383, 1
      %p387 = scmp.eq.s32.totalorder %s29, 1
      %p388 = scmp.ne.s32.totalorder %s383, %s385
      %p389 = scmp.eq.s32.totalorder %s29, 0
      %p390 = por %p388, %p389
      %p391 = scmp.ne.s32.totalorder %s383, %s385
      %p392 = scmp.eq.s32.totalorder %s34, 1
      %p393 = por %p391, %p392
      %p394 = scmp.ne.s32.totalorder %s385, %s386
      %p395 = scmp.eq.s32.totalorder %s34, 0
      %p396 = por %p394, %p395
      %p397 = scmp.ne.s32.totalorder %s385, %s386
      %p398 = scmp.eq.s32.totalorder %s35, 1
      %p399 = por %p397, %p398
      %p401 = scmp.ne.s32.totalorder %s386, %s400
      %p402 = scmp.eq.s32.totalorder %s35, 0
      %p403 = por %p401, %p402
      %s405 = sadd.s32 %s404, 1
      %p408 = scmp.eq.s32.totalorder %s29, 1
      %p409 = scmp.ne.s32.totalorder %s404, %s406
      %p410 = scmp.eq.s32.totalorder %s29, 0
      %p411 = por %p409, %p410
      %p412 = scmp.ne.s32.totalorder %s404, %s406
      %p413 = scmp.eq.s32.totalorder %s34, 1
      %p414 = por %p412, %p413
      %p415 = scmp.ne.s32.totalorder %s406, %s407
      %p416 = scmp.eq.s32.totalorder %s34, 0
      %p417 = por %p415, %p416
      %p418 = scmp.ne.s32.totalorder %s406, %s407
      %p419 = scmp.eq.s32.totalorder %s35, 1
      %p420 = por %p418, %p419
      %p422 = scmp.ne.s32.totalorder %s407, %s421
      %p423 = scmp.eq.s32.totalorder %s35, 0
      %p424 = por %p422, %p423
      %s426 = sadd.s32 %s425, 1
      %p429 = scmp.eq.s32.totalorder %s29, 1
      %p430 = scmp.ne.s32.totalorder %s425, %s427
      %p431 = scmp.eq.s32.totalorder %s29, 0
      %p432 = por %p430, %p431
      %p433 = scmp.ne.s32.totalorder %s425, %s427
      %p434 = scmp.eq.s32.totalorder %s34, 1
      %p435 = por %p433, %p434
      %p436 = scmp.ne.s32.totalorder %s427, %s428
      %p437 = scmp.eq.s32.totalorder %s34, 0
      %p438 = por %p436, %p437
      %p439 = scmp.ne.s32.totalorder %s427, %s428
      %p440 = scmp.eq.s32.totalorder %s35, 1
      %p441 = por %p439, %p440
      %p443 = scmp.ne.s32.totalorder %s428, %s442
      %p444 = scmp.eq.s32.totalorder %s35, 0
      %p445 = por %p443, %p444
      %s447 = sadd.s32 %s446, 1
      %p450 = scmp.eq.s32.totalorder %s29, 1
      %p451 = scmp.ne.s32.totalorder %s446, %s448
      %p452 = scmp.eq.s32.totalorder %s29, 0
      %p453 = por %p451, %p452
      %p454 = scmp.ne.s32.totalorder %s446, %s448
      %p455 = scmp.eq.s32.totalorder %s34, 1
      %p456 = por %p454, %p455
      %p457 = scmp.ne.s32.totalorder %s448, %s449
      %p458 = scmp.eq.s32.totalorder %s34, 0
      %p459 = por %p457, %p458
      %p460 = scmp.ne.s32.totalorder %s448, %s449
      %p461 = scmp.eq.s32.totalorder %s35, 1
      %p462 = por %p460, %p461
      %p464 = scmp.ne.s32.totalorder %s449, %s463
      %p465 = scmp.eq.s32.totalorder %s35, 0
      %p466 = por %p464, %p465
      %s467 = ssub.s32 %s29, %s36
      %p468 = scmp.eq.s32.totalorder %s467, 0
      %s470 = sadd.s32 %s469, 1
      %s471 = scalar_select %p468, %s469, %s470
      %p474 = pneg %p468
      %p475 = scmp.eq.s32.totalorder %s29, 1
      %p476 = por %p474, %p475
      %p477 = scmp.ne.s32.totalorder %s469, %s472
      %p478 = scmp.eq.s32.totalorder %s29, 0
      %p479 = por %p477, %p478
      %p480 = scmp.ne.s32.totalorder %s469, %s472
      %p481 = scmp.eq.s32.totalorder %s34, 1
      %p482 = por %p480, %p481
      %p483 = scmp.ne.s32.totalorder %s472, %s473
      %p484 = scmp.eq.s32.totalorder %s34, 0
      %p485 = por %p483, %p484
      %p486 = scmp.ne.s32.totalorder %s472, %s473
      %p487 = scmp.eq.s32.totalorder %s35, 1
      %p488 = por %p486, %p487
      %p490 = scmp.ne.s32.totalorder %s473, %s489
      %p491 = scmp.eq.s32.totalorder %s35, 0
      %p492 = por %p490, %p491
      %p493 = scmp.le.s32.totalorder 1, %s29
      %p494 = scmp.lt.s32.totalorder %s29, 3
      %p495 = pnand %p493, %p494
      %p496 = pneg %p495
      // Predicated region
      $region9: #{bert_classifier_forward.1} parent=5 // pred_check
        _
      $region10: #{bert_classifier_forward.1} parent=5 // pred_check_branch
        %498 = sbr.rel (%p495) target = $region12
      $region11: #{bert_classifier_forward.1} parent=5 // pred_region
        %s499 = ssub.s32 %s29, 1
        // Predicated region
        $region13: #{bert_classifier_forward.1} parent=11 // pred_check
          %p500 = pneg %p102
        $region14: #{bert_classifier_forward.1} parent=11 // pred_check_branch
          %502 = sbr.rel (%p500) target = $region16
        $region15: #{bert_classifier_forward.1} parent=11 // pred_region
          _
        $region16: #{bert_classifier_forward.1} parent=11 // pred_fallthru
          _
        // Predicated region
        $region17: #{bert_classifier_forward.1} parent=11 // pred_check
          %p503 = pneg %p123
        $region18: #{bert_classifier_forward.1} parent=11 // pred_check_branch
          %505 = sbr.rel (%p503) target = $region20
        $region19: #{bert_classifier_forward.1} parent=11 // pred_region
          _
        $region20: #{bert_classifier_forward.1} parent=11 // pred_fallthru
          _
        // Predicated region
        $region21: #{bert_classifier_forward.1} parent=11 // pred_check
          %p506 = pneg %p144
        $region22: #{bert_classifier_forward.1} parent=11 // pred_check_branch
          %508 = sbr.rel (%p506) target = $region24
        $region23: #{bert_classifier_forward.1} parent=11 // pred_region
          _
        $region24: #{bert_classifier_forward.1} parent=11 // pred_fallthru
          _
        // Predicated region
        $region25: #{bert_classifier_forward.1} parent=11 // pred_check
          %p509 = pneg %p165
        $region26: #{bert_classifier_forward.1} parent=11 // pred_check_branch
          %511 = sbr.rel (%p509) target = $region28
        $region27: #{bert_classifier_forward.1} parent=11 // pred_region
          _
        $region28: #{bert_classifier_forward.1} parent=11 // pred_fallthru
          _
        // Predicated region
        $region29: #{bert_classifier_forward.1} parent=11 // pred_check
          %p512 = pneg %p186
        $region30: #{bert_classifier_forward.1} parent=11 // pred_check_branch
          %514 = sbr.rel (%p512) target = $region32
        $region31: #{bert_classifier_forward.1} parent=11 // pred_region
          _
        $region32: #{bert_classifier_forward.1} parent=11 // pred_fallthru
          _
        // Predicated region
        $region33: #{bert_classifier_forward.1} parent=11 // pred_check
          %p515 = pneg %p207
        $region34: #{bert_classifier_forward.1} parent=11 // pred_check_branch
          %517 = sbr.rel (%p515) target = $region36
        $region35: #{bert_classifier_forward.1} parent=11 // pred_region
          _
        $region36: #{bert_classifier_forward.1} parent=11 // pred_fallthru
          _
        // Predicated region
        $region37: #{bert_classifier_forward.1} parent=11 // pred_check
          %p518 = pneg %p228
        $region38: #{bert_classifier_forward.1} parent=11 // pred_check_branch
          %520 = sbr.rel (%p518) target = $region40
        $region39: #{bert_classifier_forward.1} parent=11 // pred_region
          _
        $region40: #{bert_classifier_forward.1} parent=11 // pred_fallthru
          _
        // Predicated region
        $region41: #{bert_classifier_forward.1} parent=11 // pred_check
          %p521 = pneg %p249
        $region42: #{bert_classifier_forward.1} parent=11 // pred_check_branch
          %523 = sbr.rel (%p521) target = $region44
        $region43: #{bert_classifier_forward.1} parent=11 // pred_region
          _
        $region44: #{bert_classifier_forward.1} parent=11 // pred_fallthru
          _
        // Predicated region
        $region45: #{bert_classifier_forward.1} parent=11 // pred_check
          %p524 = pneg %p270
        $region46: #{bert_classifier_forward.1} parent=11 // pred_check_branch
          %526 = sbr.rel (%p524) target = $region48
        $region47: #{bert_classifier_forward.1} parent=11 // pred_region
          _
        $region48: #{bert_classifier_forward.1} parent=11 // pred_fallthru
          _
        // Predicated region
        $region49: #{bert_classifier_forward.1} parent=11 // pred_check
          %p527 = pneg %p291
        $region50: #{bert_classifier_forward.1} parent=11 // pred_check_branch
          %529 = sbr.rel (%p527) target = $region52
        $region51: #{bert_classifier_forward.1} parent=11 // pred_region
          _
        $region52: #{bert_classifier_forward.1} parent=11 // pred_fallthru
          _
        // Predicated region
        $region53: #{bert_classifier_forward.1} parent=11 // pred_check
          %p530 = pneg %p312
        $region54: #{bert_classifier_forward.1} parent=11 // pred_check_branch
          %532 = sbr.rel (%p530) target = $region56
        $region55: #{bert_classifier_forward.1} parent=11 // pred_region
          _
        $region56: #{bert_classifier_forward.1} parent=11 // pred_fallthru
          _
        // Predicated region
        $region57: #{bert_classifier_forward.1} parent=11 // pred_check
          %p533 = pneg %p333
        $region58: #{bert_classifier_forward.1} parent=11 // pred_check_branch
          %535 = sbr.rel (%p533) target = $region60
        $region59: #{bert_classifier_forward.1} parent=11 // pred_region
          _
        $region60: #{bert_classifier_forward.1} parent=11 // pred_fallthru
          _
        // Predicated region
        $region61: #{bert_classifier_forward.1} parent=11 // pred_check
          %p536 = pneg %p354
        $region62: #{bert_classifier_forward.1} parent=11 // pred_check_branch
          %538 = sbr.rel (%p536) target = $region64
        $region63: #{bert_classifier_forward.1} parent=11 // pred_region
          _
        $region64: #{bert_classifier_forward.1} parent=11 // pred_fallthru
          _
        // Predicated region
        $region65: #{bert_classifier_forward.1} parent=11 // pred_check
          %p539 = pneg %p375
        $region66: #{bert_classifier_forward.1} parent=11 // pred_check_branch
          %541 = sbr.rel (%p539) target = $region68
        $region67: #{bert_classifier_forward.1} parent=11 // pred_region
          _
        $region68: #{bert_classifier_forward.1} parent=11 // pred_fallthru
          _
        // Predicated region
        $region69: #{bert_classifier_forward.1} parent=11 // pred_check
          %p542 = pneg %p396
        $region70: #{bert_classifier_forward.1} parent=11 // pred_check_branch
          %544 = sbr.rel (%p542) target = $region72
        $region71: #{bert_classifier_forward.1} parent=11 // pred_region
          _
        $region72: #{bert_classifier_forward.1} parent=11 // pred_fallthru
          _
        // Predicated region
        $region73: #{bert_classifier_forward.1} parent=11 // pred_check
          %p545 = pneg %p417
        $region74: #{bert_classifier_forward.1} parent=11 // pred_check_branch
          %547 = sbr.rel (%p545) target = $region76
        $region75: #{bert_classifier_forward.1} parent=11 // pred_region
          _
        $region76: #{bert_classifier_forward.1} parent=11 // pred_fallthru
          _
        // Predicated region
        $region77: #{bert_classifier_forward.1} parent=11 // pred_check
          %p548 = pneg %p438
        $region78: #{bert_classifier_forward.1} parent=11 // pred_check_branch
          %550 = sbr.rel (%p548) target = $region80
        $region79: #{bert_classifier_forward.1} parent=11 // pred_region
          _
        $region80: #{bert_classifier_forward.1} parent=11 // pred_fallthru
          _
        // Predicated region
        $region81: #{bert_classifier_forward.1} parent=11 // pred_check
          %p551 = pneg %p459
        $region82: #{bert_classifier_forward.1} parent=11 // pred_check_branch
          %553 = sbr.rel (%p551) target = $region84
        $region83: #{bert_classifier_forward.1} parent=11 // pred_region
          _
        $region84: #{bert_classifier_forward.1} parent=11 // pred_fallthru
          _
      $region12: #{bert_classifier_forward.1} parent=5 // pred_fallthru
        _
      %p554 = scmp.lt.s32.totalorder %s29, 2
      // Predicated region
      $region85: #{bert_classifier_forward.1} parent=5 // pred_check
        %p555 = pneg %p554
      $region86: #{bert_classifier_forward.1} parent=5 // pred_check_branch
        %557 = sbr.rel (%p555) target = $region88
      $region87: #{bert_classifier_forward.1} parent=5 // pred_region
        // Predicated region
        $region89: #{bert_classifier_forward.1} parent=87 // pred_check
          %p558 = pneg %p49
        $region90: #{bert_classifier_forward.1} parent=87 // pred_check_branch
          %560 = sbr.rel (%p558) target = $region92
        $region91: #{bert_classifier_forward.1} parent=87 // pred_region
          %p561 = scmp.lt.s32.totalorder %s29, 1
          %s562 = scalar_select %p561, %s29, 1
          %s563 = smul.addr %s562, 8
          %s564 = scalar_lea.vmem %s0, %s563
        $region92: #{bert_classifier_forward.1} parent=87 // pred_fallthru
          _
        // Predicated region
        $region93: #{bert_classifier_forward.1} parent=87 // pred_check
          %p565 = pneg %p75
        $region94: #{bert_classifier_forward.1} parent=87 // pred_check_branch
          %567 = sbr.rel (%p565) target = $region96
        $region95: #{bert_classifier_forward.1} parent=87 // pred_region
          %p568 = scmp.lt.s32.totalorder %s29, 1
          %s569 = scalar_select %p568, %s29, 1
          %s570 = scalar_lea.vmem %s1, %s569
        $region96: #{bert_classifier_forward.1} parent=87 // pred_fallthru
          _
      $region88: #{bert_classifier_forward.1} parent=5 // pred_fallthru
        _
      %p571 = scmp.le.s32.totalorder 1, %s29
      %p572 = scmp.lt.s32.totalorder %s29, 3
      %p573 = pnand %p571, %p572
      %p574 = pneg %p573
      // Predicated region
      $region97: #{bert_classifier_forward.1} parent=5 // pred_check
        _
      $region98: #{bert_classifier_forward.1} parent=5 // pred_check_branch
        %576 = sbr.rel (%p573) target = $region100
      $region99: #{bert_classifier_forward.1} parent=5 // pred_region
        %s577 = ssub.s32 %s29, 1
        %p578 = scmp.lt.s32.totalorder %s34, 1
        %s579 = scalar_select %p578, %s34, 1
        %s580 = smul.addr %s579, 8
        %s581 = scalar_lea.vmem %s0, %s580
        %p582 = pneg %p55
        %p583 = pneg %p52
        %p584 = scmp.lt.s32.totalorder %s34, 1
        %s585 = scalar_select %p584, %s34, 1
        %s586 = scalar_lea.vmem %s1, %s585
        %p587 = pneg %p81
        %p588 = pneg %p78
        %p589 = pneg %p102
        %p590 = pneg %p99
        %p591 = pneg %p123
        %p592 = pneg %p120
        %p593 = pneg %p144
        %p594 = pneg %p141
        %p595 = pneg %p165
        %p596 = pneg %p162
        %p597 = pneg %p186
        %p598 = pneg %p183
        %p599 = pneg %p207
        %p600 = pneg %p204
        %p601 = pneg %p228
        %p602 = pneg %p225
        %p603 = pneg %p249
        %p604 = pneg %p246
        %p605 = pneg %p270
        %p606 = pneg %p267
        %p607 = pneg %p291
        %p608 = pneg %p288
        %p609 = pneg %p312
        %p610 = pneg %p309
        %p611 = pneg %p333
        %p612 = pneg %p330
        %p613 = pneg %p354
        %p614 = pneg %p351
        %p615 = pneg %p375
        %p616 = pneg %p372
        %p617 = pneg %p396
        %p618 = pneg %p393
        %p619 = pneg %p417
        %p620 = pneg %p414
        %p621 = pneg %p438
        %p622 = pneg %p435
        %p623 = pneg %p459
        %p624 = pneg %p456
        %p625 = pneg %p485
        %p626 = pneg %p482
        %s627 = sand.u32 %s472, 1
        %s628 = scalar_lea.sflag [#allocation3], %s627
        %s629 = sand.u32 %s472, 1
        %s630 = scalar_lea.vmem [#allocation2], %s629
        %p631 = scmp.lt.s32.totalorder %s34, 1
        %s632 = scalar_select %p631, %s34, 1
        %s633 = smul.addr %s632, 8
        %s634 = scalar_lea.vmem %s0, %s633
        %p635 = scmp.lt.s32.totalorder %s34, 1
        %s636 = scalar_select %p635, %s34, 1
        %s637 = scalar_lea.vmem %s1, %s636
        %v638 = vld [vmem:[%s634] sm:$0xff]
        %v639 = vld [vmem:[%s2] sm:$0x1]
        %v640 = vld [vmem:[%s3] sm:$0x1]
        %vm641 = vcmask 261120
        %v642 = vsel %vm641, %v638, 0.0
        %643 = vadd.xlane.f32.xlu0 %v642
        %v644 = vpop.xlane.xlu0 %643
        %v645 = vrcp.pop 32.0
        %v646 = vmul.f32 %v644, %v645
        %v647 = vsub.f32 %v638, %v646
        %v648 = vmul.f32 %v647, %v647
        %v649 = vsel %vm641, %v648, 0.0
        %650 = vadd.xlane.f32.xlu0 %v649
        %v651 = vpop.xlane.xlu0 %650
        %v652 = vmul.f32 %v651, %v645
        %v653 = vadd.f32 %v652, 1e-12
        %v654 = vrsqrt.pop %v653
        %v655 = vmul.f32 %v647, %v654
        %v657 = vlaneseq
        %v658 = vshrl.u32 %v657, 7
        %v659 = vsub.s32 0, %v658
        %v660 = vrot.slane %v639, %v659
        %v662 = vmul.f32 %v655, %v660
        %v664 = vlaneseq
        %v665 = vshrl.u32 %v664, 7
        %v666 = vsub.s32 0, %v665
        %v667 = vrot.slane %v640, %v666
        %v669 = vadd.f32 %v662, %v667
        %v670 = vld [vmem:[%s637] sm:$0x1]
        %v671 = vld [vmem:[%s4] sm:$0xff]
        %v672 = vld [vmem:[%s4 + $0x8] sm:$0xff]
        %v673 = vld [vmem:[%s4 + $0x10] sm:$0xff]
        %v674 = vld [vmem:[%s4 + $0x18] sm:$0xff]
        %v675 = vld [vmem:[%s5] sm:$0x1]
        %v677 = vlaneseq
        %v678 = vshrl.u32 %v677, 7
        %v679 = vsub.s32 0, %v678
        %v680 = vrot.slane %v675, %v679
        %v683 = vsel %vm641, %v669, 0
        %685 = vmatprep.subr.mxu0 0.0
        %686 = vmatpush1.msra.mxu0 %v671
        %687 = vmatprep.subr.mxu0 0.0
        %688 = vmatpush1.msra.mxu0 %v672
        %689 = vmatprep.subr.mxu0 0.0
        %690 = vmatpush1.msra.mxu0 %v673
        %691 = vmatprep.subr.mxu0 0.0
        %692 = vmatpush1.msra.mxu0 %v674
        %693 = vmatprep.subr.mxu0 0.0
        %694 = vmatpush1.msra.mxu0 0.0
        %695 = vmatprep.subr.mxu0 0.0
        %696 = vmatpush1.msra.mxu0 0.0
        %697 = vmatprep.subr.mxu0 0.0
        %698 = vmatpush1.msra.mxu0 0.0
        %699 = vmatprep.subr.mxu0 0.0
        %700 = vmatpush1.msra.mxu0 0.0
        %701 = vmatprep.subr.mxu0 0.0
        %702 = vmatpush1.msra.mxu0 0.0
        %703 = vmatprep.subr.mxu0 0.0
        %704 = vmatpush1.msra.mxu0 0.0
        %705 = vmatprep.subr.mxu0 0.0
        %706 = vmatpush1.msra.mxu0 0.0
        %707 = vmatprep.subr.mxu0 0.0
        %708 = vmatpush1.msra.mxu0 0.0
        %709 = vmatprep.subr.mxu0 0.0
        %710 = vmatpush1.msra.mxu0 0.0
        %711 = vmatprep.subr.mxu0 0.0
        %712 = vmatpush1.msra.mxu0 0.0
        %713 = vmatprep.subr.mxu0 0.0
        %714 = vmatpush1.msra.mxu0 0.0
        %715 = vmatprep.subr.mxu0 0.0
        %716 = vmatpush1.msra.mxu0 0.0
        %717 = vmatprep.subr.mxu0 0.0
        %718 = vmatpush1.msra.mxu0 0.0
        %719 = vmatprep.subr.mxu0 0.0
        %720 = vmatpush1.msra.mxu0 0.0
        %721 = vmatprep.subr.mxu0 0.0
        %722 = vmatpush1.msra.mxu0 0.0
        %723 = vmatprep.subr.mxu0 0.0
        %724 = vmatpush1.msra.mxu0 0.0
        %725 = vmatprep.subr.mxu0 0.0
        %726 = vmatpush1.msra.mxu0 0.0
        %727 = vmatprep.subr.mxu0 0.0
        %728 = vmatpush1.msra.mxu0 0.0
        %729 = vmatprep.subr.mxu0 0.0
        %730 = vmatpush1.msra.mxu0 0.0
        %731 = vmatprep.subr.mxu0 0.0
        %732 = vmatpush1.msra.mxu0 0.0
        %733 = vmatprep.subr.mxu0 0.0
        %734 = vmatpush1.msra.mxu0 0.0
        %735 = vmatprep.subr.mxu0 0.0
        %736 = vmatpush1.msra.mxu0 0.0
        %737 = vmatprep.subr.mxu0 0.0
        %738 = vmatpush1.msra.mxu0 0.0
        %739 = vmatprep.subr.mxu0 0.0
        %740 = vmatpush1.msra.mxu0 0.0
        %741 = vmatprep.subr.mxu0 0.0
        %742 = vmatpush1.msra.mxu0 0.0
        %743 = vmatprep.subr.mxu0 0.0
        %744 = vmatpush1.msra.mxu0 0.0
        %745 = vmatprep.subr.mxu0 0.0
        %746 = vmatpush1.msra.mxu0 0.0
        %747 = vmatprep.subr.mxu0 0.0
        %748 = vmatpush1.msra.mxu0 0.0
        %749 = vmatprep.mubr.f32.mxu0 0.0
        %750 = vmatmul.mubr.f32.gmra.mrb[0].mxu0 %v683
        %v751 = vpop.f32.mrb[0].mxu0
        %v752 = vadd.f32 %v680, %v751
        %v753 = vpop.f32.mrb[0].mxu0
        %754 = vdwg.mxu0
        %v755 = vld [vmem:[%s6] sm:$0xff]
        %v756 = vld [vmem:[%s6 + $0x8] sm:$0xff]
        %v757 = vld [vmem:[%s6 + $0x10] sm:$0xff]
        %v758 = vld [vmem:[%s6 + $0x18] sm:$0xff]
        %v759 = vmul.f32 %v752, 0.35355338
        %v761 = vlaneseq
        %v762 = vshrl.u32 %v761, 7
        %v763 = vsub.s32 0, %v762
        %v764 = vrot.slane %v670, %v763
        %767 = vrot.lane.b32.xlu0 %v752, 96
        %v768 = vpop.permute.xlu0 %767
        %vm769 = vcmask 64512
        %v771 = vsel %vm769, %v759, 0
        %v773 = vsel %vm769, %v768, 0
        %775 = vmatprep.subr.mxu0 0.0
        %776 = vmatpush1.xpose.msra.mxu0 %v773
        %777 = vmatprep.subr.mxu0 0.0
        %778 = vmatpush1.xpose.msra.mxu0 0.0
        %779 = vmatprep.subr.mxu0 0.0
        %780 = vmatpush1.xpose.msra.mxu0 0.0
        %781 = vmatprep.subr.mxu0 0.0
        %782 = vmatpush1.xpose.msra.mxu0 0.0
        %783 = vmatprep.subr.mxu0 0.0
        %784 = vmatpush1.xpose.msra.mxu0 0.0
        %785 = vmatprep.subr.mxu0 0.0
        %786 = vmatpush1.xpose.msra.mxu0 0.0
        %787 = vmatprep.subr.mxu0 0.0
        %788 = vmatpush1.xpose.msra.mxu0 0.0
        %789 = vmatprep.subr.mxu0 0.0
        %790 = vmatpush1.xpose.msra.mxu0 0.0
        %791 = vmatprep.subr.mxu0 0.0
        %792 = vmatpush1.xpose.msra.mxu0 0.0
        %793 = vmatprep.subr.mxu0 0.0
        %794 = vmatpush1.xpose.msra.mxu0 0.0
        %795 = vmatprep.subr.mxu0 0.0
        %796 = vmatpush1.xpose.msra.mxu0 0.0
        %797 = vmatprep.subr.mxu0 0.0
        %798 = vmatpush1.xpose.msra.mxu0 0.0
        %799 = vmatprep.subr.mxu0 0.0
        %800 = vmatpush1.xpose.msra.mxu0 0.0
        %801 = vmatprep.subr.mxu0 0.0
        %802 = vmatpush1.xpose.msra.mxu0 0.0
        %803 = vmatprep.subr.mxu0 0.0
        %804 = vmatpush1.xpose.msra.mxu0 0.0
        %805 = vmatprep.subr.mxu0 0.0
        %806 = vmatpush1.xpose.msra.mxu0 0.0
        %807 = vmatprep.subr.mxu0 0.0
        %808 = vmatpush1.xpose.msra.mxu0 0.0
        %809 = vmatprep.subr.mxu0 0.0
        %810 = vmatpush1.xpose.msra.mxu0 0.0
        %811 = vmatprep.subr.mxu0 0.0
        %812 = vmatpush1.xpose.msra.mxu0 0.0
        %813 = vmatprep.subr.mxu0 0.0
        %814 = vmatpush1.xpose.msra.mxu0 0.0
        %815 = vmatprep.subr.mxu0 0.0
        %816 = vmatpush1.xpose.msra.mxu0 0.0
        %817 = vmatprep.subr.mxu0 0.0
        %818 = vmatpush1.xpose.msra.mxu0 0.0
        %819 = vmatprep.subr.mxu0 0.0
        %820 = vmatpush1.xpose.msra.mxu0 0.0
        %821 = vmatprep.subr.mxu0 0.0
        %822 = vmatpush1.xpose.msra.mxu0 0.0
        %823 = vmatprep.subr.mxu0 0.0
        %824 = vmatpush1.xpose.msra.mxu0 0.0
        %825 = vmatprep.subr.mxu0 0.0
        %826 = vmatpush1.xpose.msra.mxu0 0.0
        %827 = vmatprep.subr.mxu0 0.0
        %828 = vmatpush1.xpose.msra.mxu0 0.0
        %829 = vmatprep.subr.mxu0 0.0
        %830 = vmatpush1.xpose.msra.mxu0 0.0
        %831 = vmatprep.subr.mxu0 0.0
        %832 = vmatpush1.xpose.msra.mxu0 0.0
        %833 = vmatprep.subr.mxu0 0.0
        %834 = vmatpush1.xpose.msra.mxu0 0.0
        %835 = vmatprep.subr.mxu0 0.0
        %836 = vmatpush1.xpose.msra.mxu0 0.0
        %837 = vmatprep.subr.mxu0 0.0
        %838 = vmatpush1.xpose.msra.mxu0 0.0
        %839 = vmatprep.mubr.f32.mxu0 0.0
        %840 = vmatmul.mubr.f32.gmra.mrb[0].mxu0 %v771
        %v841 = vpop.f32.mrb[0].mxu0
        %v842 = vadd.f32 %v764, %v841
        %v843 = vpop.f32.mrb[0].mxu0
        %844 = vdwg.mxu0
        %v845 = vsel %vm769, %v842, -inf
        %846 = vmax.xlane.f32.xlu0 %v845
        %v847 = vpop.xlane.xlu0 %846
        %v848 = vsub.f32 %v842, %v847
        %v849 = vmul.f32 %v848, 1.442695
        %v850 = vpow.pop %v849
        %v851 = vsel %vm769, %v850, 0.0
        %852 = vadd.xlane.f32.xlu0 %v851
        %v853 = vpop.xlane.xlu0 %852
        %v854 = vrcp.pop %v853
        %v855 = vmul.f32 %v850, %v854
        %856 = vrot.lane.b32.xlu0 %v752, 64
        %v857 = vpop.permute.xlu0 %856
        %v860 = vsel %vm769, %v855, 0
        %862 = vmatprep.subr.mxu0 0.0
        %863 = vmatpush1.msra.mxu0 %v857
        %864 = vmatprep.subr.mxu0 0.0
        %865 = vmatpush1.msra.mxu0 0.0
        %866 = vmatprep.subr.mxu0 0.0
        %867 = vmatpush1.msra.mxu0 0.0
        %868 = vmatprep.subr.mxu0 0.0
        %869 = vmatpush1.msra.mxu0 0.0
        %870 = vmatprep.subr.mxu0 0.0
        %871 = vmatpush1.msra.mxu0 0.0
        %872 = vmatprep.subr.mxu0 0.0
        %873 = vmatpush1.msra.mxu0 0.0
        %874 = vmatprep.subr.mxu0 0.0
        %875 = vmatpush1.msra.mxu0 0.0
        %876 = vmatprep.subr.mxu0 0.0
        %877 = vmatpush1.msra.mxu0 0.0
        %878 = vmatprep.subr.mxu0 0.0
        %879 = vmatpush1.msra.mxu0 0.0
        %880 = vmatprep.subr.mxu0 0.0
        %881 = vmatpush1.msra.mxu0 0.0
        %882 = vmatprep.subr.mxu0 0.0
        %883 = vmatpush1.msra.mxu0 0.0
        %884 = vmatprep.subr.mxu0 0.0
        %885 = vmatpush1.msra.mxu0 0.0
        %886 = vmatprep.subr.mxu0 0.0
        %887 = vmatpush1.msra.mxu0 0.0
        %888 = vmatprep.subr.mxu0 0.0
        %889 = vmatpush1.msra.mxu0 0.0
        %890 = vmatprep.subr.mxu0 0.0
        %891 = vmatpush1.msra.mxu0 0.0
        %892 = vmatprep.subr.mxu0 0.0
        %893 = vmatpush1.msra.mxu0 0.0
        %894 = vmatprep.subr.mxu0 0.0
        %895 = vmatpush1.msra.mxu0 0.0
        %896 = vmatprep.subr.mxu0 0.0
        %897 = vmatpush1.msra.mxu0 0.0
        %898 = vmatprep.subr.mxu0 0.0
        %899 = vmatpush1.msra.mxu0 0.0
        %900 = vmatprep.subr.mxu0 0.0
        %901 = vmatpush1.msra.mxu0 0.0
        %902 = vmatprep.subr.mxu0 0.0
        %903 = vmatpush1.msra.mxu0 0.0
        %904 = vmatprep.subr.mxu0 0.0
        %905 = vmatpush1.msra.mxu0 0.0
        %906 = vmatprep.subr.mxu0 0.0
        %907 = vmatpush1.msra.mxu0 0.0
        %908 = vmatprep.subr.mxu0 0.0
        %909 = vmatpush1.msra.mxu0 0.0
        %910 = vmatprep.subr.mxu0 0.0
        %911 = vmatpush1.msra.mxu0 0.0
        %912 = vmatprep.subr.mxu0 0.0
        %913 = vmatpush1.msra.mxu0 0.0
        %914 = vmatprep.subr.mxu0 0.0
        %915 = vmatpush1.msra.mxu0 0.0
        %916 = vmatprep.subr.mxu0 0.0
        %917 = vmatpush1.msra.mxu0 0.0
        %918 = vmatprep.subr.mxu0 0.0
        %919 = vmatpush1.msra.mxu0 0.0
        %920 = vmatprep.subr.mxu0 0.0
        %921 = vmatpush1.msra.mxu0 0.0
        %922 = vmatprep.subr.mxu0 0.0
        %923 = vmatpush1.msra.mxu0 0.0
        %924 = vmatprep.subr.mxu0 0.0
        %925 = vmatpush1.msra.mxu0 0.0
        %926 = vmatprep.mubr.f32.mxu0 0.0
        %927 = vmatmul.mubr.f32.gmra.mrb[0].mxu0 %v860
        %v928 = vpop.f32.mrb[0].mxu0
        %v929 = vadd.f32 0.0, %v928
        %v930 = vpop.f32.mrb[0].mxu0
        %931 = vdwg.mxu0
        %932 = vrot.lane.b32.xlu0 %v759, 120
        %v933 = vpop.permute.xlu0 %932
        %934 = vrot.lane.b32.xlu0 %v752, 88
        %v935 = vpop.permute.xlu0 %934
        %v936 = vsel %vm769, %v933, 0
        %v938 = vsel %vm769, %v935, 0
        %940 = vmatprep.subr.mxu0 0.0
        %941 = vmatpush1.xpose.msra.mxu0 %v938
        %942 = vmatprep.subr.mxu0 0.0
        %943 = vmatpush1.xpose.msra.mxu0 0.0
        %944 = vmatprep.subr.mxu0 0.0
        %945 = vmatpush1.xpose.msra.mxu0 0.0
        %946 = vmatprep.subr.mxu0 0.0
        %947 = vmatpush1.xpose.msra.mxu0 0.0
        %948 = vmatprep.subr.mxu0 0.0
        %949 = vmatpush1.xpose.msra.mxu0 0.0
        %950 = vmatprep.subr.mxu0 0.0
        %951 = vmatpush1.xpose.msra.mxu0 0.0
        %952 = vmatprep.subr.mxu0 0.0
        %953 = vmatpush1.xpose.msra.mxu0 0.0
        %954 = vmatprep.subr.mxu0 0.0
        %955 = vmatpush1.xpose.msra.mxu0 0.0
        %956 = vmatprep.subr.mxu0 0.0
        %957 = vmatpush1.xpose.msra.mxu0 0.0
        %958 = vmatprep.subr.mxu0 0.0
        %959 = vmatpush1.xpose.msra.mxu0 0.0
        %960 = vmatprep.subr.mxu0 0.0
        %961 = vmatpush1.xpose.msra.mxu0 0.0
        %962 = vmatprep.subr.mxu0 0.0
        %963 = vmatpush1.xpose.msra.mxu0 0.0
        %964 = vmatprep.subr.mxu0 0.0
        %965 = vmatpush1.xpose.msra.mxu0 0.0
        %966 = vmatprep.subr.mxu0 0.0
        %967 = vmatpush1.xpose.msra.mxu0 0.0
        %968 = vmatprep.subr.mxu0 0.0
        %969 = vmatpush1.xpose.msra.mxu0 0.0
        %970 = vmatprep.subr.mxu0 0.0
        %971 = vmatpush1.xpose.msra.mxu0 0.0
        %972 = vmatprep.subr.mxu0 0.0
        %973 = vmatpush1.xpose.msra.mxu0 0.0
        %974 = vmatprep.subr.mxu0 0.0
        %975 = vmatpush1.xpose.msra.mxu0 0.0
        %976 = vmatprep.subr.mxu0 0.0
        %977 = vmatpush1.xpose.msra.mxu0 0.0
        %978 = vmatprep.subr.mxu0 0.0
        %979 = vmatpush1.xpose.msra.mxu0 0.0
        %980 = vmatprep.subr.mxu0 0.0
        %981 = vmatpush1.xpose.msra.mxu0 0.0
        %982 = vmatprep.subr.mxu0 0.0
        %983 = vmatpush1.xpose.msra.mxu0 0.0
        %984 = vmatprep.subr.mxu0 0.0
        %985 = vmatpush1.xpose.msra.mxu0 0.0
        %986 = vmatprep.subr.mxu0 0.0
        %987 = vmatpush1.xpose.msra.mxu0 0.0
        %988 = vmatprep.subr.mxu0 0.0
        %989 = vmatpush1.xpose.msra.mxu0 0.0
        %990 = vmatprep.subr.mxu0 0.0
        %991 = vmatpush1.xpose.msra.mxu0 0.0
        %992 = vmatprep.subr.mxu0 0.0
        %993 = vmatpush1.xpose.msra.mxu0 0.0
        %994 = vmatprep.subr.mxu0 0.0
        %995 = vmatpush1.xpose.msra.mxu0 0.0
        %996 = vmatprep.subr.mxu0 0.0
        %997 = vmatpush1.xpose.msra.mxu0 0.0
        %998 = vmatprep.subr.mxu0 0.0
        %999 = vmatpush1.xpose.msra.mxu0 0.0
        %1000 = vmatprep.subr.mxu0 0.0
        %1001 = vmatpush1.xpose.msra.mxu0 0.0
        %1002 = vmatprep.subr.mxu0 0.0
        %1003 = vmatpush1.xpose.msra.mxu0 0.0
        %1004 = vmatprep.mubr.f32.mxu0 0.0
        %1005 = vmatmul.mubr.f32.gmra.mrb[0].mxu0 %v936
        %v1006 = vpop.f32.mrb[0].mxu0
        %v1007 = vadd.f32 %v764, %v1006
        %v1008 = vpop.f32.mrb[0].mxu0
        %1009 = vdwg.mxu0
        %v1010 = vsel %vm769, %v1007, -inf
        %1011 = vmax.xlane.f32.xlu0 %v1010
        %v1012 = vpop.xlane.xlu0 %1011
        %v1013 = vsub.f32 %v1007, %v1012
        %v1014 = vmul.f32 %v1013, 1.442695
        %v1015 = vpow.pop %v1014
        %v1016 = vsel %vm769, %v1015, 0.0
        %1017 = vadd.xlane.f32.xlu0 %v1016
        %v1018 = vpop.xlane.xlu0 %1017
        %v1019 = vrcp.pop %v1018
        %v1020 = vmul.f32 %v1015, %v1019
        %1021 = vrot.lane.b32.xlu0 %v752, 56
        %v1022 = vpop.permute.xlu0 %1021
        %v1025 = vsel %vm769, %v1020, 0
        %1027 = vmatprep.subr.mxu0 0.0
        %1028 = vmatpush1.msra.mxu0 %v1022
        %1029 = vmatprep.subr.mxu0 0.0
        %1030 = vmatpush1.msra.mxu0 0.0
        %1031 = vmatprep.subr.mxu0 0.0
        %1032 = vmatpush1.msra.mxu0 0.0
        %1033 = vmatprep.subr.mxu0 0.0
        %1034 = vmatpush1.msra.mxu0 0.0
        %1035 = vmatprep.subr.mxu0 0.0
        %1036 = vmatpush1.msra.mxu0 0.0
        %1037 = vmatprep.subr.mxu0 0.0
        %1038 = vmatpush1.msra.mxu0 0.0
        %1039 = vmatprep.subr.mxu0 0.0
        %1040 = vmatpush1.msra.mxu0 0.0
        %1041 = vmatprep.subr.mxu0 0.0
        %1042 = vmatpush1.msra.mxu0 0.0
        %1043 = vmatprep.subr.mxu0 0.0
        %1044 = vmatpush1.msra.mxu0 0.0
        %1045 = vmatprep.subr.mxu0 0.0
        %1046 = vmatpush1.msra.mxu0 0.0
        %1047 = vmatprep.subr.mxu0 0.0
        %1048 = vmatpush1.msra.mxu0 0.0
        %1049 = vmatprep.subr.mxu0 0.0
        %1050 = vmatpush1.msra.mxu0 0.0
        %1051 = vmatprep.subr.mxu0 0.0
        %1052 = vmatpush1.msra.mxu0 0.0
        %1053 = vmatprep.subr.mxu0 0.0
        %1054 = vmatpush1.msra.mxu0 0.0
        %1055 = vmatprep.subr.mxu0 0.0
        %1056 = vmatpush1.msra.mxu0 0.0
        %1057 = vmatprep.subr.mxu0 0.0
        %1058 = vmatpush1.msra.mxu0 0.0
        %1059 = vmatprep.subr.mxu0 0.0
        %1060 = vmatpush1.msra.mxu0 0.0
        %1061 = vmatprep.subr.mxu0 0.0
        %1062 = vmatpush1.msra.mxu0 0.0
        %1063 = vmatprep.subr.mxu0 0.0
        %1064 = vmatpush1.msra.mxu0 0.0
        %1065 = vmatprep.subr.mxu0 0.0
        %1066 = vmatpush1.msra.mxu0 0.0
        %1067 = vmatprep.subr.mxu0 0.0
        %1068 = vmatpush1.msra.mxu0 0.0
        %1069 = vmatprep.subr.mxu0 0.0
        %1070 = vmatpush1.msra.mxu0 0.0
        %1071 = vmatprep.subr.mxu0 0.0
        %1072 = vmatpush1.msra.mxu0 0.0
        %1073 = vmatprep.subr.mxu0 0.0
        %1074 = vmatpush1.msra.mxu0 0.0
        %1075 = vmatprep.subr.mxu0 0.0
        %1076 = vmatpush1.msra.mxu0 0.0
        %1077 = vmatprep.subr.mxu0 0.0
        %1078 = vmatpush1.msra.mxu0 0.0
        %1079 = vmatprep.subr.mxu0 0.0
        %1080 = vmatpush1.msra.mxu0 0.0
        %1081 = vmatprep.subr.mxu0 0.0
        %1082 = vmatpush1.msra.mxu0 0.0
        %1083 = vmatprep.subr.mxu0 0.0
        %1084 = vmatpush1.msra.mxu0 0.0
        %1085 = vmatprep.subr.mxu0 0.0
        %1086 = vmatpush1.msra.mxu0 0.0
        %1087 = vmatprep.subr.mxu0 0.0
        %1088 = vmatpush1.msra.mxu0 0.0
        %1089 = vmatprep.subr.mxu0 0.0
        %1090 = vmatpush1.msra.mxu0 0.0
        %1091 = vmatprep.mubr.f32.mxu0 0.0
        %1092 = vmatmul.mubr.f32.gmra.mrb[0].mxu0 %v1025
        %v1093 = vpop.f32.mrb[0].mxu0
        %v1094 = vadd.f32 0.0, %v1093
        %v1095 = vpop.f32.mrb[0].mxu0
        %1096 = vdwg.mxu0
        %v1098 = vsel %vm769, %v1094, 0
        %1100 = vmatprep.subr.mxu0 0.0
        %1101 = vmatpush1.msra.mxu0 %v756
        %1102 = vmatprep.subr.mxu0 0.0
        %1103 = vmatpush1.msra.mxu0 0.0
        %1104 = vmatprep.subr.mxu0 0.0
        %1105 = vmatpush1.msra.mxu0 0.0
        %1106 = vmatprep.subr.mxu0 0.0
        %1107 = vmatpush1.msra.mxu0 0.0
        %1108 = vmatprep.subr.mxu0 0.0
        %1109 = vmatpush1.msra.mxu0 0.0
        %1110 = vmatprep.subr.mxu0 0.0
        %1111 = vmatpush1.msra.mxu0 0.0
        %1112 = vmatprep.subr.mxu0 0.0
        %1113 = vmatpush1.msra.mxu0 0.0
        %1114 = vmatprep.subr.mxu0 0.0
        %1115 = vmatpush1.msra.mxu0 0.0
        %1116 = vmatprep.subr.mxu0 0.0
        %1117 = vmatpush1.msra.mxu0 0.0
        %1118 = vmatprep.subr.mxu0 0.0
        %1119 = vmatpush1.msra.mxu0 0.0
        %1120 = vmatprep.subr.mxu0 0.0
        %1121 = vmatpush1.msra.mxu0 0.0
        %1122 = vmatprep.subr.mxu0 0.0
        %1123 = vmatpush1.msra.mxu0 0.0
        %1124 = vmatprep.subr.mxu0 0.0
        %1125 = vmatpush1.msra.mxu0 0.0
        %1126 = vmatprep.subr.mxu0 0.0
        %1127 = vmatpush1.msra.mxu0 0.0
        %1128 = vmatprep.subr.mxu0 0.0
        %1129 = vmatpush1.msra.mxu0 0.0
        %1130 = vmatprep.subr.mxu0 0.0
        %1131 = vmatpush1.msra.mxu0 0.0
        %1132 = vmatprep.subr.mxu0 0.0
        %1133 = vmatpush1.msra.mxu0 0.0
        %1134 = vmatprep.subr.mxu0 0.0
        %1135 = vmatpush1.msra.mxu0 0.0
        %1136 = vmatprep.subr.mxu0 0.0
        %1137 = vmatpush1.msra.mxu0 0.0
        %1138 = vmatprep.subr.mxu0 0.0
        %1139 = vmatpush1.msra.mxu0 0.0
        %1140 = vmatprep.subr.mxu0 0.0
        %1141 = vmatpush1.msra.mxu0 0.0
        %1142 = vmatprep.subr.mxu0 0.0
        %1143 = vmatpush1.msra.mxu0 0.0
        %1144 = vmatprep.subr.mxu0 0.0
        %1145 = vmatpush1.msra.mxu0 0.0
        %1146 = vmatprep.subr.mxu0 0.0
        %1147 = vmatpush1.msra.mxu0 0.0
        %1148 = vmatprep.subr.mxu0 0.0
        %1149 = vmatpush1.msra.mxu0 0.0
        %1150 = vmatprep.subr.mxu0 0.0
        %1151 = vmatpush1.msra.mxu0 0.0
        %1152 = vmatprep.subr.mxu0 0.0
        %1153 = vmatpush1.msra.mxu0 0.0
        %1154 = vmatprep.subr.mxu0 0.0
        %1155 = vmatpush1.msra.mxu0 0.0
        %1156 = vmatprep.subr.mxu0 0.0
        %1157 = vmatpush1.msra.mxu0 0.0
        %1158 = vmatprep.subr.mxu0 0.0
        %1159 = vmatpush1.msra.mxu0 0.0
        %1160 = vmatprep.subr.mxu0 0.0
        %1161 = vmatpush1.msra.mxu0 0.0
        %1162 = vmatprep.subr.mxu0 0.0
        %1163 = vmatpush1.msra.mxu0 0.0
        %1164 = vmatprep.mubr.f32.mxu0 0.0
        %1165 = vmatmul.mubr.f32.gmra.mrb[0].mxu0 %v1098
        %v1166 = vpop.f32.mrb[0].mxu0
        %v1167 = vadd.f32 0.0, %v1166
        %v1168 = vpop.f32.mrb[0].mxu0
        %1169 = vdwg.mxu0
        %v1171 = vsel %vm769, %v929, 0
        %1173 = vmatprep.subr.mxu0 0.0
        %1174 = vmatpush1.msra.mxu0 %v755
        %1175 = vmatprep.subr.mxu0 0.0
        %1176 = vmatpush1.msra.mxu0 0.0
        %1177 = vmatprep.subr.mxu0 0.0
        %1178 = vmatpush1.msra.mxu0 0.0
        %1179 = vmatprep.subr.mxu0 0.0
        %1180 = vmatpush1.msra.mxu0 0.0
        %1181 = vmatprep.subr.mxu0 0.0
        %1182 = vmatpush1.msra.mxu0 0.0
        %1183 = vmatprep.subr.mxu0 0.0
        %1184 = vmatpush1.msra.mxu0 0.0
        %1185 = vmatprep.subr.mxu0 0.0
        %1186 = vmatpush1.msra.mxu0 0.0
        %1187 = vmatprep.subr.mxu0 0.0
        %1188 = vmatpush1.msra.mxu0 0.0
        %1189 = vmatprep.subr.mxu0 0.0
        %1190 = vmatpush1.msra.mxu0 0.0
        %1191 = vmatprep.subr.mxu0 0.0
        %1192 = vmatpush1.msra.mxu0 0.0
        %1193 = vmatprep.subr.mxu0 0.0
        %1194 = vmatpush1.msra.mxu0 0.0
        %1195 = vmatprep.subr.mxu0 0.0
        %1196 = vmatpush1.msra.mxu0 0.0
        %1197 = vmatprep.subr.mxu0 0.0
        %1198 = vmatpush1.msra.mxu0 0.0
        %1199 = vmatprep.subr.mxu0 0.0
        %1200 = vmatpush1.msra.mxu0 0.0
        %1201 = vmatprep.subr.mxu0 0.0
        %1202 = vmatpush1.msra.mxu0 0.0
        %1203 = vmatprep.subr.mxu0 0.0
        %1204 = vmatpush1.msra.mxu0 0.0
        %1205 = vmatprep.subr.mxu0 0.0
        %1206 = vmatpush1.msra.mxu0 0.0
        %1207 = vmatprep.subr.mxu0 0.0
        %1208 = vmatpush1.msra.mxu0 0.0
        %1209 = vmatprep.subr.mxu0 0.0
        %1210 = vmatpush1.msra.mxu0 0.0
        %1211 = vmatprep.subr.mxu0 0.0
        %1212 = vmatpush1.msra.mxu0 0.0
        %1213 = vmatprep.subr.mxu0 0.0
        %1214 = vmatpush1.msra.mxu0 0.0
        %1215 = vmatprep.subr.mxu0 0.0
        %1216 = vmatpush1.msra.mxu0 0.0
        %1217 = vmatprep.subr.mxu0 0.0
        %1218 = vmatpush1.msra.mxu0 0.0
        %1219 = vmatprep.subr.mxu0 0.0
        %1220 = vmatpush1.msra.mxu0 0.0
        %1221 = vmatprep.subr.mxu0 0.0
        %1222 = vmatpush1.msra.mxu0 0.0
        %1223 = vmatprep.subr.mxu0 0.0
        %1224 = vmatpush1.msra.mxu0 0.0
        %1225 = vmatprep.subr.mxu0 0.0
        %1226 = vmatpush1.msra.mxu0 0.0
        %1227 = vmatprep.subr.mxu0 0.0
        %1228 = vmatpush1.msra.mxu0 0.0
        %1229 = vmatprep.subr.mxu0 0.0
        %1230 = vmatpush1.msra.mxu0 0.0
        %1231 = vmatprep.subr.mxu0 0.0
        %1232 = vmatpush1.msra.mxu0 0.0
        %1233 = vmatprep.subr.mxu0 0.0
        %1234 = vmatpush1.msra.mxu0 0.0
        %1235 = vmatprep.subr.mxu0 0.0
        %1236 = vmatpush1.msra.mxu0 0.0
        %1237 = vmatprep.mubr.f32.mxu0 0.0
        %1238 = vmatmul.mubr.f32.gmra.mrb[0].mxu0 %v1171
        %v1239 = vpop.f32.mrb[0].mxu0
        %v1240 = vadd.f32 %v1167, %v1239
        %v1241 = vpop.f32.mrb[0].mxu0
        %1242 = vdwg.mxu0
        %1243 = vrot.lane.b32.xlu0 %v759, 112
        %v1244 = vpop.permute.xlu0 %1243
        %1245 = vrot.lane.b32.xlu0 %v752, 80
        %v1246 = vpop.permute.xlu0 %1245
        %v1247 = vsel %vm769, %v1244, 0
        %v1249 = vsel %vm769, %v1246, 0
        %1251 = vmatprep.subr.mxu0 0.0
        %1252 = vmatpush1.xpose.msra.mxu0 %v1249
        %1253 = vmatprep.subr.mxu0 0.0
        %1254 = vmatpush1.xpose.msra.mxu0 0.0
        %1255 = vmatprep.subr.mxu0 0.0
        %1256 = vmatpush1.xpose.msra.mxu0 0.0
        %1257 = vmatprep.subr.mxu0 0.0
        %1258 = vmatpush1.xpose.msra.mxu0 0.0
        %1259 = vmatprep.subr.mxu0 0.0
        %1260 = vmatpush1.xpose.msra.mxu0 0.0
        %1261 = vmatprep.subr.mxu0 0.0
        %1262 = vmatpush1.xpose.msra.mxu0 0.0
        %1263 = vmatprep.subr.mxu0 0.0
        %1264 = vmatpush1.xpose.msra.mxu0 0.0
        %1265 = vmatprep.subr.mxu0 0.0
        %1266 = vmatpush1.xpose.msra.mxu0 0.0
        %1267 = vmatprep.subr.mxu0 0.0
        %1268 = vmatpush1.xpose.msra.mxu0 0.0
        %1269 = vmatprep.subr.mxu0 0.0
        %1270 = vmatpush1.xpose.msra.mxu0 0.0
        %1271 = vmatprep.subr.mxu0 0.0
        %1272 = vmatpush1.xpose.msra.mxu0 0.0
        %1273 = vmatprep.subr.mxu0 0.0
        %1274 = vmatpush1.xpose.msra.mxu0 0.0
        %1275 = vmatprep.subr.mxu0 0.0
        %1276 = vmatpush1.xpose.msra.mxu0 0.0
        %1277 = vmatprep.subr.mxu0 0.0
        %1278 = vmatpush1.xpose.msra.mxu0 0.0
        %1279 = vmatprep.subr.mxu0 0.0
        %1280 = vmatpush1.xpose.msra.mxu0 0.0
        %1281 = vmatprep.subr.mxu0 0.0
        %1282 = vmatpush1.xpose.msra.mxu0 0.0
        %1283 = vmatprep.subr.mxu0 0.0
        %1284 = vmatpush1.xpose.msra.mxu0 0.0
        %1285 = vmatprep.subr.mxu0 0.0
        %1286 = vmatpush1.xpose.msra.mxu0 0.0
        %1287 = vmatprep.subr.mxu0 0.0
        %1288 = vmatpush1.xpose.msra.mxu0 0.0
        %1289 = vmatprep.subr.mxu0 0.0
        %1290 = vmatpush1.xpose.msra.mxu0 0.0
        %1291 = vmatprep.subr.mxu0 0.0
        %1292 = vmatpush1.xpose.msra.mxu0 0.0
        %1293 = vmatprep.subr.mxu0 0.0
        %1294 = vmatpush1.xpose.msra.mxu0 0.0
        %1295 = vmatprep.subr.mxu0 0.0
        %1296 = vmatpush1.xpose.msra.mxu0 0.0
        %1297 = vmatprep.subr.mxu0 0.0
        %1298 = vmatpush1.xpose.msra.mxu0 0.0
        %1299 = vmatprep.subr.mxu0 0.0
        %1300 = vmatpush1.xpose.msra.mxu0 0.0
        %1301 = vmatprep.subr.mxu0 0.0
        %1302 = vmatpush1.xpose.msra.mxu0 0.0
        %1303 = vmatprep.subr.mxu0 0.0
        %1304 = vmatpush1.xpose.msra.mxu0 0.0
        %1305 = vmatprep.subr.mxu0 0.0
        %1306 = vmatpush1.xpose.msra.mxu0 0.0
        %1307 = vmatprep.subr.mxu0 0.0
        %1308 = vmatpush1.xpose.msra.mxu0 0.0
        %1309 = vmatprep.subr.mxu0 0.0
        %1310 = vmatpush1.xpose.msra.mxu0 0.0
        %1311 = vmatprep.subr.mxu0 0.0
        %1312 = vmatpush1.xpose.msra.mxu0 0.0
        %1313 = vmatprep.subr.mxu0 0.0
        %1314 = vmatpush1.xpose.msra.mxu0 0.0
        %1315 = vmatprep.mubr.f32.mxu0 0.0
        %1316 = vmatmul.mubr.f32.gmra.mrb[0].mxu0 %v1247
        %v1317 = vpop.f32.mrb[0].mxu0
        %v1318 = vadd.f32 %v764, %v1317
        %v1319 = vpop.f32.mrb[0].mxu0
        %1320 = vdwg.mxu0
        %v1321 = vsel %vm769, %v1318, -inf
        %1322 = vmax.xlane.f32.xlu0 %v1321
        %v1323 = vpop.xlane.xlu0 %1322
        %v1324 = vsub.f32 %v1318, %v1323
        %v1325 = vmul.f32 %v1324, 1.442695
        %v1326 = vpow.pop %v1325
        %v1327 = vsel %vm769, %v1326, 0.0
        %1328 = vadd.xlane.f32.xlu0 %v1327
        %v1329 = vpop.xlane.xlu0 %1328
        %v1330 = vrcp.pop %v1329
        %v1331 = vmul.f32 %v1326, %v1330
        %1332 = vrot.lane.b32.xlu0 %v752, 48
        %v1333 = vpop.permute.xlu0 %1332
        %v1336 = vsel %vm769, %v1331, 0
        %1338 = vmatprep.subr.mxu0 0.0
        %1339 = vmatpush1.msra.mxu0 %v1333
        %1340 = vmatprep.subr.mxu0 0.0
        %1341 = vmatpush1.msra.mxu0 0.0
        %1342 = vmatprep.subr.mxu0 0.0
        %1343 = vmatpush1.msra.mxu0 0.0
        %1344 = vmatprep.subr.mxu0 0.0
        %1345 = vmatpush1.msra.mxu0 0.0
        %1346 = vmatprep.subr.mxu0 0.0
        %1347 = vmatpush1.msra.mxu0 0.0
        %1348 = vmatprep.subr.mxu0 0.0
        %1349 = vmatpush1.msra.mxu0 0.0
        %1350 = vmatprep.subr.mxu0 0.0
        %1351 = vmatpush1.msra.mxu0 0.0
        %1352 = vmatprep.subr.mxu0 0.0
        %1353 = vmatpush1.msra.mxu0 0.0
        %1354 = vmatprep.subr.mxu0 0.0
        %1355 = vmatpush1.msra.mxu0 0.0
        %1356 = vmatprep.subr.mxu0 0.0
        %1357 = vmatpush1.msra.mxu0 0.0
        %1358 = vmatprep.subr.mxu0 0.0
        %1359 = vmatpush1.msra.mxu0 0.0
        %1360 = vmatprep.subr.mxu0 0.0
        %1361 = vmatpush1.msra.mxu0 0.0
        %1362 = vmatprep.subr.mxu0 0.0
        %1363 = vmatpush1.msra.mxu0 0.0
        %1364 = vmatprep.subr.mxu0 0.0
        %1365 = vmatpush1.msra.mxu0 0.0
        %1366 = vmatprep.subr.mxu0 0.0
        %1367 = vmatpush1.msra.mxu0 0.0
        %1368 = vmatprep.subr.mxu0 0.0
        %1369 = vmatpush1.msra.mxu0 0.0
        %1370 = vmatprep.subr.mxu0 0.0
        %1371 = vmatpush1.msra.mxu0 0.0
        %1372 = vmatprep.subr.mxu0 0.0
        %1373 = vmatpush1.msra.mxu0 0.0
        %1374 = vmatprep.subr.mxu0 0.0
        %1375 = vmatpush1.msra.mxu0 0.0
        %1376 = vmatprep.subr.mxu0 0.0
        %1377 = vmatpush1.msra.mxu0 0.0
        %1378 = vmatprep.subr.mxu0 0.0
        %1379 = vmatpush1.msra.mxu0 0.0
        %1380 = vmatprep.subr.mxu0 0.0
        %1381 = vmatpush1.msra.mxu0 0.0
        %1382 = vmatprep.subr.mxu0 0.0
        %1383 = vmatpush1.msra.mxu0 0.0
        %1384 = vmatprep.subr.mxu0 0.0
        %1385 = vmatpush1.msra.mxu0 0.0
        %1386 = vmatprep.subr.mxu0 0.0
        %1387 = vmatpush1.msra.mxu0 0.0
        %1388 = vmatprep.subr.mxu0 0.0
        %1389 = vmatpush1.msra.mxu0 0.0
        %1390 = vmatprep.subr.mxu0 0.0
        %1391 = vmatpush1.msra.mxu0 0.0
        %1392 = vmatprep.subr.mxu0 0.0
        %1393 = vmatpush1.msra.mxu0 0.0
        %1394 = vmatprep.subr.mxu0 0.0
        %1395 = vmatpush1.msra.mxu0 0.0
        %1396 = vmatprep.subr.mxu0 0.0
        %1397 = vmatpush1.msra.mxu0 0.0
        %1398 = vmatprep.subr.mxu0 0.0
        %1399 = vmatpush1.msra.mxu0 0.0
        %1400 = vmatprep.subr.mxu0 0.0
        %1401 = vmatpush1.msra.mxu0 0.0
        %1402 = vmatprep.mubr.f32.mxu0 0.0
        %1403 = vmatmul.mubr.f32.gmra.mrb[0].mxu0 %v1336
        %v1404 = vpop.f32.mrb[0].mxu0
        %v1405 = vadd.f32 0.0, %v1404
        %v1406 = vpop.f32.mrb[0].mxu0
        %1407 = vdwg.mxu0
        %v1409 = vsel %vm769, %v1405, 0
        %1411 = vmatprep.subr.mxu0 0.0
        %1412 = vmatpush1.msra.mxu0 %v757
        %1413 = vmatprep.subr.mxu0 0.0
        %1414 = vmatpush1.msra.mxu0 0.0
        %1415 = vmatprep.subr.mxu0 0.0
        %1416 = vmatpush1.msra.mxu0 0.0
        %1417 = vmatprep.subr.mxu0 0.0
        %1418 = vmatpush1.msra.mxu0 0.0
        %1419 = vmatprep.subr.mxu0 0.0
        %1420 = vmatpush1.msra.mxu0 0.0
        %1421 = vmatprep.subr.mxu0 0.0
        %1422 = vmatpush1.msra.mxu0 0.0
        %1423 = vmatprep.subr.mxu0 0.0
        %1424 = vmatpush1.msra.mxu0 0.0
        %1425 = vmatprep.subr.mxu0 0.0
        %1426 = vmatpush1.msra.mxu0 0.0
        %1427 = vmatprep.subr.mxu0 0.0
        %1428 = vmatpush1.msra.mxu0 0.0
        %1429 = vmatprep.subr.mxu0 0.0
        %1430 = vmatpush1.msra.mxu0 0.0
        %1431 = vmatprep.subr.mxu0 0.0
        %1432 = vmatpush1.msra.mxu0 0.0
        %1433 = vmatprep.subr.mxu0 0.0
        %1434 = vmatpush1.msra.mxu0 0.0
        %1435 = vmatprep.subr.mxu0 0.0
        %1436 = vmatpush1.msra.mxu0 0.0
        %1437 = vmatprep.subr.mxu0 0.0
        %1438 = vmatpush1.msra.mxu0 0.0
        %1439 = vmatprep.subr.mxu0 0.0
        %1440 = vmatpush1.msra.mxu0 0.0
        %1441 = vmatprep.subr.mxu0 0.0
        %1442 = vmatpush1.msra.mxu0 0.0
        %1443 = vmatprep.subr.mxu0 0.0
        %1444 = vmatpush1.msra.mxu0 0.0
        %1445 = vmatprep.subr.mxu0 0.0
        %1446 = vmatpush1.msra.mxu0 0.0
        %1447 = vmatprep.subr.mxu0 0.0
        %1448 = vmatpush1.msra.mxu0 0.0
        %1449 = vmatprep.subr.mxu0 0.0
        %1450 = vmatpush1.msra.mxu0 0.0
        %1451 = vmatprep.subr.mxu0 0.0
        %1452 = vmatpush1.msra.mxu0 0.0
        %1453 = vmatprep.subr.mxu0 0.0
        %1454 = vmatpush1.msra.mxu0 0.0
        %1455 = vmatprep.subr.mxu0 0.0
        %1456 = vmatpush1.msra.mxu0 0.0
        %1457 = vmatprep.subr.mxu0 0.0
        %1458 = vmatpush1.msra.mxu0 0.0
        %1459 = vmatprep.subr.mxu0 0.0
        %1460 = vmatpush1.msra.mxu0 0.0
        %1461 = vmatprep.subr.mxu0 0.0
        %1462 = vmatpush1.msra.mxu0 0.0
        %1463 = vmatprep.subr.mxu0 0.0
        %1464 = vmatpush1.msra.mxu0 0.0
        %1465 = vmatprep.subr.mxu0 0.0
        %1466 = vmatpush1.msra.mxu0 0.0
        %1467 = vmatprep.subr.mxu0 0.0
        %1468 = vmatpush1.msra.mxu0 0.0
        %1469 = vmatprep.subr.mxu0 0.0
        %1470 = vmatpush1.msra.mxu0 0.0
        %1471 = vmatprep.subr.mxu0 0.0
        %1472 = vmatpush1.msra.mxu0 0.0
        %1473 = vmatprep.subr.mxu0 0.0
        %1474 = vmatpush1.msra.mxu0 0.0
        %1475 = vmatprep.mubr.f32.mxu0 0.0
        %1476 = vmatmul.mubr.f32.gmra.mrb[0].mxu0 %v1409
        %v1477 = vpop.f32.mrb[0].mxu0
        %v1478 = vadd.f32 0.0, %v1477
        %v1479 = vpop.f32.mrb[0].mxu0
        %1480 = vdwg.mxu0
        %v1481 = vadd.f32 %v1240, %v1478
        %1482 = vrot.lane.b32.xlu0 %v759, 104
        %v1483 = vpop.permute.xlu0 %1482
        %1484 = vrot.lane.b32.xlu0 %v752, 72
        %v1485 = vpop.permute.xlu0 %1484
        %v1486 = vsel %vm769, %v1483, 0
        %v1488 = vsel %vm769, %v1485, 0
        %1490 = vmatprep.subr.mxu0 0.0
        %1491 = vmatpush1.xpose.msra.mxu0 %v1488
        %1492 = vmatprep.subr.mxu0 0.0
        %1493 = vmatpush1.xpose.msra.mxu0 0.0
        %1494 = vmatprep.subr.mxu0 0.0
        %1495 = vmatpush1.xpose.msra.mxu0 0.0
        %1496 = vmatprep.subr.mxu0 0.0
        %1497 = vmatpush1.xpose.msra.mxu0 0.0
        %1498 = vmatprep.subr.mxu0 0.0
        %1499 = vmatpush1.xpose.msra.mxu0 0.0
        %1500 = vmatprep.subr.mxu0 0.0
        %1501 = vmatpush1.xpose.msra.mxu0 0.0
        %1502 = vmatprep.subr.mxu0 0.0
        %1503 = vmatpush1.xpose.msra.mxu0 0.0
        %1504 = vmatprep.subr.mxu0 0.0
        %1505 = vmatpush1.xpose.msra.mxu0 0.0
        %1506 = vmatprep.subr.mxu0 0.0
        %1507 = vmatpush1.xpose.msra.mxu0 0.0
        %1508 = vmatprep.subr.mxu0 0.0
        %1509 = vmatpush1.xpose.msra.mxu0 0.0
        %1510 = vmatprep.subr.mxu0 0.0
        %1511 = vmatpush1.xpose.msra.mxu0 0.0
        %1512 = vmatprep.subr.mxu0 0.0
        %1513 = vmatpush1.xpose.msra.mxu0 0.0
        %1514 = vmatprep.subr.mxu0 0.0
        %1515 = vmatpush1.xpose.msra.mxu0 0.0
        %1516 = vmatprep.subr.mxu0 0.0
        %1517 = vmatpush1.xpose.msra.mxu0 0.0
        %1518 = vmatprep.subr.mxu0 0.0
        %1519 = vmatpush1.xpose.msra.mxu0 0.0
        %1520 = vmatprep.subr.mxu0 0.0
        %1521 = vmatpush1.xpose.msra.mxu0 0.0
        %1522 = vmatprep.subr.mxu0 0.0
        %1523 = vmatpush1.xpose.msra.mxu0 0.0
        %1524 = vmatprep.subr.mxu0 0.0
        %1525 = vmatpush1.xpose.msra.mxu0 0.0
        %1526 = vmatprep.subr.mxu0 0.0
        %1527 = vmatpush1.xpose.msra.mxu0 0.0
        %1528 = vmatprep.subr.mxu0 0.0
        %1529 = vmatpush1.xpose.msra.mxu0 0.0
        %1530 = vmatprep.subr.mxu0 0.0
        %1531 = vmatpush1.xpose.msra.mxu0 0.0
        %1532 = vmatprep.subr.mxu0 0.0
        %1533 = vmatpush1.xpose.msra.mxu0 0.0
        %1534 = vmatprep.subr.mxu0 0.0
        %1535 = vmatpush1.xpose.msra.mxu0 0.0
        %1536 = vmatprep.subr.mxu0 0.0
        %1537 = vmatpush1.xpose.msra.mxu0 0.0
        %1538 = vmatprep.subr.mxu0 0.0
        %1539 = vmatpush1.xpose.msra.mxu0 0.0
        %1540 = vmatprep.subr.mxu0 0.0
        %1541 = vmatpush1.xpose.msra.mxu0 0.0
        %1542 = vmatprep.subr.mxu0 0.0
        %1543 = vmatpush1.xpose.msra.mxu0 0.0
        %1544 = vmatprep.subr.mxu0 0.0
        %1545 = vmatpush1.xpose.msra.mxu0 0.0
        %1546 = vmatprep.subr.mxu0 0.0
        %1547 = vmatpush1.xpose.msra.mxu0 0.0
        %1548 = vmatprep.subr.mxu0 0.0
        %1549 = vmatpush1.xpose.msra.mxu0 0.0
        %1550 = vmatprep.subr.mxu0 0.0
        %1551 = vmatpush1.xpose.msra.mxu0 0.0
        %1552 = vmatprep.subr.mxu0 0.0
        %1553 = vmatpush1.xpose.msra.mxu0 0.0
        %1554 = vmatprep.mubr.f32.mxu0 0.0
        %1555 = vmatmul.mubr.f32.gmra.mrb[0].mxu0 %v1486
        %v1556 = vpop.f32.mrb[0].mxu0
        %v1557 = vadd.f32 %v764, %v1556
        %v1558 = vpop.f32.mrb[0].mxu0
        %1559 = vdwg.mxu0
        %v1560 = vsel %vm769, %v1557, -inf
        %1561 = vmax.xlane.f32.xlu0 %v1560
        %v1562 = vpop.xlane.xlu0 %1561
        %v1563 = vsub.f32 %v1557, %v1562
        %v1564 = vmul.f32 %v1563, 1.442695
        %v1565 = vpow.pop %v1564
        %v1566 = vsel %vm769, %v1565, 0.0
        %1567 = vadd.xlane.f32.xlu0 %v1566
        %v1568 = vpop.xlane.xlu0 %1567
        %v1569 = vrcp.pop %v1568
        %v1570 = vmul.f32 %v1565, %v1569
        %1571 = vrot.lane.b32.xlu0 %v752, 40
        %v1572 = vpop.permute.xlu0 %1571
        %v1575 = vsel %vm769, %v1570, 0
        %1577 = vmatprep.subr.mxu0 0.0
        %1578 = vmatpush1.msra.mxu0 %v1572
        %1579 = vmatprep.subr.mxu0 0.0
        %1580 = vmatpush1.msra.mxu0 0.0
        %1581 = vmatprep.subr.mxu0 0.0
        %1582 = vmatpush1.msra.mxu0 0.0
        %1583 = vmatprep.subr.mxu0 0.0
        %1584 = vmatpush1.msra.mxu0 0.0
        %1585 = vmatprep.subr.mxu0 0.0
        %1586 = vmatpush1.msra.mxu0 0.0
        %1587 = vmatprep.subr.mxu0 0.0
        %1588 = vmatpush1.msra.mxu0 0.0
        %1589 = vmatprep.subr.mxu0 0.0
        %1590 = vmatpush1.msra.mxu0 0.0
        %1591 = vmatprep.subr.mxu0 0.0
        %1592 = vmatpush1.msra.mxu0 0.0
        %1593 = vmatprep.subr.mxu0 0.0
        %1594 = vmatpush1.msra.mxu0 0.0
        %1595 = vmatprep.subr.mxu0 0.0
        %1596 = vmatpush1.msra.mxu0 0.0
        %1597 = vmatprep.subr.mxu0 0.0
        %1598 = vmatpush1.msra.mxu0 0.0
        %1599 = vmatprep.subr.mxu0 0.0
        %1600 = vmatpush1.msra.mxu0 0.0
        %1601 = vmatprep.subr.mxu0 0.0
        %1602 = vmatpush1.msra.mxu0 0.0
        %1603 = vmatprep.subr.mxu0 0.0
        %1604 = vmatpush1.msra.mxu0 0.0
        %1605 = vmatprep.subr.mxu0 0.0
        %1606 = vmatpush1.msra.mxu0 0.0
        %1607 = vmatprep.subr.mxu0 0.0
        %1608 = vmatpush1.msra.mxu0 0.0
        %1609 = vmatprep.subr.mxu0 0.0
        %1610 = vmatpush1.msra.mxu0 0.0
        %1611 = vmatprep.subr.mxu0 0.0
        %1612 = vmatpush1.msra.mxu0 0.0
        %1613 = vmatprep.subr.mxu0 0.0
        %1614 = vmatpush1.msra.mxu0 0.0
        %1615 = vmatprep.subr.mxu0 0.0
        %1616 = vmatpush1.msra.mxu0 0.0
        %1617 = vmatprep.subr.mxu0 0.0
        %1618 = vmatpush1.msra.mxu0 0.0
        %1619 = vmatprep.subr.mxu0 0.0
        %1620 = vmatpush1.msra.mxu0 0.0
        %1621 = vmatprep.subr.mxu0 0.0
        %1622 = vmatpush1.msra.mxu0 0.0
        %1623 = vmatprep.subr.mxu0 0.0
        %1624 = vmatpush1.msra.mxu0 0.0
        %1625 = vmatprep.subr.mxu0 0.0
        %1626 = vmatpush1.msra.mxu0 0.0
        %1627 = vmatprep.subr.mxu0 0.0
        %1628 = vmatpush1.msra.mxu0 0.0
        %1629 = vmatprep.subr.mxu0 0.0
        %1630 = vmatpush1.msra.mxu0 0.0
        %1631 = vmatprep.subr.mxu0 0.0
        %1632 = vmatpush1.msra.mxu0 0.0
        %1633 = vmatprep.subr.mxu0 0.0
        %1634 = vmatpush1.msra.mxu0 0.0
        %1635 = vmatprep.subr.mxu0 0.0
        %1636 = vmatpush1.msra.mxu0 0.0
        %1637 = vmatprep.subr.mxu0 0.0
        %1638 = vmatpush1.msra.mxu0 0.0
        %1639 = vmatprep.subr.mxu0 0.0
        %1640 = vmatpush1.msra.mxu0 0.0
        %1641 = vmatprep.mubr.f32.mxu0 0.0
        %1642 = vmatmul.mubr.f32.gmra.mrb[0].mxu0 %v1575
        %v1643 = vpop.f32.mrb[0].mxu0
        %v1644 = vadd.f32 0.0, %v1643
        %v1645 = vpop.f32.mrb[0].mxu0
        %1646 = vdwg.mxu0
        %v1648 = vsel %vm769, %v1644, 0
        %1650 = vmatprep.subr.mxu0 0.0
        %1651 = vmatpush1.msra.mxu0 %v758
        %1652 = vmatprep.subr.mxu0 0.0
        %1653 = vmatpush1.msra.mxu0 0.0
        %1654 = vmatprep.subr.mxu0 0.0
        %1655 = vmatpush1.msra.mxu0 0.0
        %1656 = vmatprep.subr.mxu0 0.0
        %1657 = vmatpush1.msra.mxu0 0.0
        %1658 = vmatprep.subr.mxu0 0.0
        %1659 = vmatpush1.msra.mxu0 0.0
        %1660 = vmatprep.subr.mxu0 0.0
        %1661 = vmatpush1.msra.mxu0 0.0
        %1662 = vmatprep.subr.mxu0 0.0
        %1663 = vmatpush1.msra.mxu0 0.0
        %1664 = vmatprep.subr.mxu0 0.0
        %1665 = vmatpush1.msra.mxu0 0.0
        %1666 = vmatprep.subr.mxu0 0.0
        %1667 = vmatpush1.msra.mxu0 0.0
        %1668 = vmatprep.subr.mxu0 0.0
        %1669 = vmatpush1.msra.mxu0 0.0
        %1670 = vmatprep.subr.mxu0 0.0
        %1671 = vmatpush1.msra.mxu0 0.0
        %1672 = vmatprep.subr.mxu0 0.0
        %1673 = vmatpush1.msra.mxu0 0.0
        %1674 = vmatprep.subr.mxu0 0.0
        %1675 = vmatpush1.msra.mxu0 0.0
        %1676 = vmatprep.subr.mxu0 0.0
        %1677 = vmatpush1.msra.mxu0 0.0
        %1678 = vmatprep.subr.mxu0 0.0
        %1679 = vmatpush1.msra.mxu0 0.0
        %1680 = vmatprep.subr.mxu0 0.0
        %1681 = vmatpush1.msra.mxu0 0.0
        %1682 = vmatprep.subr.mxu0 0.0
        %1683 = vmatpush1.msra.mxu0 0.0
        %1684 = vmatprep.subr.mxu0 0.0
        %1685 = vmatpush1.msra.mxu0 0.0
        %1686 = vmatprep.subr.mxu0 0.0
        %1687 = vmatpush1.msra.mxu0 0.0
        %1688 = vmatprep.subr.mxu0 0.0
        %1689 = vmatpush1.msra.mxu0 0.0
        %1690 = vmatprep.subr.mxu0 0.0
        %1691 = vmatpush1.msra.mxu0 0.0
        %1692 = vmatprep.subr.mxu0 0.0
        %1693 = vmatpush1.msra.mxu0 0.0
        %1694 = vmatprep.subr.mxu0 0.0
        %1695 = vmatpush1.msra.mxu0 0.0
        %1696 = vmatprep.subr.mxu0 0.0
        %1697 = vmatpush1.msra.mxu0 0.0
        %1698 = vmatprep.subr.mxu0 0.0
        %1699 = vmatpush1.msra.mxu0 0.0
        %1700 = vmatprep.subr.mxu0 0.0
        %1701 = vmatpush1.msra.mxu0 0.0
        %1702 = vmatprep.subr.mxu0 0.0
        %1703 = vmatpush1.msra.mxu0 0.0
        %1704 = vmatprep.subr.mxu0 0.0
        %1705 = vmatpush1.msra.mxu0 0.0
        %1706 = vmatprep.subr.mxu0 0.0
        %1707 = vmatpush1.msra.mxu0 0.0
        %1708 = vmatprep.subr.mxu0 0.0
        %1709 = vmatpush1.msra.mxu0 0.0
        %1710 = vmatprep.subr.mxu0 0.0
        %1711 = vmatpush1.msra.mxu0 0.0
        %1712 = vmatprep.subr.mxu0 0.0
        %1713 = vmatpush1.msra.mxu0 0.0
        %1714 = vmatprep.mubr.f32.mxu0 0.0
        %1715 = vmatmul.mubr.f32.gmra.mrb[0].mxu0 %v1648
        %v1716 = vpop.f32.mrb[0].mxu0
        %v1717 = vadd.f32 0.0, %v1716
        %v1718 = vpop.f32.mrb[0].mxu0
        %1719 = vdwg.mxu0
        %v1720 = vadd.f32 %v1481, %v1717
        %v1721 = vld [vmem:[%s7] sm:$0x1]
        %v1723 = vlaneseq
        %v1724 = vshrl.u32 %v1723, 7
        %v1725 = vsub.s32 0, %v1724
        %v1726 = vrot.slane %v1721, %v1725
        %v1728 = vadd.f32 %v1720, %v1726
        %v1729 = vadd.f32 %v1728, %v669
        %v1730 = vld [vmem:[%s8] sm:$0x1]
        %v1731 = vld [vmem:[%s9] sm:$0x1]
        %v1732 = vsel %vm641, %v1729, 0.0
        %1733 = vadd.xlane.f32.xlu0 %v1732
        %v1734 = vpop.xlane.xlu0 %1733
        %v1735 = vmul.f32 %v1734, %v645
        %v1736 = vsub.f32 %v1729, %v1735
        %v1737 = vmul.f32 %v1736, %v1736
        %v1738 = vsel %vm641, %v1737, 0.0
        %1739 = vadd.xlane.f32.xlu0 %v1738
        %v1740 = vpop.xlane.xlu0 %1739
        %v1741 = vmul.f32 %v1740, %v645
        %v1742 = vadd.f32 %v1741, 1e-12
        %v1743 = vrsqrt.pop %v1742
        %v1744 = vmul.f32 %v1736, %v1743
        %v1746 = vlaneseq
        %v1747 = vshrl.u32 %v1746, 7
        %v1748 = vsub.s32 0, %v1747
        %v1749 = vrot.slane %v1730, %v1748
        %v1751 = vmul.f32 %v1744, %v1749
        %v1753 = vlaneseq
        %v1754 = vshrl.u32 %v1753, 7
        %v1755 = vsub.s32 0, %v1754
        %v1756 = vrot.slane %v1731, %v1755
        %v1758 = vadd.f32 %v1751, %v1756
        %v1759 = vld [vmem:[%s10] sm:$0xff]
        %v1760 = vld [vmem:[%s10 + $0x8] sm:$0xff]
        %v1761 = vld [vmem:[%s10 + $0x10] sm:$0xff]
        %v1762 = vld [vmem:[%s10 + $0x18] sm:$0xff]
        %v1763 = vld [vmem:[%s11] sm:$0x1]
        %v1765 = vlaneseq
        %v1766 = vshrl.u32 %v1765, 7
        %v1767 = vsub.s32 0, %v1766
        %v1768 = vrot.slane %v1763, %v1767
        %v1771 = vsel %vm641, %v1758, 0
        %1773 = vmatprep.subr.mxu0 0.0
        %1774 = vmatpush1.msra.mxu0 %v1759
        %1775 = vmatprep.subr.mxu0 0.0
        %1776 = vmatpush1.msra.mxu0 %v1760
        %1777 = vmatprep.subr.mxu0 0.0
        %1778 = vmatpush1.msra.mxu0 %v1761
        %1779 = vmatprep.subr.mxu0 0.0
        %1780 = vmatpush1.msra.mxu0 %v1762
        %1781 = vmatprep.subr.mxu0 0.0
        %1782 = vmatpush1.msra.mxu0 0.0
        %1783 = vmatprep.subr.mxu0 0.0
        %1784 = vmatpush1.msra.mxu0 0.0
        %1785 = vmatprep.subr.mxu0 0.0
        %1786 = vmatpush1.msra.mxu0 0.0
        %1787 = vmatprep.subr.mxu0 0.0
        %1788 = vmatpush1.msra.mxu0 0.0
        %1789 = vmatprep.subr.mxu0 0.0
        %1790 = vmatpush1.msra.mxu0 0.0
        %1791 = vmatprep.subr.mxu0 0.0
        %1792 = vmatpush1.msra.mxu0 0.0
        %1793 = vmatprep.subr.mxu0 0.0
        %1794 = vmatpush1.msra.mxu0 0.0
        %1795 = vmatprep.subr.mxu0 0.0
        %1796 = vmatpush1.msra.mxu0 0.0
        %1797 = vmatprep.subr.mxu0 0.0
        %1798 = vmatpush1.msra.mxu0 0.0
        %1799 = vmatprep.subr.mxu0 0.0
        %1800 = vmatpush1.msra.mxu0 0.0
        %1801 = vmatprep.subr.mxu0 0.0
        %1802 = vmatpush1.msra.mxu0 0.0
        %1803 = vmatprep.subr.mxu0 0.0
        %1804 = vmatpush1.msra.mxu0 0.0
        %1805 = vmatprep.subr.mxu0 0.0
        %1806 = vmatpush1.msra.mxu0 0.0
        %1807 = vmatprep.subr.mxu0 0.0
        %1808 = vmatpush1.msra.mxu0 0.0
        %1809 = vmatprep.subr.mxu0 0.0
        %1810 = vmatpush1.msra.mxu0 0.0
        %1811 = vmatprep.subr.mxu0 0.0
        %1812 = vmatpush1.msra.mxu0 0.0
        %1813 = vmatprep.subr.mxu0 0.0
        %1814 = vmatpush1.msra.mxu0 0.0
        %1815 = vmatprep.subr.mxu0 0.0
        %1816 = vmatpush1.msra.mxu0 0.0
        %1817 = vmatprep.subr.mxu0 0.0
        %1818 = vmatpush1.msra.mxu0 0.0
        %1819 = vmatprep.subr.mxu0 0.0
        %1820 = vmatpush1.msra.mxu0 0.0
        %1821 = vmatprep.subr.mxu0 0.0
        %1822 = vmatpush1.msra.mxu0 0.0
        %1823 = vmatprep.subr.mxu0 0.0
        %1824 = vmatpush1.msra.mxu0 0.0
        %1825 = vmatprep.subr.mxu0 0.0
        %1826 = vmatpush1.msra.mxu0 0.0
        %1827 = vmatprep.subr.mxu0 0.0
        %1828 = vmatpush1.msra.mxu0 0.0
        %1829 = vmatprep.subr.mxu0 0.0
        %1830 = vmatpush1.msra.mxu0 0.0
        %1831 = vmatprep.subr.mxu0 0.0
        %1832 = vmatpush1.msra.mxu0 0.0
        %1833 = vmatprep.subr.mxu0 0.0
        %1834 = vmatpush1.msra.mxu0 0.0
        %1835 = vmatprep.subr.mxu0 0.0
        %1836 = vmatpush1.msra.mxu0 0.0
        %1837 = vmatprep.mubr.f32.mxu0 0.0
        %1838 = vmatmul.mubr.f32.gmra.mrb[0].mxu0 %v1771
        %v1839 = vpop.f32.mrb[0].mxu0
        %v1840 = vadd.f32 %v1768, %v1839
        %v1841 = vpop.f32.mrb[0].mxu0
        %1842 = vdwg.mxu0
        %v1843 = vmul.f32 %v1840, 0.5
        %v1844 = vmul.f32 %v1840, 0.044715
        %v1845 = vmul.f32 %v1844, %v1840
        %v1846 = vmul.f32 %v1845, %v1840
        %v1847 = vadd.f32 %v1840, %v1846
        %v1848 = vmul.f32 %v1847, 0.7978846
        %v1849 = vtanh.pop %v1848
        %v1850 = vadd.f32 %v1849, 1.0
        %v1851 = vmul.f32 %v1843, %v1850
        %v1852 = vld [vmem:[%s12] sm:$0xff]
        %v1853 = vld [vmem:[%s12 + $0x8] sm:$0xff]
        %v1854 = vld [vmem:[%s12 + $0x10] sm:$0xff]
        %v1855 = vld [vmem:[%s12 + $0x18] sm:$0xff]
        %v1856 = vld [vmem:[%s12 + $0x20] sm:$0xff]
        %v1857 = vld [vmem:[%s12 + $0x28] sm:$0xff]
        %v1858 = vld [vmem:[%s12 + $0x30] sm:$0xff]
        %v1859 = vld [vmem:[%s12 + $0x38] sm:$0xff]
        %v1860 = vld [vmem:[%s13] sm:$0x1]
        %v1862 = vlaneseq
        %v1863 = vshrl.u32 %v1862, 7
        %v1864 = vsub.s32 0, %v1863
        %v1865 = vrot.slane %v1860, %v1864
        %vm1867 = vcmask 523264
        %v1869 = vsel %vm1867, %v1851, 0
        %1871 = vmatprep.subr.mxu0 0.0
        %1872 = vmatpush1.msra.mxu0 %v1852
        %1873 = vmatprep.subr.mxu0 0.0
        %1874 = vmatpush1.msra.mxu0 %v1853
        %1875 = vmatprep.subr.mxu0 0.0
        %1876 = vmatpush1.msra.mxu0 %v1854
        %1877 = vmatprep.subr.mxu0 0.0
        %1878 = vmatpush1.msra.mxu0 %v1855
        %1879 = vmatprep.subr.mxu0 0.0
        %1880 = vmatpush1.msra.mxu0 %v1856
        %1881 = vmatprep.subr.mxu0 0.0
        %1882 = vmatpush1.msra.mxu0 %v1857
        %1883 = vmatprep.subr.mxu0 0.0
        %1884 = vmatpush1.msra.mxu0 %v1858
        %1885 = vmatprep.subr.mxu0 0.0
        %1886 = vmatpush1.msra.mxu0 %v1859
        %1887 = vmatprep.subr.mxu0 0.0
        %1888 = vmatpush1.msra.mxu0 0.0
        %1889 = vmatprep.subr.mxu0 0.0
        %1890 = vmatpush1.msra.mxu0 0.0
        %1891 = vmatprep.subr.mxu0 0.0
        %1892 = vmatpush1.msra.mxu0 0.0
        %1893 = vmatprep.subr.mxu0 0.0
        %1894 = vmatpush1.msra.mxu0 0.0
        %1895 = vmatprep.subr.mxu0 0.0
        %1896 = vmatpush1.msra.mxu0 0.0
        %1897 = vmatprep.subr.mxu0 0.0
        %1898 = vmatpush1.msra.mxu0 0.0
        %1899 = vmatprep.subr.mxu0 0.0
        %1900 = vmatpush1.msra.mxu0 0.0
        %1901 = vmatprep.subr.mxu0 0.0
        %1902 = vmatpush1.msra.mxu0 0.0
        %1903 = vmatprep.subr.mxu0 0.0
        %1904 = vmatpush1.msra.mxu0 0.0
        %1905 = vmatprep.subr.mxu0 0.0
        %1906 = vmatpush1.msra.mxu0 0.0
        %1907 = vmatprep.subr.mxu0 0.0
        %1908 = vmatpush1.msra.mxu0 0.0
        %1909 = vmatprep.subr.mxu0 0.0
        %1910 = vmatpush1.msra.mxu0 0.0
        %1911 = vmatprep.subr.mxu0 0.0
        %1912 = vmatpush1.msra.mxu0 0.0
        %1913 = vmatprep.subr.mxu0 0.0
        %1914 = vmatpush1.msra.mxu0 0.0
        %1915 = vmatprep.subr.mxu0 0.0
        %1916 = vmatpush1.msra.mxu0 0.0
        %1917 = vmatprep.subr.mxu0 0.0
        %1918 = vmatpush1.msra.mxu0 0.0
        %1919 = vmatprep.subr.mxu0 0.0
        %1920 = vmatpush1.msra.mxu0 0.0
        %1921 = vmatprep.subr.mxu0 0.0
        %1922 = vmatpush1.msra.mxu0 0.0
        %1923 = vmatprep.subr.mxu0 0.0
        %1924 = vmatpush1.msra.mxu0 0.0
        %1925 = vmatprep.subr.mxu0 0.0
        %1926 = vmatpush1.msra.mxu0 0.0
        %1927 = vmatprep.subr.mxu0 0.0
        %1928 = vmatpush1.msra.mxu0 0.0
        %1929 = vmatprep.subr.mxu0 0.0
        %1930 = vmatpush1.msra.mxu0 0.0
        %1931 = vmatprep.subr.mxu0 0.0
        %1932 = vmatpush1.msra.mxu0 0.0
        %1933 = vmatprep.subr.mxu0 0.0
        %1934 = vmatpush1.msra.mxu0 0.0
        %1935 = vmatprep.mubr.f32.mxu0 0.0
        %1936 = vmatmul.mubr.f32.gmra.mrb[0].mxu0 %v1869
        %v1937 = vpop.f32.mrb[0].mxu0
        %v1938 = vadd.f32 %v1865, %v1937
        %v1939 = vpop.f32.mrb[0].mxu0
        %1940 = vdwg.mxu0
        %v1941 = vadd.f32 %v1938, %v1758
        %v1942 = vld [vmem:[%s14] sm:$0x1]
        %v1943 = vld [vmem:[%s15] sm:$0x1]
        %v1944 = vsel %vm641, %v1941, 0.0
        %1945 = vadd.xlane.f32.xlu0 %v1944
        %v1946 = vpop.xlane.xlu0 %1945
        %v1947 = vmul.f32 %v1946, %v645
        %v1948 = vsub.f32 %v1941, %v1947
        %v1949 = vmul.f32 %v1948, %v1948
        %v1950 = vsel %vm641, %v1949, 0.0
        %1951 = vadd.xlane.f32.xlu0 %v1950
        %v1952 = vpop.xlane.xlu0 %1951
        %v1953 = vmul.f32 %v1952, %v645
        %v1954 = vadd.f32 %v1953, 1e-12
        %v1955 = vrsqrt.pop %v1954
        %v1956 = vmul.f32 %v1948, %v1955
        %v1958 = vlaneseq
        %v1959 = vshrl.u32 %v1958, 7
        %v1960 = vsub.s32 0, %v1959
        %v1961 = vrot.slane %v1942, %v1960
        %v1963 = vmul.f32 %v1956, %v1961
        %v1965 = vlaneseq
        %v1966 = vshrl.u32 %v1965, 7
        %v1967 = vsub.s32 0, %v1966
        %v1968 = vrot.slane %v1943, %v1967
        %v1970 = vadd.f32 %v1963, %v1968
        %s1971 = scalar_lea.vmem %s4, 32
        %v1972 = vld [vmem:[%s1971] sm:$0xff]
        %v1973 = vld [vmem:[%s1971 + $0x8] sm:$0xff]
        %v1974 = vld [vmem:[%s1971 + $0x10] sm:$0xff]
        %v1975 = vld [vmem:[%s1971 + $0x18] sm:$0xff]
        %s1976 = scalar_lea.vmem %s5, 1
        %v1977 = vld [vmem:[%s1976] sm:$0x1]
        %v1979 = vlaneseq
        %v1980 = vshrl.u32 %v1979, 7
        %v1981 = vsub.s32 0, %v1980
        %v1982 = vrot.slane %v1977, %v1981
        %v1985 = vsel %vm641, %v1970, 0
        %1987 = vmatprep.subr.mxu0 0.0
        %1988 = vmatpush1.msra.mxu0 %v1972
        %1989 = vmatprep.subr.mxu0 0.0
        %1990 = vmatpush1.msra.mxu0 %v1973
        %1991 = vmatprep.subr.mxu0 0.0
        %1992 = vmatpush1.msra.mxu0 %v1974
        %1993 = vmatprep.subr.mxu0 0.0
        %1994 = vmatpush1.msra.mxu0 %v1975
        %1995 = vmatprep.subr.mxu0 0.0
        %1996 = vmatpush1.msra.mxu0 0.0
        %1997 = vmatprep.subr.mxu0 0.0
        %1998 = vmatpush1.msra.mxu0 0.0
        %1999 = vmatprep.subr.mxu0 0.0
        %2000 = vmatpush1.msra.mxu0 0.0
        %2001 = vmatprep.subr.mxu0 0.0
        %2002 = vmatpush1.msra.mxu0 0.0
        %2003 = vmatprep.subr.mxu0 0.0
        %2004 = vmatpush1.msra.mxu0 0.0
        %2005 = vmatprep.subr.mxu0 0.0
        %2006 = vmatpush1.msra.mxu0 0.0
        %2007 = vmatprep.subr.mxu0 0.0
        %2008 = vmatpush1.msra.mxu0 0.0
        %2009 = vmatprep.subr.mxu0 0.0
        %2010 = vmatpush1.msra.mxu0 0.0
        %2011 = vmatprep.subr.mxu0 0.0
        %2012 = vmatpush1.msra.mxu0 0.0
        %2013 = vmatprep.subr.mxu0 0.0
        %2014 = vmatpush1.msra.mxu0 0.0
        %2015 = vmatprep.subr.mxu0 0.0
        %2016 = vmatpush1.msra.mxu0 0.0
        %2017 = vmatprep.subr.mxu0 0.0
        %2018 = vmatpush1.msra.mxu0 0.0
        %2019 = vmatprep.subr.mxu0 0.0
        %2020 = vmatpush1.msra.mxu0 0.0
        %2021 = vmatprep.subr.mxu0 0.0
        %2022 = vmatpush1.msra.mxu0 0.0
        %2023 = vmatprep.subr.mxu0 0.0
        %2024 = vmatpush1.msra.mxu0 0.0
        %2025 = vmatprep.subr.mxu0 0.0
        %2026 = vmatpush1.msra.mxu0 0.0
        %2027 = vmatprep.subr.mxu0 0.0
        %2028 = vmatpush1.msra.mxu0 0.0
        %2029 = vmatprep.subr.mxu0 0.0
        %2030 = vmatpush1.msra.mxu0 0.0
        %2031 = vmatprep.subr.mxu0 0.0
        %2032 = vmatpush1.msra.mxu0 0.0
        %2033 = vmatprep.subr.mxu0 0.0
        %2034 = vmatpush1.msra.mxu0 0.0
        %2035 = vmatprep.subr.mxu0 0.0
        %2036 = vmatpush1.msra.mxu0 0.0
        %2037 = vmatprep.subr.mxu0 0.0
        %2038 = vmatpush1.msra.mxu0 0.0
        %2039 = vmatprep.subr.mxu0 0.0
        %2040 = vmatpush1.msra.mxu0 0.0
        %2041 = vmatprep.subr.mxu0 0.0
        %2042 = vmatpush1.msra.mxu0 0.0
        %2043 = vmatprep.subr.mxu0 0.0
        %2044 = vmatpush1.msra.mxu0 0.0
        %2045 = vmatprep.subr.mxu0 0.0
        %2046 = vmatpush1.msra.mxu0 0.0
        %2047 = vmatprep.subr.mxu0 0.0
        %2048 = vmatpush1.msra.mxu0 0.0
        %2049 = vmatprep.subr.mxu0 0.0
        %2050 = vmatpush1.msra.mxu0 0.0
        %2051 = vmatprep.mubr.f32.mxu0 0.0
        %2052 = vmatmul.mubr.f32.gmra.mrb[0].mxu0 %v1985
        %v2053 = vpop.f32.mrb[0].mxu0
        %v2054 = vadd.f32 %v1982, %v2053
        %v2055 = vpop.f32.mrb[0].mxu0
        %2056 = vdwg.mxu0
        %s2057 = scalar_lea.vmem %s6, 32
        %v2058 = vld [vmem:[%s2057] sm:$0xff]
        %v2059 = vld [vmem:[%s2057 + $0x8] sm:$0xff]
        %v2060 = vld [vmem:[%s2057 + $0x10] sm:$0xff]
        %v2061 = vld [vmem:[%s2057 + $0x18] sm:$0xff]
        %v2062 = vmul.f32 %v2054, 0.35355338
        %2064 = vrot.lane.b32.xlu0 %v2054, 96
        %v2065 = vpop.permute.xlu0 %2064
        %v2067 = vsel %vm769, %v2062, 0
        %v2069 = vsel %vm769, %v2065, 0
        %2071 = vmatprep.subr.mxu0 0.0
        %2072 = vmatpush1.xpose.msra.mxu0 %v2069
        %2073 = vmatprep.subr.mxu0 0.0
        %2074 = vmatpush1.xpose.msra.mxu0 0.0
        %2075 = vmatprep.subr.mxu0 0.0
        %2076 = vmatpush1.xpose.msra.mxu0 0.0
        %2077 = vmatprep.subr.mxu0 0.0
        %2078 = vmatpush1.xpose.msra.mxu0 0.0
        %2079 = vmatprep.subr.mxu0 0.0
        %2080 = vmatpush1.xpose.msra.mxu0 0.0
        %2081 = vmatprep.subr.mxu0 0.0
        %2082 = vmatpush1.xpose.msra.mxu0 0.0
        %2083 = vmatprep.subr.mxu0 0.0
        %2084 = vmatpush1.xpose.msra.mxu0 0.0
        %2085 = vmatprep.subr.mxu0 0.0
        %2086 = vmatpush1.xpose.msra.mxu0 0.0
        %2087 = vmatprep.subr.mxu0 0.0
        %2088 = vmatpush1.xpose.msra.mxu0 0.0
        %2089 = vmatprep.subr.mxu0 0.0
        %2090 = vmatpush1.xpose.msra.mxu0 0.0
        %2091 = vmatprep.subr.mxu0 0.0
        %2092 = vmatpush1.xpose.msra.mxu0 0.0
        %2093 = vmatprep.subr.mxu0 0.0
        %2094 = vmatpush1.xpose.msra.mxu0 0.0
        %2095 = vmatprep.subr.mxu0 0.0
        %2096 = vmatpush1.xpose.msra.mxu0 0.0
        %2097 = vmatprep.subr.mxu0 0.0
        %2098 = vmatpush1.xpose.msra.mxu0 0.0
        %2099 = vmatprep.subr.mxu0 0.0
        %2100 = vmatpush1.xpose.msra.mxu0 0.0
        %2101 = vmatprep.subr.mxu0 0.0
        %2102 = vmatpush1.xpose.msra.mxu0 0.0
        %2103 = vmatprep.subr.mxu0 0.0
        %2104 = vmatpush1.xpose.msra.mxu0 0.0
        %2105 = vmatprep.subr.mxu0 0.0
        %2106 = vmatpush1.xpose.msra.mxu0 0.0
        %2107 = vmatprep.subr.mxu0 0.0
        %2108 = vmatpush1.xpose.msra.mxu0 0.0
        %2109 = vmatprep.subr.mxu0 0.0
        %2110 = vmatpush1.xpose.msra.mxu0 0.0
        %2111 = vmatprep.subr.mxu0 0.0
        %2112 = vmatpush1.xpose.msra.mxu0 0.0
        %2113 = vmatprep.subr.mxu0 0.0
        %2114 = vmatpush1.xpose.msra.mxu0 0.0
        %2115 = vmatprep.subr.mxu0 0.0
        %2116 = vmatpush1.xpose.msra.mxu0 0.0
        %2117 = vmatprep.subr.mxu0 0.0
        %2118 = vmatpush1.xpose.msra.mxu0 0.0
        %2119 = vmatprep.subr.mxu0 0.0
        %2120 = vmatpush1.xpose.msra.mxu0 0.0
        %2121 = vmatprep.subr.mxu0 0.0
        %2122 = vmatpush1.xpose.msra.mxu0 0.0
        %2123 = vmatprep.subr.mxu0 0.0
        %2124 = vmatpush1.xpose.msra.mxu0 0.0
        %2125 = vmatprep.subr.mxu0 0.0
        %2126 = vmatpush1.xpose.msra.mxu0 0.0
        %2127 = vmatprep.subr.mxu0 0.0
        %2128 = vmatpush1.xpose.msra.mxu0 0.0
        %2129 = vmatprep.subr.mxu0 0.0
        %2130 = vmatpush1.xpose.msra.mxu0 0.0
        %2131 = vmatprep.subr.mxu0 0.0
        %2132 = vmatpush1.xpose.msra.mxu0 0.0
        %2133 = vmatprep.subr.mxu0 0.0
        %2134 = vmatpush1.xpose.msra.mxu0 0.0
        %2135 = vmatprep.mubr.f32.mxu0 0.0
        %2136 = vmatmul.mubr.f32.gmra.mrb[0].mxu0 %v2067
        %v2137 = vpop.f32.mrb[0].mxu0
        %v2138 = vadd.f32 %v764, %v2137
        %v2139 = vpop.f32.mrb[0].mxu0
        %2140 = vdwg.mxu0
        %v2141 = vsel %vm769, %v2138, -inf
        %2142 = vmax.xlane.f32.xlu0 %v2141
        %v2143 = vpop.xlane.xlu0 %2142
        %v2144 = vsub.f32 %v2138, %v2143
        %v2145 = vmul.f32 %v2144, 1.442695
        %v2146 = vpow.pop %v2145
        %v2147 = vsel %vm769, %v2146, 0.0
        %2148 = vadd.xlane.f32.xlu0 %v2147
        %v2149 = vpop.xlane.xlu0 %2148
        %v2150 = vrcp.pop %v2149
        %v2151 = vmul.f32 %v2146, %v2150
        %2152 = vrot.lane.b32.xlu0 %v2054, 64
        %v2153 = vpop.permute.xlu0 %2152
        %v2156 = vsel %vm769, %v2151, 0
        %2158 = vmatprep.subr.mxu0 0.0
        %2159 = vmatpush1.msra.mxu0 %v2153
        %2160 = vmatprep.subr.mxu0 0.0
        %2161 = vmatpush1.msra.mxu0 0.0
        %2162 = vmatprep.subr.mxu0 0.0
        %2163 = vmatpush1.msra.mxu0 0.0
        %2164 = vmatprep.subr.mxu0 0.0
        %2165 = vmatpush1.msra.mxu0 0.0
        %2166 = vmatprep.subr.mxu0 0.0
        %2167 = vmatpush1.msra.mxu0 0.0
        %2168 = vmatprep.subr.mxu0 0.0
        %2169 = vmatpush1.msra.mxu0 0.0
        %2170 = vmatprep.subr.mxu0 0.0
        %2171 = vmatpush1.msra.mxu0 0.0
        %2172 = vmatprep.subr.mxu0 0.0
        %2173 = vmatpush1.msra.mxu0 0.0
        %2174 = vmatprep.subr.mxu0 0.0
        %2175 = vmatpush1.msra.mxu0 0.0
        %2176 = vmatprep.subr.mxu0 0.0
        %2177 = vmatpush1.msra.mxu0 0.0
        %2178 = vmatprep.subr.mxu0 0.0
        %2179 = vmatpush1.msra.mxu0 0.0
        %2180 = vmatprep.subr.mxu0 0.0
        %2181 = vmatpush1.msra.mxu0 0.0
        %2182 = vmatprep.subr.mxu0 0.0
        %2183 = vmatpush1.msra.mxu0 0.0
        %2184 = vmatprep.subr.mxu0 0.0
        %2185 = vmatpush1.msra.mxu0 0.0
        %2186 = vmatprep.subr.mxu0 0.0
        %2187 = vmatpush1.msra.mxu0 0.0
        %2188 = vmatprep.subr.mxu0 0.0
        %2189 = vmatpush1.msra.mxu0 0.0
        %2190 = vmatprep.subr.mxu0 0.0
        %2191 = vmatpush1.msra.mxu0 0.0
        %2192 = vmatprep.subr.mxu0 0.0
        %2193 = vmatpush1.msra.mxu0 0.0
        %2194 = vmatprep.subr.mxu0 0.0
        %2195 = vmatpush1.msra.mxu0 0.0
        %2196 = vmatprep.subr.mxu0 0.0
        %2197 = vmatpush1.msra.mxu0 0.0
        %2198 = vmatprep.subr.mxu0 0.0
        %2199 = vmatpush1.msra.mxu0 0.0
        %2200 = vmatprep.subr.mxu0 0.0
        %2201 = vmatpush1.msra.mxu0 0.0
        %2202 = vmatprep.subr.mxu0 0.0
        %2203 = vmatpush1.msra.mxu0 0.0
        %2204 = vmatprep.subr.mxu0 0.0
        %2205 = vmatpush1.msra.mxu0 0.0
        %2206 = vmatprep.subr.mxu0 0.0
        %2207 = vmatpush1.msra.mxu0 0.0
        %2208 = vmatprep.subr.mxu0 0.0
        %2209 = vmatpush1.msra.mxu0 0.0
        %2210 = vmatprep.subr.mxu0 0.0
        %2211 = vmatpush1.msra.mxu0 0.0
        %2212 = vmatprep.subr.mxu0 0.0
        %2213 = vmatpush1.msra.mxu0 0.0
        %2214 = vmatprep.subr.mxu0 0.0
        %2215 = vmatpush1.msra.mxu0 0.0
        %2216 = vmatprep.subr.mxu0 0.0
        %2217 = vmatpush1.msra.mxu0 0.0
        %2218 = vmatprep.subr.mxu0 0.0
        %2219 = vmatpush1.msra.mxu0 0.0
        %2220 = vmatprep.subr.mxu0 0.0
        %2221 = vmatpush1.msra.mxu0 0.0
        %2222 = vmatprep.mubr.f32.mxu0 0.0
        %2223 = vmatmul.mubr.f32.gmra.mrb[0].mxu0 %v2156
        %v2224 = vpop.f32.mrb[0].mxu0
        %v2225 = vadd.f32 0.0, %v2224
        %v2226 = vpop.f32.mrb[0].mxu0
        %2227 = vdwg.mxu0
        %2228 = vrot.lane.b32.xlu0 %v2062, 120
        %v2229 = vpop.permute.xlu0 %2228
        %2230 = vrot.lane.b32.xlu0 %v2054, 88
        %v2231 = vpop.permute.xlu0 %2230
        %v2232 = vsel %vm769, %v2229, 0
        %v2234 = vsel %vm769, %v2231, 0
        %2236 = vmatprep.subr.mxu0 0.0
        %2237 = vmatpush1.xpose.msra.mxu0 %v2234
        %2238 = vmatprep.subr.mxu0 0.0
        %2239 = vmatpush1.xpose.msra.mxu0 0.0
        %2240 = vmatprep.subr.mxu0 0.0
        %2241 = vmatpush1.xpose.msra.mxu0 0.0
        %2242 = vmatprep.subr.mxu0 0.0
        %2243 = vmatpush1.xpose.msra.mxu0 0.0
        %2244 = vmatprep.subr.mxu0 0.0
        %2245 = vmatpush1.xpose.msra.mxu0 0.0
        %2246 = vmatprep.subr.mxu0 0.0
        %2247 = vmatpush1.xpose.msra.mxu0 0.0
        %2248 = vmatprep.subr.mxu0 0.0
        %2249 = vmatpush1.xpose.msra.mxu0 0.0
        %2250 = vmatprep.subr.mxu0 0.0
        %2251 = vmatpush1.xpose.msra.mxu0 0.0
        %2252 = vmatprep.subr.mxu0 0.0
        %2253 = vmatpush1.xpose.msra.mxu0 0.0
        %2254 = vmatprep.subr.mxu0 0.0
        %2255 = vmatpush1.xpose.msra.mxu0 0.0
        %2256 = vmatprep.subr.mxu0 0.0
        %2257 = vmatpush1.xpose.msra.mxu0 0.0
        %2258 = vmatprep.subr.mxu0 0.0
        %2259 = vmatpush1.xpose.msra.mxu0 0.0
        %2260 = vmatprep.subr.mxu0 0.0
        %2261 = vmatpush1.xpose.msra.mxu0 0.0
        %2262 = vmatprep.subr.mxu0 0.0
        %2263 = vmatpush1.xpose.msra.mxu0 0.0
        %2264 = vmatprep.subr.mxu0 0.0
        %2265 = vmatpush1.xpose.msra.mxu0 0.0
        %2266 = vmatprep.subr.mxu0 0.0
        %2267 = vmatpush1.xpose.msra.mxu0 0.0
        %2268 = vmatprep.subr.mxu0 0.0
        %2269 = vmatpush1.xpose.msra.mxu0 0.0
        %2270 = vmatprep.subr.mxu0 0.0
        %2271 = vmatpush1.xpose.msra.mxu0 0.0
        %2272 = vmatprep.subr.mxu0 0.0
        %2273 = vmatpush1.xpose.msra.mxu0 0.0
        %2274 = vmatprep.subr.mxu0 0.0
        %2275 = vmatpush1.xpose.msra.mxu0 0.0
        %2276 = vmatprep.subr.mxu0 0.0
        %2277 = vmatpush1.xpose.msra.mxu0 0.0
        %2278 = vmatprep.subr.mxu0 0.0
        %2279 = vmatpush1.xpose.msra.mxu0 0.0
        %2280 = vmatprep.subr.mxu0 0.0
        %2281 = vmatpush1.xpose.msra.mxu0 0.0
        %2282 = vmatprep.subr.mxu0 0.0
        %2283 = vmatpush1.xpose.msra.mxu0 0.0
        %2284 = vmatprep.subr.mxu0 0.0
        %2285 = vmatpush1.xpose.msra.mxu0 0.0
        %2286 = vmatprep.subr.mxu0 0.0
        %2287 = vmatpush1.xpose.msra.mxu0 0.0
        %2288 = vmatprep.subr.mxu0 0.0
        %2289 = vmatpush1.xpose.msra.mxu0 0.0
        %2290 = vmatprep.subr.mxu0 0.0
        %2291 = vmatpush1.xpose.msra.mxu0 0.0
        %2292 = vmatprep.subr.mxu0 0.0
        %2293 = vmatpush1.xpose.msra.mxu0 0.0
        %2294 = vmatprep.subr.mxu0 0.0
        %2295 = vmatpush1.xpose.msra.mxu0 0.0
        %2296 = vmatprep.subr.mxu0 0.0
        %2297 = vmatpush1.xpose.msra.mxu0 0.0
        %2298 = vmatprep.subr.mxu0 0.0
        %2299 = vmatpush1.xpose.msra.mxu0 0.0
        %2300 = vmatprep.mubr.f32.mxu0 0.0
        %2301 = vmatmul.mubr.f32.gmra.mrb[0].mxu0 %v2232
        %v2302 = vpop.f32.mrb[0].mxu0
        %v2303 = vadd.f32 %v764, %v2302
        %v2304 = vpop.f32.mrb[0].mxu0
        %2305 = vdwg.mxu0
        %v2306 = vsel %vm769, %v2303, -inf
        %2307 = vmax.xlane.f32.xlu0 %v2306
        %v2308 = vpop.xlane.xlu0 %2307
        %v2309 = vsub.f32 %v2303, %v2308
        %v2310 = vmul.f32 %v2309, 1.442695
        %v2311 = vpow.pop %v2310
        %v2312 = vsel %vm769, %v2311, 0.0
        %2313 = vadd.xlane.f32.xlu0 %v2312
        %v2314 = vpop.xlane.xlu0 %2313
        %v2315 = vrcp.pop %v2314
        %v2316 = vmul.f32 %v2311, %v2315
        %2317 = vrot.lane.b32.xlu0 %v2054, 56
        %v2318 = vpop.permute.xlu0 %2317
        %v2321 = vsel %vm769, %v2316, 0
        %2323 = vmatprep.subr.mxu0 0.0
        %2324 = vmatpush1.msra.mxu0 %v2318
        %2325 = vmatprep.subr.mxu0 0.0
        %2326 = vmatpush1.msra.mxu0 0.0
        %2327 = vmatprep.subr.mxu0 0.0
        %2328 = vmatpush1.msra.mxu0 0.0
        %2329 = vmatprep.subr.mxu0 0.0
        %2330 = vmatpush1.msra.mxu0 0.0
        %2331 = vmatprep.subr.mxu0 0.0
        %2332 = vmatpush1.msra.mxu0 0.0
        %2333 = vmatprep.subr.mxu0 0.0
        %2334 = vmatpush1.msra.mxu0 0.0
        %2335 = vmatprep.subr.mxu0 0.0
        %2336 = vmatpush1.msra.mxu0 0.0
        %2337 = vmatprep.subr.mxu0 0.0
        %2338 = vmatpush1.msra.mxu0 0.0
        %2339 = vmatprep.subr.mxu0 0.0
        %2340 = vmatpush1.msra.mxu0 0.0
        %2341 = vmatprep.subr.mxu0 0.0
        %2342 = vmatpush1.msra.mxu0 0.0
        %2343 = vmatprep.subr.mxu0 0.0
        %2344 = vmatpush1.msra.mxu0 0.0
        %2345 = vmatprep.subr.mxu0 0.0
        %2346 = vmatpush1.msra.mxu0 0.0
        %2347 = vmatprep.subr.mxu0 0.0
        %2348 = vmatpush1.msra.mxu0 0.0
        %2349 = vmatprep.subr.mxu0 0.0
        %2350 = vmatpush1.msra.mxu0 0.0
        %2351 = vmatprep.subr.mxu0 0.0
        %2352 = vmatpush1.msra.mxu0 0.0
        %2353 = vmatprep.subr.mxu0 0.0
        %2354 = vmatpush1.msra.mxu0 0.0
        %2355 = vmatprep.subr.mxu0 0.0
        %2356 = vmatpush1.msra.mxu0 0.0
        %2357 = vmatprep.subr.mxu0 0.0
        %2358 = vmatpush1.msra.mxu0 0.0
        %2359 = vmatprep.subr.mxu0 0.0
        %2360 = vmatpush1.msra.mxu0 0.0
        %2361 = vmatprep.subr.mxu0 0.0
        %2362 = vmatpush1.msra.mxu0 0.0
        %2363 = vmatprep.subr.mxu0 0.0
        %2364 = vmatpush1.msra.mxu0 0.0
        %2365 = vmatprep.subr.mxu0 0.0
        %2366 = vmatpush1.msra.mxu0 0.0
        %2367 = vmatprep.subr.mxu0 0.0
        %2368 = vmatpush1.msra.mxu0 0.0
        %2369 = vmatprep.subr.mxu0 0.0
        %2370 = vmatpush1.msra.mxu0 0.0
        %2371 = vmatprep.subr.mxu0 0.0
        %2372 = vmatpush1.msra.mxu0 0.0
        %2373 = vmatprep.subr.mxu0 0.0
        %2374 = vmatpush1.msra.mxu0 0.0
        %2375 = vmatprep.subr.mxu0 0.0
        %2376 = vmatpush1.msra.mxu0 0.0
        %2377 = vmatprep.subr.mxu0 0.0
        %2378 = vmatpush1.msra.mxu0 0.0
        %2379 = vmatprep.subr.mxu0 0.0
        %2380 = vmatpush1.msra.mxu0 0.0
        %2381 = vmatprep.subr.mxu0 0.0
        %2382 = vmatpush1.msra.mxu0 0.0
        %2383 = vmatprep.subr.mxu0 0.0
        %2384 = vmatpush1.msra.mxu0 0.0
        %2385 = vmatprep.subr.mxu0 0.0
        %2386 = vmatpush1.msra.mxu0 0.0
        %2387 = vmatprep.mubr.f32.mxu0 0.0
        %2388 = vmatmul.mubr.f32.gmra.mrb[0].mxu0 %v2321
        %v2389 = vpop.f32.mrb[0].mxu0
        %v2390 = vadd.f32 0.0, %v2389
        %v2391 = vpop.f32.mrb[0].mxu0
        %2392 = vdwg.mxu0
        %v2394 = vsel %vm769, %v2390, 0
        %2396 = vmatprep.subr.mxu0 0.0
        %2397 = vmatpush1.msra.mxu0 %v2059
        %2398 = vmatprep.subr.mxu0 0.0
        %2399 = vmatpush1.msra.mxu0 0.0
        %2400 = vmatprep.subr.mxu0 0.0
        %2401 = vmatpush1.msra.mxu0 0.0
        %2402 = vmatprep.subr.mxu0 0.0
        %2403 = vmatpush1.msra.mxu0 0.0
        %2404 = vmatprep.subr.mxu0 0.0
        %2405 = vmatpush1.msra.mxu0 0.0
        %2406 = vmatprep.subr.mxu0 0.0
        %2407 = vmatpush1.msra.mxu0 0.0
        %2408 = vmatprep.subr.mxu0 0.0
        %2409 = vmatpush1.msra.mxu0 0.0
        %2410 = vmatprep.subr.mxu0 0.0
        %2411 = vmatpush1.msra.mxu0 0.0
        %2412 = vmatprep.subr.mxu0 0.0
        %2413 = vmatpush1.msra.mxu0 0.0
        %2414 = vmatprep.subr.mxu0 0.0
        %2415 = vmatpush1.msra.mxu0 0.0
        %2416 = vmatprep.subr.mxu0 0.0
        %2417 = vmatpush1.msra.mxu0 0.0
        %2418 = vmatprep.subr.mxu0 0.0
        %2419 = vmatpush1.msra.mxu0 0.0
        %2420 = vmatprep.subr.mxu0 0.0
        %2421 = vmatpush1.msra.mxu0 0.0
        %2422 = vmatprep.subr.mxu0 0.0
        %2423 = vmatpush1.msra.mxu0 0.0
        %2424 = vmatprep.subr.mxu0 0.0
        %2425 = vmatpush1.msra.mxu0 0.0
        %2426 = vmatprep.subr.mxu0 0.0
        %2427 = vmatpush1.msra.mxu0 0.0
        %2428 = vmatprep.subr.mxu0 0.0
        %2429 = vmatpush1.msra.mxu0 0.0
        %2430 = vmatprep.subr.mxu0 0.0
        %2431 = vmatpush1.msra.mxu0 0.0
        %2432 = vmatprep.subr.mxu0 0.0
        %2433 = vmatpush1.msra.mxu0 0.0
        %2434 = vmatprep.subr.mxu0 0.0
        %2435 = vmatpush1.msra.mxu0 0.0
        %2436 = vmatprep.subr.mxu0 0.0
        %2437 = vmatpush1.msra.mxu0 0.0
        %2438 = vmatprep.subr.mxu0 0.0
        %2439 = vmatpush1.msra.mxu0 0.0
        %2440 = vmatprep.subr.mxu0 0.0
        %2441 = vmatpush1.msra.mxu0 0.0
        %2442 = vmatprep.subr.mxu0 0.0
        %2443 = vmatpush1.msra.mxu0 0.0
        %2444 = vmatprep.subr.mxu0 0.0
        %2445 = vmatpush1.msra.mxu0 0.0
        %2446 = vmatprep.subr.mxu0 0.0
        %2447 = vmatpush1.msra.mxu0 0.0
        %2448 = vmatprep.subr.mxu0 0.0
        %2449 = vmatpush1.msra.mxu0 0.0
        %2450 = vmatprep.subr.mxu0 0.0
        %2451 = vmatpush1.msra.mxu0 0.0
        %2452 = vmatprep.subr.mxu0 0.0
        %2453 = vmatpush1.msra.mxu0 0.0
        %2454 = vmatprep.subr.mxu0 0.0
        %2455 = vmatpush1.msra.mxu0 0.0
        %2456 = vmatprep.subr.mxu0 0.0
        %2457 = vmatpush1.msra.mxu0 0.0
        %2458 = vmatprep.subr.mxu0 0.0
        %2459 = vmatpush1.msra.mxu0 0.0
        %2460 = vmatprep.mubr.f32.mxu0 0.0
        %2461 = vmatmul.mubr.f32.gmra.mrb[0].mxu0 %v2394
        %v2462 = vpop.f32.mrb[0].mxu0
        %v2463 = vadd.f32 0.0, %v2462
        %v2464 = vpop.f32.mrb[0].mxu0
        %2465 = vdwg.mxu0
        %v2467 = vsel %vm769, %v2225, 0
        %2469 = vmatprep.subr.mxu0 0.0
        %2470 = vmatpush1.msra.mxu0 %v2058
        %2471 = vmatprep.subr.mxu0 0.0
        %2472 = vmatpush1.msra.mxu0 0.0
        %2473 = vmatprep.subr.mxu0 0.0
        %2474 = vmatpush1.msra.mxu0 0.0
        %2475 = vmatprep.subr.mxu0 0.0
        %2476 = vmatpush1.msra.mxu0 0.0
        %2477 = vmatprep.subr.mxu0 0.0
        %2478 = vmatpush1.msra.mxu0 0.0
        %2479 = vmatprep.subr.mxu0 0.0
        %2480 = vmatpush1.msra.mxu0 0.0
        %2481 = vmatprep.subr.mxu0 0.0
        %2482 = vmatpush1.msra.mxu0 0.0
        %2483 = vmatprep.subr.mxu0 0.0
        %2484 = vmatpush1.msra.mxu0 0.0
        %2485 = vmatprep.subr.mxu0 0.0
        %2486 = vmatpush1.msra.mxu0 0.0
        %2487 = vmatprep.subr.mxu0 0.0
        %2488 = vmatpush1.msra.mxu0 0.0
        %2489 = vmatprep.subr.mxu0 0.0
        %2490 = vmatpush1.msra.mxu0 0.0
        %2491 = vmatprep.subr.mxu0 0.0
        %2492 = vmatpush1.msra.mxu0 0.0
        %2493 = vmatprep.subr.mxu0 0.0
        %2494 = vmatpush1.msra.mxu0 0.0
        %2495 = vmatprep.subr.mxu0 0.0
        %2496 = vmatpush1.msra.mxu0 0.0
        %2497 = vmatprep.subr.mxu0 0.0
        %2498 = vmatpush1.msra.mxu0 0.0
        %2499 = vmatprep.subr.mxu0 0.0
        %2500 = vmatpush1.msra.mxu0 0.0
        %2501 = vmatprep.subr.mxu0 0.0
        %2502 = vmatpush1.msra.mxu0 0.0
        %2503 = vmatprep.subr.mxu0 0.0
        %2504 = vmatpush1.msra.mxu0 0.0
        %2505 = vmatprep.subr.mxu0 0.0
        %2506 = vmatpush1.msra.mxu0 0.0
        %2507 = vmatprep.subr.mxu0 0.0
        %2508 = vmatpush1.msra.mxu0 0.0
        %2509 = vmatprep.subr.mxu0 0.0
        %2510 = vmatpush1.msra.mxu0 0.0
        %2511 = vmatprep.subr.mxu0 0.0
        %2512 = vmatpush1.msra.mxu0 0.0
        %2513 = vmatprep.subr.mxu0 0.0
        %2514 = vmatpush1.msra.mxu0 0.0
        %2515 = vmatprep.subr.mxu0 0.0
        %2516 = vmatpush1.msra.mxu0 0.0
        %2517 = vmatprep.subr.mxu0 0.0
        %2518 = vmatpush1.msra.mxu0 0.0
        %2519 = vmatprep.subr.mxu0 0.0
        %2520 = vmatpush1.msra.mxu0 0.0
        %2521 = vmatprep.subr.mxu0 0.0
        %2522 = vmatpush1.msra.mxu0 0.0
        %2523 = vmatprep.subr.mxu0 0.0
        %2524 = vmatpush1.msra.mxu0 0.0
        %2525 = vmatprep.subr.mxu0 0.0
        %2526 = vmatpush1.msra.mxu0 0.0
        %2527 = vmatprep.subr.mxu0 0.0
        %2528 = vmatpush1.msra.mxu0 0.0
        %2529 = vmatprep.subr.mxu0 0.0
        %2530 = vmatpush1.msra.mxu0 0.0
        %2531 = vmatprep.subr.mxu0 0.0
        %2532 = vmatpush1.msra.mxu0 0.0
        %2533 = vmatprep.mubr.f32.mxu0 0.0
        %2534 = vmatmul.mubr.f32.gmra.mrb[0].mxu0 %v2467
        %v2535 = vpop.f32.mrb[0].mxu0
        %v2536 = vadd.f32 %v2463, %v2535
        %v2537 = vpop.f32.mrb[0].mxu0
        %2538 = vdwg.mxu0
        %2539 = vrot.lane.b32.xlu0 %v2062, 112
        %v2540 = vpop.permute.xlu0 %2539
        %2541 = vrot.lane.b32.xlu0 %v2054, 80
        %v2542 = vpop.permute.xlu0 %2541
        %v2543 = vsel %vm769, %v2540, 0
        %v2545 = vsel %vm769, %v2542, 0
        %2547 = vmatprep.subr.mxu0 0.0
        %2548 = vmatpush1.xpose.msra.mxu0 %v2545
        %2549 = vmatprep.subr.mxu0 0.0
        %2550 = vmatpush1.xpose.msra.mxu0 0.0
        %2551 = vmatprep.subr.mxu0 0.0
        %2552 = vmatpush1.xpose.msra.mxu0 0.0
        %2553 = vmatprep.subr.mxu0 0.0
        %2554 = vmatpush1.xpose.msra.mxu0 0.0
        %2555 = vmatprep.subr.mxu0 0.0
        %2556 = vmatpush1.xpose.msra.mxu0 0.0
        %2557 = vmatprep.subr.mxu0 0.0
        %2558 = vmatpush1.xpose.msra.mxu0 0.0
        %2559 = vmatprep.subr.mxu0 0.0
        %2560 = vmatpush1.xpose.msra.mxu0 0.0
        %2561 = vmatprep.subr.mxu0 0.0
        %2562 = vmatpush1.xpose.msra.mxu0 0.0
        %2563 = vmatprep.subr.mxu0 0.0
        %2564 = vmatpush1.xpose.msra.mxu0 0.0
        %2565 = vmatprep.subr.mxu0 0.0
        %2566 = vmatpush1.xpose.msra.mxu0 0.0
        %2567 = vmatprep.subr.mxu0 0.0
        %2568 = vmatpush1.xpose.msra.mxu0 0.0
        %2569 = vmatprep.subr.mxu0 0.0
        %2570 = vmatpush1.xpose.msra.mxu0 0.0
        %2571 = vmatprep.subr.mxu0 0.0
        %2572 = vmatpush1.xpose.msra.mxu0 0.0
        %2573 = vmatprep.subr.mxu0 0.0
        %2574 = vmatpush1.xpose.msra.mxu0 0.0
        %2575 = vmatprep.subr.mxu0 0.0
        %2576 = vmatpush1.xpose.msra.mxu0 0.0
        %2577 = vmatprep.subr.mxu0 0.0
        %2578 = vmatpush1.xpose.msra.mxu0 0.0
        %2579 = vmatprep.subr.mxu0 0.0
        %2580 = vmatpush1.xpose.msra.mxu0 0.0
        %2581 = vmatprep.subr.mxu0 0.0
        %2582 = vmatpush1.xpose.msra.mxu0 0.0
        %2583 = vmatprep.subr.mxu0 0.0
        %2584 = vmatpush1.xpose.msra.mxu0 0.0
        %2585 = vmatprep.subr.mxu0 0.0
        %2586 = vmatpush1.xpose.msra.mxu0 0.0
        %2587 = vmatprep.subr.mxu0 0.0
        %2588 = vmatpush1.xpose.msra.mxu0 0.0
        %2589 = vmatprep.subr.mxu0 0.0
        %2590 = vmatpush1.xpose.msra.mxu0 0.0
        %2591 = vmatprep.subr.mxu0 0.0
        %2592 = vmatpush1.xpose.msra.mxu0 0.0
        %2593 = vmatprep.subr.mxu0 0.0
        %2594 = vmatpush1.xpose.msra.mxu0 0.0
        %2595 = vmatprep.subr.mxu0 0.0
        %2596 = vmatpush1.xpose.msra.mxu0 0.0
        %2597 = vmatprep.subr.mxu0 0.0
        %2598 = vmatpush1.xpose.msra.mxu0 0.0
        %2599 = vmatprep.subr.mxu0 0.0
        %2600 = vmatpush1.xpose.msra.mxu0 0.0
        %2601 = vmatprep.subr.mxu0 0.0
        %2602 = vmatpush1.xpose.msra.mxu0 0.0
        %2603 = vmatprep.subr.mxu0 0.0
        %2604 = vmatpush1.xpose.msra.mxu0 0.0
        %2605 = vmatprep.subr.mxu0 0.0
        %2606 = vmatpush1.xpose.msra.mxu0 0.0
        %2607 = vmatprep.subr.mxu0 0.0
        %2608 = vmatpush1.xpose.msra.mxu0 0.0
        %2609 = vmatprep.subr.mxu0 0.0
        %2610 = vmatpush1.xpose.msra.mxu0 0.0
        %2611 = vmatprep.mubr.f32.mxu0 0.0
        %2612 = vmatmul.mubr.f32.gmra.mrb[0].mxu0 %v2543
        %v2613 = vpop.f32.mrb[0].mxu0
        %v2614 = vadd.f32 %v764, %v2613
        %v2615 = vpop.f32.mrb[0].mxu0
        %2616 = vdwg.mxu0
        %v2617 = vsel %vm769, %v2614, -inf
        %2618 = vmax.xlane.f32.xlu0 %v2617
        %v2619 = vpop.xlane.xlu0 %2618
        %v2620 = vsub.f32 %v2614, %v2619
        %v2621 = vmul.f32 %v2620, 1.442695
        %v2622 = vpow.pop %v2621
        %v2623 = vsel %vm769, %v2622, 0.0
        %2624 = vadd.xlane.f32.xlu0 %v2623
        %v2625 = vpop.xlane.xlu0 %2624
        %v2626 = vrcp.pop %v2625
        %v2627 = vmul.f32 %v2622, %v2626
        %2628 = vrot.lane.b32.xlu0 %v2054, 48
        %v2629 = vpop.permute.xlu0 %2628
        %v2632 = vsel %vm769, %v2627, 0
        %2634 = vmatprep.subr.mxu0 0.0
        %2635 = vmatpush1.msra.mxu0 %v2629
        %2636 = vmatprep.subr.mxu0 0.0
        %2637 = vmatpush1.msra.mxu0 0.0
        %2638 = vmatprep.subr.mxu0 0.0
        %2639 = vmatpush1.msra.mxu0 0.0
        %2640 = vmatprep.subr.mxu0 0.0
        %2641 = vmatpush1.msra.mxu0 0.0
        %2642 = vmatprep.subr.mxu0 0.0
        %2643 = vmatpush1.msra.mxu0 0.0
        %2644 = vmatprep.subr.mxu0 0.0
        %2645 = vmatpush1.msra.mxu0 0.0
        %2646 = vmatprep.subr.mxu0 0.0
        %2647 = vmatpush1.msra.mxu0 0.0
        %2648 = vmatprep.subr.mxu0 0.0
        %2649 = vmatpush1.msra.mxu0 0.0
        %2650 = vmatprep.subr.mxu0 0.0
        %2651 = vmatpush1.msra.mxu0 0.0
        %2652 = vmatprep.subr.mxu0 0.0
        %2653 = vmatpush1.msra.mxu0 0.0
        %2654 = vmatprep.subr.mxu0 0.0
        %2655 = vmatpush1.msra.mxu0 0.0
        %2656 = vmatprep.subr.mxu0 0.0
        %2657 = vmatpush1.msra.mxu0 0.0
        %2658 = vmatprep.subr.mxu0 0.0
        %2659 = vmatpush1.msra.mxu0 0.0
        %2660 = vmatprep.subr.mxu0 0.0
        %2661 = vmatpush1.msra.mxu0 0.0
        %2662 = vmatprep.subr.mxu0 0.0
        %2663 = vmatpush1.msra.mxu0 0.0
        %2664 = vmatprep.subr.mxu0 0.0
        %2665 = vmatpush1.msra.mxu0 0.0
        %2666 = vmatprep.subr.mxu0 0.0
        %2667 = vmatpush1.msra.mxu0 0.0
        %2668 = vmatprep.subr.mxu0 0.0
        %2669 = vmatpush1.msra.mxu0 0.0
        %2670 = vmatprep.subr.mxu0 0.0
        %2671 = vmatpush1.msra.mxu0 0.0
        %2672 = vmatprep.subr.mxu0 0.0
        %2673 = vmatpush1.msra.mxu0 0.0
        %2674 = vmatprep.subr.mxu0 0.0
        %2675 = vmatpush1.msra.mxu0 0.0
        %2676 = vmatprep.subr.mxu0 0.0
        %2677 = vmatpush1.msra.mxu0 0.0
        %2678 = vmatprep.subr.mxu0 0.0
        %2679 = vmatpush1.msra.mxu0 0.0
        %2680 = vmatprep.subr.mxu0 0.0
        %2681 = vmatpush1.msra.mxu0 0.0
        %2682 = vmatprep.subr.mxu0 0.0
        %2683 = vmatpush1.msra.mxu0 0.0
        %2684 = vmatprep.subr.mxu0 0.0
        %2685 = vmatpush1.msra.mxu0 0.0
        %2686 = vmatprep.subr.mxu0 0.0
        %2687 = vmatpush1.msra.mxu0 0.0
        %2688 = vmatprep.subr.mxu0 0.0
        %2689 = vmatpush1.msra.mxu0 0.0
        %2690 = vmatprep.subr.mxu0 0.0
        %2691 = vmatpush1.msra.mxu0 0.0
        %2692 = vmatprep.subr.mxu0 0.0
        %2693 = vmatpush1.msra.mxu0 0.0
        %2694 = vmatprep.subr.mxu0 0.0
        %2695 = vmatpush1.msra.mxu0 0.0
        %2696 = vmatprep.subr.mxu0 0.0
        %2697 = vmatpush1.msra.mxu0 0.0
        %2698 = vmatprep.mubr.f32.mxu0 0.0
        %2699 = vmatmul.mubr.f32.gmra.mrb[0].mxu0 %v2632
        %v2700 = vpop.f32.mrb[0].mxu0
        %v2701 = vadd.f32 0.0, %v2700
        %v2702 = vpop.f32.mrb[0].mxu0
        %2703 = vdwg.mxu0
        %v2705 = vsel %vm769, %v2701, 0
        %2707 = vmatprep.subr.mxu0 0.0
        %2708 = vmatpush1.msra.mxu0 %v2060
        %2709 = vmatprep.subr.mxu0 0.0
        %2710 = vmatpush1.msra.mxu0 0.0
        %2711 = vmatprep.subr.mxu0 0.0
        %2712 = vmatpush1.msra.mxu0 0.0
        %2713 = vmatprep.subr.mxu0 0.0
        %2714 = vmatpush1.msra.mxu0 0.0
        %2715 = vmatprep.subr.mxu0 0.0
        %2716 = vmatpush1.msra.mxu0 0.0
        %2717 = vmatprep.subr.mxu0 0.0
        %2718 = vmatpush1.msra.mxu0 0.0
        %2719 = vmatprep.subr.mxu0 0.0
        %2720 = vmatpush1.msra.mxu0 0.0
        %2721 = vmatprep.subr.mxu0 0.0
        %2722 = vmatpush1.msra.mxu0 0.0
        %2723 = vmatprep.subr.mxu0 0.0
        %2724 = vmatpush1.msra.mxu0 0.0
        %2725 = vmatprep.subr.mxu0 0.0
        %2726 = vmatpush1.msra.mxu0 0.0
        %2727 = vmatprep.subr.mxu0 0.0
        %2728 = vmatpush1.msra.mxu0 0.0
        %2729 = vmatprep.subr.mxu0 0.0
        %2730 = vmatpush1.msra.mxu0 0.0
        %2731 = vmatprep.subr.mxu0 0.0
        %2732 = vmatpush1.msra.mxu0 0.0
        %2733 = vmatprep.subr.mxu0 0.0
        %2734 = vmatpush1.msra.mxu0 0.0
        %2735 = vmatprep.subr.mxu0 0.0
        %2736 = vmatpush1.msra.mxu0 0.0
        %2737 = vmatprep.subr.mxu0 0.0
        %2738 = vmatpush1.msra.mxu0 0.0
        %2739 = vmatprep.subr.mxu0 0.0
        %2740 = vmatpush1.msra.mxu0 0.0
        %2741 = vmatprep.subr.mxu0 0.0
        %2742 = vmatpush1.msra.mxu0 0.0
        %2743 = vmatprep.subr.mxu0 0.0
        %2744 = vmatpush1.msra.mxu0 0.0
        %2745 = vmatprep.subr.mxu0 0.0
        %2746 = vmatpush1.msra.mxu0 0.0
        %2747 = vmatprep.subr.mxu0 0.0
        %2748 = vmatpush1.msra.mxu0 0.0
        %2749 = vmatprep.subr.mxu0 0.0
        %2750 = vmatpush1.msra.mxu0 0.0
        %2751 = vmatprep.subr.mxu0 0.0
        %2752 = vmatpush1.msra.mxu0 0.0
        %2753 = vmatprep.subr.mxu0 0.0
        %2754 = vmatpush1.msra.mxu0 0.0
        %2755 = vmatprep.subr.mxu0 0.0
        %2756 = vmatpush1.msra.mxu0 0.0
        %2757 = vmatprep.subr.mxu0 0.0
        %2758 = vmatpush1.msra.mxu0 0.0
        %2759 = vmatprep.subr.mxu0 0.0
        %2760 = vmatpush1.msra.mxu0 0.0
        %2761 = vmatprep.subr.mxu0 0.0
        %2762 = vmatpush1.msra.mxu0 0.0
        %2763 = vmatprep.subr.mxu0 0.0
        %2764 = vmatpush1.msra.mxu0 0.0
        %2765 = vmatprep.subr.mxu0 0.0
        %2766 = vmatpush1.msra.mxu0 0.0
        %2767 = vmatprep.subr.mxu0 0.0
        %2768 = vmatpush1.msra.mxu0 0.0
        %2769 = vmatprep.subr.mxu0 0.0
        %2770 = vmatpush1.msra.mxu0 0.0
        %2771 = vmatprep.mubr.f32.mxu0 0.0
        %2772 = vmatmul.mubr.f32.gmra.mrb[0].mxu0 %v2705
        %v2773 = vpop.f32.mrb[0].mxu0
        %v2774 = vadd.f32 0.0, %v2773
        %v2775 = vpop.f32.mrb[0].mxu0
        %2776 = vdwg.mxu0
        %v2777 = vadd.f32 %v2536, %v2774
        %2778 = vrot.lane.b32.xlu0 %v2062, 104
        %v2779 = vpop.permute.xlu0 %2778
        %2780 = vrot.lane.b32.xlu0 %v2054, 72
        %v2781 = vpop.permute.xlu0 %2780
        %v2782 = vsel %vm769, %v2779, 0
        %v2784 = vsel %vm769, %v2781, 0
        %2786 = vmatprep.subr.mxu0 0.0
        %2787 = vmatpush1.xpose.msra.mxu0 %v2784
        %2788 = vmatprep.subr.mxu0 0.0
        %2789 = vmatpush1.xpose.msra.mxu0 0.0
        %2790 = vmatprep.subr.mxu0 0.0
        %2791 = vmatpush1.xpose.msra.mxu0 0.0
        %2792 = vmatprep.subr.mxu0 0.0
        %2793 = vmatpush1.xpose.msra.mxu0 0.0
        %2794 = vmatprep.subr.mxu0 0.0
        %2795 = vmatpush1.xpose.msra.mxu0 0.0
        %2796 = vmatprep.subr.mxu0 0.0
        %2797 = vmatpush1.xpose.msra.mxu0 0.0
        %2798 = vmatprep.subr.mxu0 0.0
        %2799 = vmatpush1.xpose.msra.mxu0 0.0
        %2800 = vmatprep.subr.mxu0 0.0
        %2801 = vmatpush1.xpose.msra.mxu0 0.0
        %2802 = vmatprep.subr.mxu0 0.0
        %2803 = vmatpush1.xpose.msra.mxu0 0.0
        %2804 = vmatprep.subr.mxu0 0.0
        %2805 = vmatpush1.xpose.msra.mxu0 0.0
        %2806 = vmatprep.subr.mxu0 0.0
        %2807 = vmatpush1.xpose.msra.mxu0 0.0
        %2808 = vmatprep.subr.mxu0 0.0
        %2809 = vmatpush1.xpose.msra.mxu0 0.0
        %2810 = vmatprep.subr.mxu0 0.0
        %2811 = vmatpush1.xpose.msra.mxu0 0.0
        %2812 = vmatprep.subr.mxu0 0.0
        %2813 = vmatpush1.xpose.msra.mxu0 0.0
        %2814 = vmatprep.subr.mxu0 0.0
        %2815 = vmatpush1.xpose.msra.mxu0 0.0
        %2816 = vmatprep.subr.mxu0 0.0
        %2817 = vmatpush1.xpose.msra.mxu0 0.0
        %2818 = vmatprep.subr.mxu0 0.0
        %2819 = vmatpush1.xpose.msra.mxu0 0.0
        %2820 = vmatprep.subr.mxu0 0.0
        %2821 = vmatpush1.xpose.msra.mxu0 0.0
        %2822 = vmatprep.subr.mxu0 0.0
        %2823 = vmatpush1.xpose.msra.mxu0 0.0
        %2824 = vmatprep.subr.mxu0 0.0
        %2825 = vmatpush1.xpose.msra.mxu0 0.0
        %2826 = vmatprep.subr.mxu0 0.0
        %2827 = vmatpush1.xpose.msra.mxu0 0.0
        %2828 = vmatprep.subr.mxu0 0.0
        %2829 = vmatpush1.xpose.msra.mxu0 0.0
        %2830 = vmatprep.subr.mxu0 0.0
        %2831 = vmatpush1.xpose.msra.mxu0 0.0
        %2832 = vmatprep.subr.mxu0 0.0
        %2833 = vmatpush1.xpose.msra.mxu0 0.0
        %2834 = vmatprep.subr.mxu0 0.0
        %2835 = vmatpush1.xpose.msra.mxu0 0.0
        %2836 = vmatprep.subr.mxu0 0.0
        %2837 = vmatpush1.xpose.msra.mxu0 0.0
        %2838 = vmatprep.subr.mxu0 0.0
        %2839 = vmatpush1.xpose.msra.mxu0 0.0
        %2840 = vmatprep.subr.mxu0 0.0
        %2841 = vmatpush1.xpose.msra.mxu0 0.0
        %2842 = vmatprep.subr.mxu0 0.0
        %2843 = vmatpush1.xpose.msra.mxu0 0.0
        %2844 = vmatprep.subr.mxu0 0.0
        %2845 = vmatpush1.xpose.msra.mxu0 0.0
        %2846 = vmatprep.subr.mxu0 0.0
        %2847 = vmatpush1.xpose.msra.mxu0 0.0
        %2848 = vmatprep.subr.mxu0 0.0
        %2849 = vmatpush1.xpose.msra.mxu0 0.0
        %2850 = vmatprep.mubr.f32.mxu0 0.0
        %2851 = vmatmul.mubr.f32.gmra.mrb[0].mxu0 %v2782
        %v2852 = vpop.f32.mrb[0].mxu0
        %v2853 = vadd.f32 %v764, %v2852
        %v2854 = vpop.f32.mrb[0].mxu0
        %2855 = vdwg.mxu0
        %v2856 = vsel %vm769, %v2853, -inf
        %2857 = vmax.xlane.f32.xlu0 %v2856
        %v2858 = vpop.xlane.xlu0 %2857
        %v2859 = vsub.f32 %v2853, %v2858
        %v2860 = vmul.f32 %v2859, 1.442695
        %v2861 = vpow.pop %v2860
        %v2862 = vsel %vm769, %v2861, 0.0
        %2863 = vadd.xlane.f32.xlu0 %v2862
        %v2864 = vpop.xlane.xlu0 %2863
        %v2865 = vrcp.pop %v2864
        %v2866 = vmul.f32 %v2861, %v2865
        %2867 = vrot.lane.b32.xlu0 %v2054, 40
        %v2868 = vpop.permute.xlu0 %2867
        %v2871 = vsel %vm769, %v2866, 0
        %2873 = vmatprep.subr.mxu0 0.0
        %2874 = vmatpush1.msra.mxu0 %v2868
        %2875 = vmatprep.subr.mxu0 0.0
        %2876 = vmatpush1.msra.mxu0 0.0
        %2877 = vmatprep.subr.mxu0 0.0
        %2878 = vmatpush1.msra.mxu0 0.0
        %2879 = vmatprep.subr.mxu0 0.0
        %2880 = vmatpush1.msra.mxu0 0.0
        %2881 = vmatprep.subr.mxu0 0.0
        %2882 = vmatpush1.msra.mxu0 0.0
        %2883 = vmatprep.subr.mxu0 0.0
        %2884 = vmatpush1.msra.mxu0 0.0
        %2885 = vmatprep.subr.mxu0 0.0
        %2886 = vmatpush1.msra.mxu0 0.0
        %2887 = vmatprep.subr.mxu0 0.0
        %2888 = vmatpush1.msra.mxu0 0.0
        %2889 = vmatprep.subr.mxu0 0.0
        %2890 = vmatpush1.msra.mxu0 0.0
        %2891 = vmatprep.subr.mxu0 0.0
        %2892 = vmatpush1.msra.mxu0 0.0
        %2893 = vmatprep.subr.mxu0 0.0
        %2894 = vmatpush1.msra.mxu0 0.0
        %2895 = vmatprep.subr.mxu0 0.0
        %2896 = vmatpush1.msra.mxu0 0.0
        %2897 = vmatprep.subr.mxu0 0.0
        %2898 = vmatpush1.msra.mxu0 0.0
        %2899 = vmatprep.subr.mxu0 0.0
        %2900 = vmatpush1.msra.mxu0 0.0
        %2901 = vmatprep.subr.mxu0 0.0
        %2902 = vmatpush1.msra.mxu0 0.0
        %2903 = vmatprep.subr.mxu0 0.0
        %2904 = vmatpush1.msra.mxu0 0.0
        %2905 = vmatprep.subr.mxu0 0.0
        %2906 = vmatpush1.msra.mxu0 0.0
        %2907 = vmatprep.subr.mxu0 0.0
        %2908 = vmatpush1.msra.mxu0 0.0
        %2909 = vmatprep.subr.mxu0 0.0
        %2910 = vmatpush1.msra.mxu0 0.0
        %2911 = vmatprep.subr.mxu0 0.0
        %2912 = vmatpush1.msra.mxu0 0.0
        %2913 = vmatprep.subr.mxu0 0.0
        %2914 = vmatpush1.msra.mxu0 0.0
        %2915 = vmatprep.subr.mxu0 0.0
        %2916 = vmatpush1.msra.mxu0 0.0
        %2917 = vmatprep.subr.mxu0 0.0
        %2918 = vmatpush1.msra.mxu0 0.0
        %2919 = vmatprep.subr.mxu0 0.0
        %2920 = vmatpush1.msra.mxu0 0.0
        %2921 = vmatprep.subr.mxu0 0.0
        %2922 = vmatpush1.msra.mxu0 0.0
        %2923 = vmatprep.subr.mxu0 0.0
        %2924 = vmatpush1.msra.mxu0 0.0
        %2925 = vmatprep.subr.mxu0 0.0
        %2926 = vmatpush1.msra.mxu0 0.0
        %2927 = vmatprep.subr.mxu0 0.0
        %2928 = vmatpush1.msra.mxu0 0.0
        %2929 = vmatprep.subr.mxu0 0.0
        %2930 = vmatpush1.msra.mxu0 0.0
        %2931 = vmatprep.subr.mxu0 0.0
        %2932 = vmatpush1.msra.mxu0 0.0
        %2933 = vmatprep.subr.mxu0 0.0
        %2934 = vmatpush1.msra.mxu0 0.0
        %2935 = vmatprep.subr.mxu0 0.0
        %2936 = vmatpush1.msra.mxu0 0.0
        %2937 = vmatprep.mubr.f32.mxu0 0.0
        %2938 = vmatmul.mubr.f32.gmra.mrb[0].mxu0 %v2871
        %v2939 = vpop.f32.mrb[0].mxu0
        %v2940 = vadd.f32 0.0, %v2939
        %v2941 = vpop.f32.mrb[0].mxu0
        %2942 = vdwg.mxu0
        %v2944 = vsel %vm769, %v2940, 0
        %2946 = vmatprep.subr.mxu0 0.0
        %2947 = vmatpush1.msra.mxu0 %v2061
        %2948 = vmatprep.subr.mxu0 0.0
        %2949 = vmatpush1.msra.mxu0 0.0
        %2950 = vmatprep.subr.mxu0 0.0
        %2951 = vmatpush1.msra.mxu0 0.0
        %2952 = vmatprep.subr.mxu0 0.0
        %2953 = vmatpush1.msra.mxu0 0.0
        %2954 = vmatprep.subr.mxu0 0.0
        %2955 = vmatpush1.msra.mxu0 0.0
        %2956 = vmatprep.subr.mxu0 0.0
        %2957 = vmatpush1.msra.mxu0 0.0
        %2958 = vmatprep.subr.mxu0 0.0
        %2959 = vmatpush1.msra.mxu0 0.0
        %2960 = vmatprep.subr.mxu0 0.0
        %2961 = vmatpush1.msra.mxu0 0.0
        %2962 = vmatprep.subr.mxu0 0.0
        %2963 = vmatpush1.msra.mxu0 0.0
        %2964 = vmatprep.subr.mxu0 0.0
        %2965 = vmatpush1.msra.mxu0 0.0
        %2966 = vmatprep.subr.mxu0 0.0
        %2967 = vmatpush1.msra.mxu0 0.0
        %2968 = vmatprep.subr.mxu0 0.0
        %2969 = vmatpush1.msra.mxu0 0.0
        %2970 = vmatprep.subr.mxu0 0.0
        %2971 = vmatpush1.msra.mxu0 0.0
        %2972 = vmatprep.subr.mxu0 0.0
        %2973 = vmatpush1.msra.mxu0 0.0
        %2974 = vmatprep.subr.mxu0 0.0
        %2975 = vmatpush1.msra.mxu0 0.0
        %2976 = vmatprep.subr.mxu0 0.0
        %2977 = vmatpush1.msra.mxu0 0.0
        %2978 = vmatprep.subr.mxu0 0.0
        %2979 = vmatpush1.msra.mxu0 0.0
        %2980 = vmatprep.subr.mxu0 0.0
        %2981 = vmatpush1.msra.mxu0 0.0
        %2982 = vmatprep.subr.mxu0 0.0
        %2983 = vmatpush1.msra.mxu0 0.0
        %2984 = vmatprep.subr.mxu0 0.0
        %2985 = vmatpush1.msra.mxu0 0.0
        %2986 = vmatprep.subr.mxu0 0.0
        %2987 = vmatpush1.msra.mxu0 0.0
        %2988 = vmatprep.subr.mxu0 0.0
        %2989 = vmatpush1.msra.mxu0 0.0
        %2990 = vmatprep.subr.mxu0 0.0
        %2991 = vmatpush1.msra.mxu0 0.0
        %2992 = vmatprep.subr.mxu0 0.0
        %2993 = vmatpush1.msra.mxu0 0.0
        %2994 = vmatprep.subr.mxu0 0.0
        %2995 = vmatpush1.msra.mxu0 0.0
        %2996 = vmatprep.subr.mxu0 0.0
        %2997 = vmatpush1.msra.mxu0 0.0
        %2998 = vmatprep.subr.mxu0 0.0
        %2999 = vmatpush1.msra.mxu0 0.0
        %3000 = vmatprep.subr.mxu0 0.0
        %3001 = vmatpush1.msra.mxu0 0.0
        %3002 = vmatprep.subr.mxu0 0.0
        %3003 = vmatpush1.msra.mxu0 0.0
        %3004 = vmatprep.subr.mxu0 0.0
        %3005 = vmatpush1.msra.mxu0 0.0
        %3006 = vmatprep.subr.mxu0 0.0
        %3007 = vmatpush1.msra.mxu0 0.0
        %3008 = vmatprep.subr.mxu0 0.0
        %3009 = vmatpush1.msra.mxu0 0.0
        %3010 = vmatprep.mubr.f32.mxu0 0.0
        %3011 = vmatmul.mubr.f32.gmra.mrb[0].mxu0 %v2944
        %v3012 = vpop.f32.mrb[0].mxu0
        %v3013 = vadd.f32 0.0, %v3012
        %v3014 = vpop.f32.mrb[0].mxu0
        %3015 = vdwg.mxu0
        %v3016 = vadd.f32 %v2777, %v3013
        %s3017 = scalar_lea.vmem %s7, 1
        %v3018 = vld [vmem:[%s3017] sm:$0x1]
        %v3020 = vlaneseq
        %v3021 = vshrl.u32 %v3020, 7
        %v3022 = vsub.s32 0, %v3021
        %v3023 = vrot.slane %v3018, %v3022
        %v3025 = vadd.f32 %v3016, %v3023
        %v3026 = vadd.f32 %v3025, %v1970
        %s3027 = scalar_lea.vmem %s8, 1
        %v3028 = vld [vmem:[%s3027] sm:$0x1]
        %s3029 = scalar_lea.vmem %s9, 1
        %v3030 = vld [vmem:[%s3029] sm:$0x1]
        %v3031 = vsel %vm641, %v3026, 0.0
        %3032 = vadd.xlane.f32.xlu0 %v3031
        %v3033 = vpop.xlane.xlu0 %3032
        %v3034 = vmul.f32 %v3033, %v645
        %v3035 = vsub.f32 %v3026, %v3034
        %v3036 = vmul.f32 %v3035, %v3035
        %v3037 = vsel %vm641, %v3036, 0.0
        %3038 = vadd.xlane.f32.xlu0 %v3037
        %v3039 = vpop.xlane.xlu0 %3038
        %v3040 = vmul.f32 %v3039, %v645
        %v3041 = vadd.f32 %v3040, 1e-12
        %v3042 = vrsqrt.pop %v3041
        %v3043 = vmul.f32 %v3035, %v3042
        %v3045 = vlaneseq
        %v3046 = vshrl.u32 %v3045, 7
        %v3047 = vsub.s32 0, %v3046
        %v3048 = vrot.slane %v3028, %v3047
        %v3050 = vmul.f32 %v3043, %v3048
        %v3052 = vlaneseq
        %v3053 = vshrl.u32 %v3052, 7
        %v3054 = vsub.s32 0, %v3053
        %v3055 = vrot.slane %v3030, %v3054
        %v3057 = vadd.f32 %v3050, %v3055
        %s3058 = scalar_lea.vmem %s10, 32
        %v3059 = vld [vmem:[%s3058] sm:$0xff]
        %v3060 = vld [vmem:[%s3058 + $0x8] sm:$0xff]
        %v3061 = vld [vmem:[%s3058 + $0x10] sm:$0xff]
        %v3062 = vld [vmem:[%s3058 + $0x18] sm:$0xff]
        %s3063 = scalar_lea.vmem %s11, 1
        %v3064 = vld [vmem:[%s3063] sm:$0x1]
        %v3066 = vlaneseq
        %v3067 = vshrl.u32 %v3066, 7
        %v3068 = vsub.s32 0, %v3067
        %v3069 = vrot.slane %v3064, %v3068
        %v3072 = vsel %vm641, %v3057, 0
        %3074 = vmatprep.subr.mxu0 0.0
        %3075 = vmatpush1.msra.mxu0 %v3059
        %3076 = vmatprep.subr.mxu0 0.0
        %3077 = vmatpush1.msra.mxu0 %v3060
        %3078 = vmatprep.subr.mxu0 0.0
        %3079 = vmatpush1.msra.mxu0 %v3061
        %3080 = vmatprep.subr.mxu0 0.0
        %3081 = vmatpush1.msra.mxu0 %v3062
        %3082 = vmatprep.subr.mxu0 0.0
        %3083 = vmatpush1.msra.mxu0 0.0
        %3084 = vmatprep.subr.mxu0 0.0
        %3085 = vmatpush1.msra.mxu0 0.0
        %3086 = vmatprep.subr.mxu0 0.0
        %3087 = vmatpush1.msra.mxu0 0.0
        %3088 = vmatprep.subr.mxu0 0.0
        %3089 = vmatpush1.msra.mxu0 0.0
        %3090 = vmatprep.subr.mxu0 0.0
        %3091 = vmatpush1.msra.mxu0 0.0
        %3092 = vmatprep.subr.mxu0 0.0
        %3093 = vmatpush1.msra.mxu0 0.0
        %3094 = vmatprep.subr.mxu0 0.0
        %3095 = vmatpush1.msra.mxu0 0.0
        %3096 = vmatprep.subr.mxu0 0.0
        %3097 = vmatpush1.msra.mxu0 0.0
        %3098 = vmatprep.subr.mxu0 0.0
        %3099 = vmatpush1.msra.mxu0 0.0
        %3100 = vmatprep.subr.mxu0 0.0
        %3101 = vmatpush1.msra.mxu0 0.0
        %3102 = vmatprep.subr.mxu0 0.0
        %3103 = vmatpush1.msra.mxu0 0.0
        %3104 = vmatprep.subr.mxu0 0.0
        %3105 = vmatpush1.msra.mxu0 0.0
        %3106 = vmatprep.subr.mxu0 0.0
        %3107 = vmatpush1.msra.mxu0 0.0
        %3108 = vmatprep.subr.mxu0 0.0
        %3109 = vmatpush1.msra.mxu0 0.0
        %3110 = vmatprep.subr.mxu0 0.0
        %3111 = vmatpush1.msra.mxu0 0.0
        %3112 = vmatprep.subr.mxu0 0.0
        %3113 = vmatpush1.msra.mxu0 0.0
        %3114 = vmatprep.subr.mxu0 0.0
        %3115 = vmatpush1.msra.mxu0 0.0
        %3116 = vmatprep.subr.mxu0 0.0
        %3117 = vmatpush1.msra.mxu0 0.0
        %3118 = vmatprep.subr.mxu0 0.0
        %3119 = vmatpush1.msra.mxu0 0.0
        %3120 = vmatprep.subr.mxu0 0.0
        %3121 = vmatpush1.msra.mxu0 0.0
        %3122 = vmatprep.subr.mxu0 0.0
        %3123 = vmatpush1.msra.mxu0 0.0
        %3124 = vmatprep.subr.mxu0 0.0
        %3125 = vmatpush1.msra.mxu0 0.0
        %3126 = vmatprep.subr.mxu0 0.0
        %3127 = vmatpush1.msra.mxu0 0.0
        %3128 = vmatprep.subr.mxu0 0.0
        %3129 = vmatpush1.msra.mxu0 0.0
        %3130 = vmatprep.subr.mxu0 0.0
        %3131 = vmatpush1.msra.mxu0 0.0
        %3132 = vmatprep.subr.mxu0 0.0
        %3133 = vmatpush1.msra.mxu0 0.0
        %3134 = vmatprep.subr.mxu0 0.0
        %3135 = vmatpush1.msra.mxu0 0.0
        %3136 = vmatprep.subr.mxu0 0.0
        %3137 = vmatpush1.msra.mxu0 0.0
        %3138 = vmatprep.mubr.f32.mxu0 0.0
        %3139 = vmatmul.mubr.f32.gmra.mrb[0].mxu0 %v3072
        %v3140 = vpop.f32.mrb[0].mxu0
        %v3141 = vadd.f32 %v3069, %v3140
        %v3142 = vpop.f32.mrb[0].mxu0
        %3143 = vdwg.mxu0
        %v3144 = vmul.f32 %v3141, 0.5
        %v3145 = vmul.f32 %v3141, 0.044715
        %v3146 = vmul.f32 %v3145, %v3141
        %v3147 = vmul.f32 %v3146, %v3141
        %v3148 = vadd.f32 %v3141, %v3147
        %v3149 = vmul.f32 %v3148, 0.7978846
        %v3150 = vtanh.pop %v3149
        %v3151 = vadd.f32 %v3150, 1.0
        %v3152 = vmul.f32 %v3144, %v3151
        %s3153 = scalar_lea.vmem %s12, 64
        %v3154 = vld [vmem:[%s3153] sm:$0xff]
        %v3155 = vld [vmem:[%s3153 + $0x8] sm:$0xff]
        %v3156 = vld [vmem:[%s3153 + $0x10] sm:$0xff]
        %v3157 = vld [vmem:[%s3153 + $0x18] sm:$0xff]
        %v3158 = vld [vmem:[%s3153 + $0x20] sm:$0xff]
        %v3159 = vld [vmem:[%s3153 + $0x28] sm:$0xff]
        %v3160 = vld [vmem:[%s3153 + $0x30] sm:$0xff]
        %v3161 = vld [vmem:[%s3153 + $0x38] sm:$0xff]
        %s3162 = scalar_lea.vmem %s13, 1
        %v3163 = vld [vmem:[%s3162] sm:$0x1]
        %v3165 = vlaneseq
        %v3166 = vshrl.u32 %v3165, 7
        %v3167 = vsub.s32 0, %v3166
        %v3168 = vrot.slane %v3163, %v3167
        %v3171 = vsel %vm1867, %v3152, 0
        %3173 = vmatprep.subr.mxu0 0.0
        %3174 = vmatpush1.msra.mxu0 %v3154
        %3175 = vmatprep.subr.mxu0 0.0
        %3176 = vmatpush1.msra.mxu0 %v3155
        %3177 = vmatprep.subr.mxu0 0.0
        %3178 = vmatpush1.msra.mxu0 %v3156
        %3179 = vmatprep.subr.mxu0 0.0
        %3180 = vmatpush1.msra.mxu0 %v3157
        %3181 = vmatprep.subr.mxu0 0.0
        %3182 = vmatpush1.msra.mxu0 %v3158
        %3183 = vmatprep.subr.mxu0 0.0
        %3184 = vmatpush1.msra.mxu0 %v3159
        %3185 = vmatprep.subr.mxu0 0.0
        %3186 = vmatpush1.msra.mxu0 %v3160
        %3187 = vmatprep.subr.mxu0 0.0
        %3188 = vmatpush1.msra.mxu0 %v3161
        %3189 = vmatprep.subr.mxu0 0.0
        %3190 = vmatpush1.msra.mxu0 0.0
        %3191 = vmatprep.subr.mxu0 0.0
        %3192 = vmatpush1.msra.mxu0 0.0
        %3193 = vmatprep.subr.mxu0 0.0
        %3194 = vmatpush1.msra.mxu0 0.0
        %3195 = vmatprep.subr.mxu0 0.0
        %3196 = vmatpush1.msra.mxu0 0.0
        %3197 = vmatprep.subr.mxu0 0.0
        %3198 = vmatpush1.msra.mxu0 0.0
        %3199 = vmatprep.subr.mxu0 0.0
        %3200 = vmatpush1.msra.mxu0 0.0
        %3201 = vmatprep.subr.mxu0 0.0
        %3202 = vmatpush1.msra.mxu0 0.0
        %3203 = vmatprep.subr.mxu0 0.0
        %3204 = vmatpush1.msra.mxu0 0.0
        %3205 = vmatprep.subr.mxu0 0.0
        %3206 = vmatpush1.msra.mxu0 0.0
        %3207 = vmatprep.subr.mxu0 0.0
        %3208 = vmatpush1.msra.mxu0 0.0
        %3209 = vmatprep.subr.mxu0 0.0
        %3210 = vmatpush1.msra.mxu0 0.0
        %3211 = vmatprep.subr.mxu0 0.0
        %3212 = vmatpush1.msra.mxu0 0.0
        %3213 = vmatprep.subr.mxu0 0.0
        %3214 = vmatpush1.msra.mxu0 0.0
        %3215 = vmatprep.subr.mxu0 0.0
        %3216 = vmatpush1.msra.mxu0 0.0
        %3217 = vmatprep.subr.mxu0 0.0
        %3218 = vmatpush1.msra.mxu0 0.0
        %3219 = vmatprep.subr.mxu0 0.0
        %3220 = vmatpush1.msra.mxu0 0.0
        %3221 = vmatprep.subr.mxu0 0.0
        %3222 = vmatpush1.msra.mxu0 0.0
        %3223 = vmatprep.subr.mxu0 0.0
        %3224 = vmatpush1.msra.mxu0 0.0
        %3225 = vmatprep.subr.mxu0 0.0
        %3226 = vmatpush1.msra.mxu0 0.0
        %3227 = vmatprep.subr.mxu0 0.0
        %3228 = vmatpush1.msra.mxu0 0.0
        %3229 = vmatprep.subr.mxu0 0.0
        %3230 = vmatpush1.msra.mxu0 0.0
        %3231 = vmatprep.subr.mxu0 0.0
        %3232 = vmatpush1.msra.mxu0 0.0
        %3233 = vmatprep.subr.mxu0 0.0
        %3234 = vmatpush1.msra.mxu0 0.0
        %3235 = vmatprep.subr.mxu0 0.0
        %3236 = vmatpush1.msra.mxu0 0.0
        %3237 = vmatprep.mubr.f32.mxu0 0.0
        %3238 = vmatmul.mubr.f32.gmra.mrb[0].mxu0 %v3171
        %v3239 = vpop.f32.mrb[0].mxu0
        %v3240 = vadd.f32 %v3168, %v3239
        %v3241 = vpop.f32.mrb[0].mxu0
        %3242 = vdwg.mxu0
        %v3243 = vadd.f32 %v3240, %v3057
        %s3244 = scalar_lea.vmem %s14, 1
        %v3245 = vld [vmem:[%s3244] sm:$0x1]
        %s3246 = scalar_lea.vmem %s15, 1
        %v3247 = vld [vmem:[%s3246] sm:$0x1]
        %v3248 = vsel %vm641, %v3243, 0.0
        %3249 = vadd.xlane.f32.xlu0 %v3248
        %v3250 = vpop.xlane.xlu0 %3249
        %v3251 = vmul.f32 %v3250, %v645
        %v3252 = vsub.f32 %v3243, %v3251
        %v3253 = vmul.f32 %v3252, %v3252
        %v3254 = vsel %vm641, %v3253, 0.0
        %3255 = vadd.xlane.f32.xlu0 %v3254
        %v3256 = vpop.xlane.xlu0 %3255
        %v3257 = vmul.f32 %v3256, %v645
        %v3258 = vadd.f32 %v3257, 1e-12
        %v3259 = vrsqrt.pop %v3258
        %v3260 = vmul.f32 %v3252, %v3259
        %v3262 = vlaneseq
        %v3263 = vshrl.u32 %v3262, 7
        %v3264 = vsub.s32 0, %v3263
        %v3265 = vrot.slane %v3245, %v3264
        %v3267 = vmul.f32 %v3260, %v3265
        %v3269 = vlaneseq
        %v3270 = vshrl.u32 %v3269, 7
        %v3271 = vsub.s32 0, %v3270
        %v3272 = vrot.slane %v3247, %v3271
        %v3274 = vadd.f32 %v3267, %v3272
        %v3275 = vld [vmem:[%s16] sm:$0xff]
        %v3276 = vld [vmem:[%s16 + $0x8] sm:$0xff]
        %v3277 = vld [vmem:[%s16 + $0x10] sm:$0xff]
        %v3278 = vld [vmem:[%s16 + $0x18] sm:$0xff]
        %v3279 = vld [vmem:[%s17] sm:$0x1]
        %v3281 = vsel %vm641, %v3274, 0
        %3283 = vmatprep.subr.mxu0 0.0
        %3284 = vmatpush1.msra.mxu0 %v3275
        %3285 = vmatprep.subr.mxu0 0.0
        %3286 = vmatpush1.msra.mxu0 %v3276
        %3287 = vmatprep.subr.mxu0 0.0
        %3288 = vmatpush1.msra.mxu0 %v3277
        %3289 = vmatprep.subr.mxu0 0.0
        %3290 = vmatpush1.msra.mxu0 %v3278
        %3291 = vmatprep.subr.mxu0 0.0
        %3292 = vmatpush1.msra.mxu0 0.0
        %3293 = vmatprep.subr.mxu0 0.0
        %3294 = vmatpush1.msra.mxu0 0.0
        %3295 = vmatprep.subr.mxu0 0.0
        %3296 = vmatpush1.msra.mxu0 0.0
        %3297 = vmatprep.subr.mxu0 0.0
        %3298 = vmatpush1.msra.mxu0 0.0
        %3299 = vmatprep.subr.mxu0 0.0
        %3300 = vmatpush1.msra.mxu0 0.0
        %3301 = vmatprep.subr.mxu0 0.0
        %3302 = vmatpush1.msra.mxu0 0.0
        %3303 = vmatprep.subr.mxu0 0.0
        %3304 = vmatpush1.msra.mxu0 0.0
        %3305 = vmatprep.subr.mxu0 0.0
        %3306 = vmatpush1.msra.mxu0 0.0
        %3307 = vmatprep.subr.mxu0 0.0
        %3308 = vmatpush1.msra.mxu0 0.0
        %3309 = vmatprep.subr.mxu0 0.0
        %3310 = vmatpush1.msra.mxu0 0.0
        %3311 = vmatprep.subr.mxu0 0.0
        %3312 = vmatpush1.msra.mxu0 0.0
        %3313 = vmatprep.subr.mxu0 0.0
        %3314 = vmatpush1.msra.mxu0 0.0
        %3315 = vmatprep.subr.mxu0 0.0
        %3316 = vmatpush1.msra.mxu0 0.0
        %3317 = vmatprep.subr.mxu0 0.0
        %3318 = vmatpush1.msra.mxu0 0.0
        %3319 = vmatprep.subr.mxu0 0.0
        %3320 = vmatpush1.msra.mxu0 0.0
        %3321 = vmatprep.subr.mxu0 0.0
        %3322 = vmatpush1.msra.mxu0 0.0
        %3323 = vmatprep.subr.mxu0 0.0
        %3324 = vmatpush1.msra.mxu0 0.0
        %3325 = vmatprep.subr.mxu0 0.0
        %3326 = vmatpush1.msra.mxu0 0.0
        %3327 = vmatprep.subr.mxu0 0.0
        %3328 = vmatpush1.msra.mxu0 0.0
        %3329 = vmatprep.subr.mxu0 0.0
        %3330 = vmatpush1.msra.mxu0 0.0
        %3331 = vmatprep.subr.mxu0 0.0
        %3332 = vmatpush1.msra.mxu0 0.0
        %3333 = vmatprep.subr.mxu0 0.0
        %3334 = vmatpush1.msra.mxu0 0.0
        %3335 = vmatprep.subr.mxu0 0.0
        %3336 = vmatpush1.msra.mxu0 0.0
        %3337 = vmatprep.subr.mxu0 0.0
        %3338 = vmatpush1.msra.mxu0 0.0
        %3339 = vmatprep.subr.mxu0 0.0
        %3340 = vmatpush1.msra.mxu0 0.0
        %3341 = vmatprep.subr.mxu0 0.0
        %3342 = vmatpush1.msra.mxu0 0.0
        %3343 = vmatprep.subr.mxu0 0.0
        %3344 = vmatpush1.msra.mxu0 0.0
        %3345 = vmatprep.subr.mxu0 0.0
        %3346 = vmatpush1.msra.mxu0 0.0
        %3347 = vmatprep.mubr.f32.mxu0 0.0
        %3348 = vmatmul.mubr.f32.gmra.mrb[0].mxu0 %v3281
        %v3349 = vpop.f32.mrb[0].mxu0
        %v3350 = vadd.f32 %v3279, %v3349
        %v3351 = vpop.f32.mrb[0].mxu0
        %3352 = vdwg.mxu0
        %v3353 = vtanh.pop %v3350
        %v3354 = vld [vmem:[%s18] sm:$0xff]
        %v3355 = vld [vmem:[%s18 + $0x8] sm:$0xff]
        %v3356 = vld [vmem:[%s18 + $0x10] sm:$0xff]
        %v3357 = vld [vmem:[%s18 + $0x18] sm:$0xff]
        %v3358 = vld [vmem:[%s19] sm:$0x1]
        %v3360 = vsel %vm641, %v3353, 0
        %3362 = vmatprep.subr.mxu0 0.0
        %3363 = vmatpush1.msra.mxu0 %v3354
        %3364 = vmatprep.subr.mxu0 0.0
        %3365 = vmatpush1.msra.mxu0 %v3355
        %3366 = vmatprep.subr.mxu0 0.0
        %3367 = vmatpush1.msra.mxu0 %v3356
        %3368 = vmatprep.subr.mxu0 0.0
        %3369 = vmatpush1.msra.mxu0 %v3357
        %3370 = vmatprep.subr.mxu0 0.0
        %3371 = vmatpush1.msra.mxu0 0.0
        %3372 = vmatprep.subr.mxu0 0.0
        %3373 = vmatpush1.msra.mxu0 0.0
        %3374 = vmatprep.subr.mxu0 0.0
        %3375 = vmatpush1.msra.mxu0 0.0
        %3376 = vmatprep.subr.mxu0 0.0
        %3377 = vmatpush1.msra.mxu0 0.0
        %3378 = vmatprep.subr.mxu0 0.0
        %3379 = vmatpush1.msra.mxu0 0.0
        %3380 = vmatprep.subr.mxu0 0.0
        %3381 = vmatpush1.msra.mxu0 0.0
        %3382 = vmatprep.subr.mxu0 0.0
        %3383 = vmatpush1.msra.mxu0 0.0
        %3384 = vmatprep.subr.mxu0 0.0
        %3385 = vmatpush1.msra.mxu0 0.0
        %3386 = vmatprep.subr.mxu0 0.0
        %3387 = vmatpush1.msra.mxu0 0.0
        %3388 = vmatprep.subr.mxu0 0.0
        %3389 = vmatpush1.msra.mxu0 0.0
        %3390 = vmatprep.subr.mxu0 0.0
        %3391 = vmatpush1.msra.mxu0 0.0
        %3392 = vmatprep.subr.mxu0 0.0
        %3393 = vmatpush1.msra.mxu0 0.0
        %3394 = vmatprep.subr.mxu0 0.0
        %3395 = vmatpush1.msra.mxu0 0.0
        %3396 = vmatprep.subr.mxu0 0.0
        %3397 = vmatpush1.msra.mxu0 0.0
        %3398 = vmatprep.subr.mxu0 0.0
        %3399 = vmatpush1.msra.mxu0 0.0
        %3400 = vmatprep.subr.mxu0 0.0
        %3401 = vmatpush1.msra.mxu0 0.0
        %3402 = vmatprep.subr.mxu0 0.0
        %3403 = vmatpush1.msra.mxu0 0.0
        %3404 = vmatprep.subr.mxu0 0.0
        %3405 = vmatpush1.msra.mxu0 0.0
        %3406 = vmatprep.subr.mxu0 0.0
        %3407 = vmatpush1.msra.mxu0 0.0
        %3408 = vmatprep.subr.mxu0 0.0
        %3409 = vmatpush1.msra.mxu0 0.0
        %3410 = vmatprep.subr.mxu0 0.0
        %3411 = vmatpush1.msra.mxu0 0.0
        %3412 = vmatprep.subr.mxu0 0.0
        %3413 = vmatpush1.msra.mxu0 0.0
        %3414 = vmatprep.subr.mxu0 0.0
        %3415 = vmatpush1.msra.mxu0 0.0
        %3416 = vmatprep.subr.mxu0 0.0
        %3417 = vmatpush1.msra.mxu0 0.0
        %3418 = vmatprep.subr.mxu0 0.0
        %3419 = vmatpush1.msra.mxu0 0.0
        %3420 = vmatprep.subr.mxu0 0.0
        %3421 = vmatpush1.msra.mxu0 0.0
        %3422 = vmatprep.subr.mxu0 0.0
        %3423 = vmatpush1.msra.mxu0 0.0
        %3424 = vmatprep.subr.mxu0 0.0
        %3425 = vmatpush1.msra.mxu0 0.0
        %3426 = vmatprep.mubr.f32.mxu0 0.0
        %3427 = vmatmul.mubr.f32.gmra.mrb[0].mxu0 %v3360
        %v3428 = vpop.f32.mrb[0].mxu0
        %v3429 = vadd.f32 %v3358, %v3428
        %v3430 = vpop.f32.mrb[0].mxu0
        %3431 = vdwg.mxu0
        %vm3432 = vcmask 16384
        %3433 = vst.msk [vmem:[%s630] sm:$0x1] %vm3432, %v3429
        %s3434 = sand.u32 %s472, 1
        %s3435 = scalar_lea.sflag [#allocation3], %s3434
        %s3436 = sand.u32 %s472, 1
        %s3437 = scalar_lea.vmem [#allocation2], %s3436
        // Predicated region
        $region101: #{bert_classifier_forward.1} parent=99 // pred_check
          %p3438 = pneg %p482
        $region102: #{bert_classifier_forward.1} parent=99 // pred_check_branch
          %3440 = sbr.rel (%p3438) target = $region104
        $region103: #{bert_classifier_forward.1} parent=99 // pred_region
          %s3442 = ssub.s32 16, 16
          %3443 = vsyncadd %s3435, %s3442
          %s3444 = smul.addr %s34, 16
          %s3445 = scalar_lea.hbm %s20, %s3444
          %s3447 = sshll.u32 %s3437, 4
          %s3448 = int_to_ptr.vmem [resolvable:$true] %s3447
          %3450 = dma.vmem_to_hbm [thread:$0]  %s3448, 16, %s3445, %s3435
        $region104: #{bert_classifier_forward.1} parent=99 // pred_fallthru
          _
      $region100: #{bert_classifier_forward.1} parent=5 // pred_fallthru
        _
      %p3451 = scmp.le.s32.totalorder 2, %s29
      // Predicated region
      $region105: #{bert_classifier_forward.1} parent=5 // pred_check
        %p3452 = pneg %p3451
      $region106: #{bert_classifier_forward.1} parent=5 // pred_check_branch
        %3454 = sbr.rel (%p3452) target = $region108
      $region107: #{bert_classifier_forward.1} parent=5 // pred_region
        %s3455 = ssub.s32 %s29, 2
        // Predicated region
        $region109: #{bert_classifier_forward.1} parent=107 // pred_check
          %p3456 = pneg %p488
        $region110: #{bert_classifier_forward.1} parent=107 // pred_check_branch
          %3458 = sbr.rel (%p3456) target = $region112
        $region111: #{bert_classifier_forward.1} parent=107 // pred_region
          %s3459 = sand.u32 %s473, 1
          %s3460 = scalar_lea.sflag [#allocation3], %s3459
          %s3461 = sand.u32 %s473, 1
          %s3462 = scalar_lea.vmem [#allocation2], %s3461
          %3463 = dma.done %s3460, 16
        $region112: #{bert_classifier_forward.1} parent=107 // pred_fallthru
          _
      $region108: #{bert_classifier_forward.1} parent=5 // pred_fallthru
        _
    $region6: #{bert_classifier_forward.1} parent=1 // loop_footer
      %s33 = sadd.s32 1, %s29
    $region7: #{bert_classifier_forward.1} parent=1 // loop_footer_branch
      %28 = sbr.rel target = $region3
    $region8: #{bert_classifier_forward.1} parent=1 // loop_exit
      _
    %3464 = vsyncpa [#allocation3], 1
    %s3465 = scalar_lea.sflag [#allocation3], 1
    %3466 = vsyncpa %s3465, 1

</llo_original>
